<compile_context>
chip_gen: v5e
topology: v5e:2x2
jax: 0.10.0
libtpu: 0.0.40
codegen_flags: <defaults>
</compile_context>

<pallas_src>
import jax
import jax.numpy as jnp
from jax.experimental import pallas as pl
from jax.experimental.pallas import tpu as pltpu

# ----------------------------- config ---------------------------------------
VOCAB = 100
HIDDEN = 32
LAYERS = 2
HEADS = 4
HEAD_DIM = HIDDEN // HEADS
INTERMEDIATE = 64
MAX_POS = 64
TYPE_VOCAB = 2
LN_EPS = 1e-12

HP = 128      # padded hidden width   (lane-dense)
IP = 128      # padded intermediate width
VP = 128      # padded vocab width
NSPP = 128    # padded NSP-class width
ATT_SCALE = 1.0 / float(HEAD_DIM) ** 0.5
NEG_BIG = -1e30

# --------------------------- in-kernel helpers -------------------------------


def _gelu(x):
    # TODO(synk): BertForPreTraining uses erf-GELU; tanh approximation kept
    # (numerically close, guaranteed Mosaic lowering).
    return 0.5 * x * (1.0 + jnp.tanh(0.7978845608028654 * (x + 0.044715 * x * x * x)))


def _layernorm(x, g, b, col_valid):
    # Centered two-pass variance (matches torch.nn.LayerNorm numerics better than
    # E[x^2]-E[x]^2).  col_valid zeroes the padded columns so statistics are over
    # the real HIDDEN width, and padded output columns stay exactly 0 (g,b padded 0).
    mean = jnp.sum(x, axis=-1, keepdims=True) * (1.0 / HIDDEN)
    xc = (x - mean) * col_valid
    var = jnp.sum(xc * xc, axis=-1, keepdims=True) * (1.0 / HIDDEN)
    return xc * jax.lax.rsqrt(var + LN_EPS) * g + b


# --------------------------- fused forward kernel ----------------------------


def _bert_forward_kernel(
        emb_ref, bias_ref, labels_ref,
        emb_g_ref, emb_b_ref,
        wqkv_ref, bqkv_ref, wo_ref, bo_ref, aln_g_ref, aln_b_ref,
        w1_ref, b1_ref, w2_ref, b2_ref, fln_g_ref, fln_b_ref,
        pool_w_ref, pool_b_ref,
        lm_tr_w_ref, lm_tr_b_ref, lm_ln_g_ref, lm_ln_b_ref,
        lm_dec_w_ref, lm_dec_b_ref,
        nsp_w_ref, nsp_b_ref,
        ctx_ref, pooled_ref, nsp_ref, stats_ref):
    """One grid step == one batch element, start to finish, entirely in VMEM."""
    bf16 = jnp.bfloat16
    f32 = jnp.float32

    # Hoisted constants (built once per invocation, reused by every LayerNorm).
    col_valid = (jax.lax.broadcasted_iota(jnp.int32, (1, HP), 1) < HIDDEN).astype(f32)

    x = emb_ref[0]                                   # (S, HP) f32 embedding sum
    s_len = x.shape[0]
    att_bias = bias_ref[0][:, :s_len]                # (1, S) additive key mask

    h = _layernorm(x, emb_g_ref[...], emb_b_ref[...], col_valid)

    # ---------------- transformer layers (static unrolled loop) ----------------
    for l in range(LAYERS):
        # ---- self-attention ----
        qkv = jnp.dot(h.astype(bf16), wqkv_ref[l],
                      preferred_element_type=f32) + bqkv_ref[l]          # (S, 3*HP)
        attn_out = jnp.zeros((s_len, HP), f32)
        for hd in range(HEADS):
            lo = hd * HEAD_DIM
            # True K=HEAD_DIM contraction per head (no lane masks, no 16x K waste).
            qh = qkv[:, lo:lo + HEAD_DIM]                                # (S, Dh)
            kh = qkv[:, HP + lo:HP + lo + HEAD_DIM]                      # (S, Dh)
            vh = qkv[:, 2 * HP + lo:2 * HP + lo + HEAD_DIM]              # (S, Dh)
            s = jax.lax.dot_general(qh, kh, (((1,), (1,)), ((), ())),
                                    preferred_element_type=f32) * ATT_SCALE
            s = s + att_bias
            m = jnp.max(s, axis=-1, keepdims=True)
            p = jnp.exp(s - m)
            p = p / jnp.sum(p, axis=-1, keepdims=True)   # exact division (torch parity)
            ctx_h = jnp.dot(p, vh, preferred_element_type=f32)           # (S, Dh)
            # Per-head output projection: accumulate ctx_h @ wo[head rows].
            wo_rows = wo_ref[l, lo:lo + HEAD_DIM, :].astype(f32)         # (Dh, HP)
            attn_out = attn_out + jnp.dot(ctx_h, wo_rows, preferred_element_type=f32)
        attn_out = attn_out + bo_ref[l]
        h = _layernorm(attn_out + h, aln_g_ref[l], aln_b_ref[l], col_valid)

        # ---- feed-forward ----
        h1 = jnp.dot(h.astype(bf16), w1_ref[l], preferred_element_type=f32) + b1_ref[l]
        h1 = _gelu(h1)
        h2 = jnp.dot(h1.astype(bf16), w2_ref[l], preferred_element_type=f32) + b2_ref[l]
        h = _layernorm(h2 + h, fln_g_ref[l], fln_b_ref[l], col_valid)

    ctx_ref[0] = h                                                       # (S, HP)

    # ---------------- pooler (CLS token) + NSP head ----------------
    cls = h[0:1, :]
    pooled = jnp.tanh(jnp.dot(cls.astype(bf16), pool_w_ref[...],
                              preferred_element_type=f32) + pool_b_ref[...])
    pooled_ref[0] = pooled                                               # (1, HP)
    nsp_ref[0] = jnp.dot(pooled.astype(bf16), nsp_w_ref[...],
                         preferred_element_type=f32) + nsp_b_ref[...]    # (1, NSPP)

    # ---------------- LM head fused with masked cross-entropy ----------------
    t = jnp.dot(h.astype(bf16), lm_tr_w_ref[...], preferred_element_type=f32) + lm_tr_b_ref[...]
    t = _gelu(t)
    t = _layernorm(t, lm_ln_g_ref[...], lm_ln_b_ref[...], col_valid)
    logits = jnp.dot(t.astype(bf16), lm_dec_w_ref[...],
                     preferred_element_type=f32) + lm_dec_b_ref[...]     # (S, VP) -- VMEM only

    labels = labels_ref[0]                                               # (S, 1) i32
    vcol = jax.lax.broadcasted_iota(jnp.int32, logits.shape, 1)
    logits = jnp.where(vcol < VOCAB, logits, NEG_BIG)                    # mask padded classes
    m = jnp.max(logits, axis=-1, keepdims=True)
    lse = m + jnp.log(jnp.sum(jnp.exp(logits - m), axis=-1, keepdims=True))
    # Labels are guaranteed < VOCAB by construction (padded classes never selected).
    label_logit = jnp.sum(jnp.where(vcol == labels, logits, 0.0), axis=-1, keepdims=True)
    valid = (labels != 0).astype(f32)                                    # LM ignore_index == 0
    per_row = (lse - label_logit) * valid                                # (S, 1)
    loss_sum = jnp.sum(per_row, axis=0, keepdims=True)                   # (1, 1)
    cnt = jnp.sum(valid, axis=0, keepdims=True)                          # (1, 1)
    lane = jax.lax.broadcasted_iota(jnp.int32, (1, 128), 1)
    # Lane-dense stats row: lane0 = loss sum, lane1 = valid count.
    stats_ref[0] = jnp.where(lane == 0, loss_sum, 0.0) + jnp.where(lane == 1, cnt, 0.0)


# --------------------------- kernel wrapper ----------------------------------


def fused_bert_forward(params, tokens, segment_ids, lm_label_ids):
    B, S = tokens.shape
    mask = tokens > 0  # same mask the module derives: tokens['tokens'] > 0

    # XLA glue: embedding gathers (data-dependent, stay outside the kernel).
    positions = jnp.arange(S, dtype=jnp.int32)
    emb = (
        jnp.take(params["word_emb_p"], tokens, axis=0)
        + jnp.take(params["pos_emb_p"], positions, axis=0)[None, :, :]
        + jnp.take(params["type_emb_p"], segment_ids, axis=0)
    )                                                                    # (B, S, HP) f32
    bias = ((1.0 - mask.astype(jnp.float32)) * -10000.0).reshape(B, 1, S)
    bias_p = jnp.pad(bias, ((0, 0), (0, 0), (0, 128 - S)))               # lane-dense (B,1,128)
    labels3 = lm_label_ids.reshape(B, S, 1).astype(jnp.int32)

    def wspec(shape):
        zero = (0,) * len(shape)
        return pl.BlockSpec(shape, lambda *args, _z=zero: _z)            # grid-invariant

    def bspec(shape):
        return pl.BlockSpec(shape, lambda b, _n=len(shape): (b,) + (0,) * (_n - 1))

    weight_order = [
        ("emb_ln_g", (1, HP)), ("emb_ln_b", (1, HP)),
        ("wqkv", (LAYERS, HP, 3 * HP)), ("bqkv", (LAYERS, 1, 3 * HP)),
        ("wo", (LAYERS, HP, HP)), ("bo", (LAYERS, 1, HP)),
        ("attn_ln_g", (LAYERS, 1, HP)), ("attn_ln_b", (LAYERS, 1, HP)),
        ("w1", (LAYERS, HP, IP)), ("b1", (LAYERS, 1, IP)),
        ("w2", (LAYERS, IP, HP)), ("b2", (LAYERS, 1, HP)),
        ("ffn_ln_g", (LAYERS, 1, HP)), ("ffn_ln_b", (LAYERS, 1, HP)),
        ("pool_w", (HP, HP)), ("pool_b", (1, HP)),
        ("lm_tr_w", (HP, HP)), ("lm_tr_b", (1, HP)),
        ("lm_ln_g", (1, HP)), ("lm_ln_b", (1, HP)),
        ("lm_dec_w", (HP, VP)), ("lm_dec_b", (1, VP)),
        ("nsp_w", (HP, NSPP)), ("nsp_b", (1, NSPP)),
    ]
    weight_args = [params[k] for k, _ in weight_order]
    weight_specs = [wspec(s) for _, s in weight_order]

    # TODO(synk): at production sizes (HIDDEN=768, VOCAB~30k) add an "arbitrary"
    # vocab-tile grid axis for the tied decoder (won't fit VMEM as one block) and
    # tile more rows per grid step toward the 256-row MXU (flatten batch into M).
    ctx, pooled3, nsp3, stats3 = pl.pallas_call(
        _bert_forward_kernel,
        out_shape=(
            jax.ShapeDtypeStruct((B, S, HP), jnp.float32),     # contextual embeddings
            jax.ShapeDtypeStruct((B, 1, HP), jnp.float32),     # pooled output
            jax.ShapeDtypeStruct((B, 1, NSPP), jnp.float32),   # NSP logits (padded)
            jax.ShapeDtypeStruct((B, 1, 128), jnp.float32),    # [lm loss sum, valid count]
        ),
        grid=(B,),
        in_specs=[bspec((1, S, HP)), bspec((1, 1, 128)), bspec((1, S, 1))] + weight_specs,
        out_specs=(bspec((1, S, HP)), bspec((1, 1, HP)),
                   bspec((1, 1, NSPP)), bspec((1, 1, 128))),
        compiler_params=pltpu.CompilerParams(dimension_semantics=("parallel",)),
    )(emb, bias_p, labels3, *weight_args)

    pooled = pooled3[:, 0, :]                       # (B, HP)
    nsp_logits = nsp3[:, 0, :]                      # (B, NSPP)
    lm_loss_sum = jnp.sum(stats3[:, 0, 0])
    lm_cnt = jnp.sum(stats3[:, 0, 1])
    return ctx, pooled, nsp_logits, lm_loss_sum, lm_cnt


def _nsp_xent(logits2, labels):
    """2-row, 2-class cross entropy with ignore_index=-1 (plain XLA; too small for a kernel)."""
    labels = labels.reshape(-1).astype(jnp.int32)
    valid = (labels != -1).astype(jnp.float32)
    safe = jnp.maximum(labels, 0)
    m = jnp.max(logits2, axis=-1, keepdims=True)
    lse = (m + jnp.log(jnp.sum(jnp.exp(logits2 - m), axis=-1, keepdims=True)))[:, 0]
    ll = jnp.take_along_axis(logits2, safe[:, None], axis=-1)[:, 0]
    per = (lse - ll) * valid
    return jnp.sum(per) / jnp.maximum(jnp.sum(valid), 1.0)


# ----------------------- parameter initialization ---------------------------


def init_params(key):
    def nxt():
        nonlocal key
        key, sub = jax.random.split(key)
        return sub

    def norm(shape):
        return 0.02 * jax.random.normal(nxt(), shape, jnp.float32)

    def pad2(w, rows, cols):
        return jnp.pad(w, ((0, rows - w.shape[0]), (0, cols - w.shape[1])))

    def ln_gamma(real, cols):
        return jnp.pad(jnp.ones((1, real), jnp.float32), ((0, 0), (0, cols - real)))

    def zrow(cols):
        return jnp.zeros((1, cols), jnp.float32)

    bf16 = jnp.bfloat16
    word_emb = norm((VOCAB, HIDDEN))

    wqkv, bqkv, wo, bo, aln_g, aln_b = [], [], [], [], [], []
    w1, b1, w2, b2, fln_g, fln_b = [], [], [], [], [], []
    for _ in range(LAYERS):
        wq = pad2(norm((HIDDEN, HIDDEN)), HP, HP)
        wk = pad2(norm((HIDDEN, HIDDEN)), HP, HP)
        wv = pad2(norm((HIDDEN, HIDDEN)), HP, HP)
        wqkv.append(jnp.concatenate([wq, wk, wv], axis=1))
        bqkv.append(jnp.zeros((1, 3 * HP), jnp.float32))
        wo.append(pad2(norm((HIDDEN, HIDDEN)), HP, HP)); bo.append(zrow(HP))
        aln_g.append(ln_gamma(HIDDEN, HP)); aln_b.append(zrow(HP))
        w1.append(pad2(norm((HIDDEN, INTERMEDIATE)), HP, IP)); b1.append(zrow(IP))
        w2.append(pad2(norm((INTERMEDIATE, HIDDEN)), IP, HP)); b2.append(zrow(HP))
        fln_g.append(ln_gamma(HIDDEN, HP)); fln_b.append(zrow(HP))

    return {
        # embedding tables padded to HP columns (gather glue produces lane-dense rows)
        "word_emb_p": pad2(word_emb, VOCAB, HP),
        "pos_emb_p": pad2(norm((MAX_POS, HIDDEN)), MAX_POS, HP),
        "type_emb_p": pad2(norm((TYPE_VOCAB, HIDDEN)), TYPE_VOCAB, HP),
        "emb_ln_g": ln_gamma(HIDDEN, HP), "emb_ln_b": zrow(HP),
        # per-layer weights stacked on a leading LAYERS axis (indexed in-kernel)
        "wqkv": jnp.stack(wqkv).astype(bf16), "bqkv": jnp.stack(bqkv),
        "wo": jnp.stack(wo).astype(bf16), "bo": jnp.stack(bo),
        "attn_ln_g": jnp.stack(aln_g), "attn_ln_b": jnp.stack(aln_b),
        "w1": jnp.stack(w1).astype(bf16), "b1": jnp.stack(b1),
        "w2": jnp.stack(w2).astype(bf16), "b2": jnp.stack(b2),
        "ffn_ln_g": jnp.stack(fln_g), "ffn_ln_b": jnp.stack(fln_b),
        # pooler
        "pool_w": pad2(norm((HIDDEN, HIDDEN)), HP, HP).astype(bf16), "pool_b": zrow(HP),
        # LM prediction head: transform + LN + tied decoder.
        # NOTE: decoder is tied to word_emb by value at init only (forward-only use).
        "lm_tr_w": pad2(norm((HIDDEN, HIDDEN)), HP, HP).astype(bf16), "lm_tr_b": zrow(HP),
        "lm_ln_g": ln_gamma(HIDDEN, HP), "lm_ln_b": zrow(HP),
        "lm_dec_w": pad2(word_emb.T, HP, VP).astype(bf16), "lm_dec_b": zrow(VP),
        # NSP head
        "nsp_w": pad2(norm((HIDDEN, 2)), HP, NSPP).astype(bf16), "nsp_b": zrow(NSPP),
    }


# ------------------------------ model ---------------------------------------


def forward(params, tokens, segment_ids, lm_label_ids=None, next_sentence_label=None):
    """Mirrors CustomBertPretrainedMaskedLM.forward (loss + embeddings)."""
    B, S = tokens.shape
    lm_for_kernel = lm_label_ids if lm_label_ids is not None else jnp.zeros((B, S), jnp.int32)
    ctx, pooled, nsp_logits, lm_loss_sum, lm_cnt = fused_bert_forward(
        params, tokens, segment_ids, lm_for_kernel)

    loss = 0.0
    if lm_label_ids is not None:
        loss = loss + lm_loss_sum / jnp.maximum(lm_cnt, 1.0)
    if next_sentence_label is not None:
        loss = loss + _nsp_xent(nsp_logits[:, :2], next_sentence_label)

    # TODO(synk): AllenNLP metric bookkeeping (EMA/Average/MRR/CategoricalAccuracy) is
    # host-side stateful tracking, not device compute; omitted.
    return {
        "loss": loss,
        "contextual_embeddings": ctx[..., :HIDDEN],
        "pooled_output": pooled[:, :HIDDEN],
    }


# ------------------------------- main ----------------------------------------

if __name__ == "__main__":
    root = jax.random.PRNGKey(0)
    pkey, tkey, lkey = jax.random.split(root, 3)
    params = init_params(pkey)

    B, S = 2, 8
    tokens = jax.random.randint(tkey, (B, S), 1, VOCAB).astype(jnp.int32)
    tokens = tokens.at[:, -2:].set(0)  # padding (mask = tokens > 0)
    segment_ids = jnp.concatenate(
        [jnp.zeros((B, S // 2), jnp.int32), jnp.ones((B, S // 2), jnp.int32)], axis=1
    )
    lm_labels = jnp.zeros((B, S), jnp.int32)  # 0 == ignore_index for LM loss
    lm_labels = lm_labels.at[:, 2].set(jax.random.randint(lkey, (B,), 1, VOCAB))
    next_sentence_label = jnp.array([0, 1], jnp.int32)

    fwd = jax.jit(forward)
    out = fwd(params, tokens, segment_ids, lm_labels, next_sentence_label)
    jax.block_until_ready(out)
    print("KERNEL_OK")
</pallas_src>

<mosaic_0001>
module attributes {stable_mosaic.version = 11 : i64} {
  func.func @_bert_forward_kernel(%arg0: i32, %arg1: memref<1x8x128xf32, #tpu.memory_space<vmem>>, %arg2: memref<1x1x128xf32, #tpu.memory_space<vmem>>, %arg3: memref<1x8x1xi32, #tpu.memory_space<vmem>>, %arg4: memref<1x128xf32, #tpu.memory_space<vmem>>, %arg5: memref<1x128xf32, #tpu.memory_space<vmem>>, %arg6: memref<2x128x384xbf16, #tpu.memory_space<vmem>>, %arg7: memref<2x1x384xf32, #tpu.memory_space<vmem>>, %arg8: memref<2x128x128xbf16, #tpu.memory_space<vmem>>, %arg9: memref<2x1x128xf32, #tpu.memory_space<vmem>>, %arg10: memref<2x1x128xf32, #tpu.memory_space<vmem>>, %arg11: memref<2x1x128xf32, #tpu.memory_space<vmem>>, %arg12: memref<2x128x128xbf16, #tpu.memory_space<vmem>>, %arg13: memref<2x1x128xf32, #tpu.memory_space<vmem>>, %arg14: memref<2x128x128xbf16, #tpu.memory_space<vmem>>, %arg15: memref<2x1x128xf32, #tpu.memory_space<vmem>>, %arg16: memref<2x1x128xf32, #tpu.memory_space<vmem>>, %arg17: memref<2x1x128xf32, #tpu.memory_space<vmem>>, %arg18: memref<128x128xbf16, #tpu.memory_space<vmem>>, %arg19: memref<1x128xf32, #tpu.memory_space<vmem>>, %arg20: memref<128x128xbf16, #tpu.memory_space<vmem>>, %arg21: memref<1x128xf32, #tpu.memory_space<vmem>>, %arg22: memref<1x128xf32, #tpu.memory_space<vmem>>, %arg23: memref<1x128xf32, #tpu.memory_space<vmem>>, %arg24: memref<128x128xbf16, #tpu.memory_space<vmem>>, %arg25: memref<1x128xf32, #tpu.memory_space<vmem>>, %arg26: memref<128x128xbf16, #tpu.memory_space<vmem>>, %arg27: memref<1x128xf32, #tpu.memory_space<vmem>>, %arg28: memref<1x8x128xf32, #tpu.memory_space<vmem>>, %arg29: memref<1x1x128xf32, #tpu.memory_space<vmem>>, %arg30: memref<1x1x128xf32, #tpu.memory_space<vmem>>, %arg31: memref<1x1x128xf32, #tpu.memory_space<vmem>>) attributes {dimension_semantics = [#tpu.dimension_semantics<parallel>], iteration_bounds = array<i64: 2>, scalar_prefetch = 0 : i64, scratch_operands = 0 : i64, tpu.core_type = #tpu.core_type<tc>, window_params = [{transform_indices = @transform_0, window_bounds = array<i64: 1, 8, 128>}, {transform_indices = @transform_1, window_bounds = array<i64: 1, 1, 128>}, {transform_indices = @transform_2, window_bounds = array<i64: 1, 8, 1>}, {pipeline_mode = #tpu.pipeline_mode<synchronous>, transform_indices = @transform_3, window_bounds = array<i64: 1, 128>}, {pipeline_mode = #tpu.pipeline_mode<synchronous>, transform_indices = @transform_4, window_bounds = array<i64: 1, 128>}, {pipeline_mode = #tpu.pipeline_mode<synchronous>, transform_indices = @transform_5, window_bounds = array<i64: 2, 128, 384>}, {pipeline_mode = #tpu.pipeline_mode<synchronous>, transform_indices = @transform_6, window_bounds = array<i64: 2, 1, 384>}, {pipeline_mode = #tpu.pipeline_mode<synchronous>, transform_indices = @transform_7, window_bounds = array<i64: 2, 128, 128>}, {pipeline_mode = #tpu.pipeline_mode<synchronous>, transform_indices = @transform_8, window_bounds = array<i64: 2, 1, 128>}, {pipeline_mode = #tpu.pipeline_mode<synchronous>, transform_indices = @transform_9, window_bounds = array<i64: 2, 1, 128>}, {pipeline_mode = #tpu.pipeline_mode<synchronous>, transform_indices = @transform_10, window_bounds = array<i64: 2, 1, 128>}, {pipeline_mode = #tpu.pipeline_mode<synchronous>, transform_indices = @transform_11, window_bounds = array<i64: 2, 128, 128>}, {pipeline_mode = #tpu.pipeline_mode<synchronous>, transform_indices = @transform_12, window_bounds = array<i64: 2, 1, 128>}, {pipeline_mode = #tpu.pipeline_mode<synchronous>, transform_indices = @transform_13, window_bounds = array<i64: 2, 128, 128>}, {pipeline_mode = #tpu.pipeline_mode<synchronous>, transform_indices = @transform_14, window_bounds = array<i64: 2, 1, 128>}, {pipeline_mode = #tpu.pipeline_mode<synchronous>, transform_indices = @transform_15, window_bounds = array<i64: 2, 1, 128>}, {pipeline_mode = #tpu.pipeline_mode<synchronous>, transform_indices = @transform_16, window_bounds = array<i64: 2, 1, 128>}, {pipeline_mode = #tpu.pipeline_mode<synchronous>, transform_indices = @transform_17, window_bounds = array<i64: 128, 128>}, {pipeline_mode = #tpu.pipeline_mode<synchronous>, transform_indices = @transform_18, window_bounds = array<i64: 1, 128>}, {pipeline_mode = #tpu.pipeline_mode<synchronous>, transform_indices = @transform_19, window_bounds = array<i64: 128, 128>}, {pipeline_mode = #tpu.pipeline_mode<synchronous>, transform_indices = @transform_20, window_bounds = array<i64: 1, 128>}, {pipeline_mode = #tpu.pipeline_mode<synchronous>, transform_indices = @transform_21, window_bounds = array<i64: 1, 128>}, {pipeline_mode = #tpu.pipeline_mode<synchronous>, transform_indices = @transform_22, window_bounds = array<i64: 1, 128>}, {pipeline_mode = #tpu.pipeline_mode<synchronous>, transform_indices = @transform_23, window_bounds = array<i64: 128, 128>}, {pipeline_mode = #tpu.pipeline_mode<synchronous>, transform_indices = @transform_24, window_bounds = array<i64: 1, 128>}, {pipeline_mode = #tpu.pipeline_mode<synchronous>, transform_indices = @transform_25, window_bounds = array<i64: 128, 128>}, {pipeline_mode = #tpu.pipeline_mode<synchronous>, transform_indices = @transform_26, window_bounds = array<i64: 1, 128>}, {transform_indices = @transform_27, window_bounds = array<i64: 1, 8, 128>}, {transform_indices = @transform_28, window_bounds = array<i64: 1, 1, 128>}, {transform_indices = @transform_29, window_bounds = array<i64: 1, 1, 128>}, {transform_indices = @transform_30, window_bounds = array<i64: 1, 1, 128>}]} {
    %0 = tpu.iota {dimensions = array<i32: 1>} : vector<1x128xi32>
    %c32_i32 = arith.constant 32 : i32
    %1 = vector.broadcast %c32_i32 : i32 to vector<1x128xi32>
    %2 = arith.cmpi slt, %0, %1 : vector<1x128xi32>
    %3 = arith.extui %2 : vector<1x128xi1> to vector<1x128xi32>
    %4 = arith.sitofp %3 : vector<1x128xi32> to vector<1x128xf32>
    %c0 = arith.constant 0 : index
    %c0_0 = arith.constant 0 : index
    %c0_1 = arith.constant 0 : index
    %5 = vector.load %arg1[%c0, %c0_0, %c0_1] : memref<1x8x128xf32, #tpu.memory_space<vmem>>, vector<1x8x128xf32>
    %6 = vector.shape_cast %5 : vector<1x8x128xf32> to vector<8x128xf32>
    %c0_2 = arith.constant 0 : index
    %c0_3 = arith.constant 0 : index
    %c0_4 = arith.constant 0 : index
    %7 = vector.load %arg2[%c0_2, %c0_3, %c0_4] : memref<1x1x128xf32, #tpu.memory_space<vmem>>, vector<1x1x128xf32>
    %8 = vector.shape_cast %7 : vector<1x1x128xf32> to vector<1x128xf32>
    %9 = vector.extract_strided_slice %8 {offsets = [0, 0], sizes = [1, 8], strides = [1, 1]} : vector<1x128xf32> to vector<1x8xf32>
    %c0_5 = arith.constant 0 : index
    %c0_6 = arith.constant 0 : index
    %10 = vector.load %arg4[%c0_5, %c0_6] : memref<1x128xf32, #tpu.memory_space<vmem>>, vector<1x128xf32>
    %c0_7 = arith.constant 0 : index
    %c0_8 = arith.constant 0 : index
    %11 = vector.load %arg5[%c0_7, %c0_8] : memref<1x128xf32, #tpu.memory_space<vmem>>, vector<1x128xf32>
    %cst = arith.constant dense<0.000000e+00> : vector<8xf32>
    %12 = vector.multi_reduction <add>, %6, %cst [1] : vector<8x128xf32> to vector<8xf32>
    %13 = vector.shape_cast %12 : vector<8xf32> to vector<8x1xf32>
    %cst_9 = arith.constant 3.125000e-02 : f32
    %14 = vector.broadcast %cst_9 : f32 to vector<8x1xf32>
    %15 = arith.mulf %13, %14 : vector<8x1xf32>
    %16 = vector.broadcast %15 : vector<8x1xf32> to vector<8x128xf32>
    %17 = arith.subf %6, %16 : vector<8x128xf32>
    %18 = vector.broadcast %4 : vector<1x128xf32> to vector<8x128xf32>
    %19 = arith.mulf %17, %18 : vector<8x128xf32>
    %20 = arith.mulf %19, %19 : vector<8x128xf32>
    %cst_10 = arith.constant dense<0.000000e+00> : vector<8xf32>
    %21 = vector.multi_reduction <add>, %20, %cst_10 [1] : vector<8x128xf32> to vector<8xf32>
    %22 = vector.shape_cast %21 : vector<8xf32> to vector<8x1xf32>
    %cst_11 = arith.constant 3.125000e-02 : f32
    %23 = vector.broadcast %cst_11 : f32 to vector<8x1xf32>
    %24 = arith.mulf %22, %23 : vector<8x1xf32>
    %cst_12 = arith.constant 9.99999996E-13 : f32
    %25 = vector.broadcast %cst_12 : f32 to vector<8x1xf32>
    %26 = arith.addf %24, %25 : vector<8x1xf32>
    %27 = math.rsqrt %26 : vector<8x1xf32>
    %28 = vector.broadcast %27 : vector<8x1xf32> to vector<8x128xf32>
    %29 = arith.mulf %19, %28 : vector<8x128xf32>
    %30 = vector.broadcast %10 : vector<1x128xf32> to vector<8x128xf32>
    %31 = arith.mulf %29, %30 : vector<8x128xf32>
    %32 = vector.broadcast %11 : vector<1x128xf32> to vector<8x128xf32>
    %33 = arith.addf %31, %32 : vector<8x128xf32>
    %34 = arith.truncf %33 : vector<8x128xf32> to vector<8x128xbf16>
    %c0_13 = arith.constant 0 : index
    %c0_14 = arith.constant 0 : index
    %c0_15 = arith.constant 0 : index
    %35 = vector.load %arg6[%c0_13, %c0_14, %c0_15] : memref<2x128x384xbf16, #tpu.memory_space<vmem>>, vector<1x128x384xbf16>
    %36 = vector.shape_cast %35 : vector<1x128x384xbf16> to vector<128x384xbf16>
    %cst_16 = arith.constant dense<0.000000e+00> : vector<8x384xf32>
    %37 = tpu.matmul %34, %36, %cst_16 {dimension_numbers = #tpu.dot_dimension_numbers<[1], [0], [0], [1], [0, 0, 1, 1], [], []>} : vector<8x128xbf16>, vector<128x384xbf16>, vector<8x384xf32> -> vector<8x384xf32>
    %c0_17 = arith.constant 0 : index
    %c0_18 = arith.constant 0 : index
    %c0_19 = arith.constant 0 : index
    %38 = vector.load %arg7[%c0_17, %c0_18, %c0_19] : memref<2x1x384xf32, #tpu.memory_space<vmem>>, vector<1x1x384xf32>
    %39 = vector.shape_cast %38 : vector<1x1x384xf32> to vector<1x384xf32>
    %40 = vector.broadcast %39 : vector<1x384xf32> to vector<8x384xf32>
    %41 = arith.addf %37, %40 : vector<8x384xf32>
    %cst_20 = arith.constant 0.000000e+00 : f32
    %42 = vector.broadcast %cst_20 : f32 to vector<8x128xf32>
    %43 = vector.extract_strided_slice %41 {offsets = [0, 0], sizes = [8, 8], strides = [1, 1]} : vector<8x384xf32> to vector<8x8xf32>
    %44 = vector.extract_strided_slice %41 {offsets = [0, 128], sizes = [8, 8], strides = [1, 1]} : vector<8x384xf32> to vector<8x8xf32>
    %45 = vector.extract_strided_slice %41 {offsets = [0, 256], sizes = [8, 8], strides = [1, 1]} : vector<8x384xf32> to vector<8x8xf32>
    %cst_21 = arith.constant dense<0.000000e+00> : vector<8x8xf32>
    %46 = tpu.matmul %43, %44, %cst_21 {dimension_numbers = #tpu.dot_dimension_numbers<[1], [1], [0], [0], [0, 0, 1, 0], [], []>} : vector<8x8xf32>, vector<8x8xf32>, vector<8x8xf32> -> vector<8x8xf32>
    %cst_22 = arith.constant 0.353553385 : f32
    %47 = vector.broadcast %cst_22 : f32 to vector<8x8xf32>
    %48 = arith.mulf %46, %47 : vector<8x8xf32>
    %49 = vector.broadcast %9 : vector<1x8xf32> to vector<8x8xf32>
    %50 = arith.addf %48, %49 : vector<8x8xf32>
    %cst_23 = arith.constant dense<0xFF800000> : vector<8xf32>
    %51 = vector.multi_reduction <maximumf>, %50, %cst_23 [1] : vector<8x8xf32> to vector<8xf32>
    %52 = vector.shape_cast %51 : vector<8xf32> to vector<8x1xf32>
    %53 = vector.broadcast %52 : vector<8x1xf32> to vector<8x8xf32>
    %54 = arith.subf %50, %53 : vector<8x8xf32>
    %55 = math.exp %54 : vector<8x8xf32>
    %cst_24 = arith.constant dense<0.000000e+00> : vector<8xf32>
    %56 = vector.multi_reduction <add>, %55, %cst_24 [1] : vector<8x8xf32> to vector<8xf32>
    %57 = vector.shape_cast %56 : vector<8xf32> to vector<8x1xf32>
    %58 = vector.broadcast %57 : vector<8x1xf32> to vector<8x8xf32>
    %59 = arith.divf %55, %58 : vector<8x8xf32>
    %cst_25 = arith.constant dense<0.000000e+00> : vector<8x8xf32>
    %60 = tpu.matmul %59, %45, %cst_25 {dimension_numbers = #tpu.dot_dimension_numbers<[1], [0], [0], [1], [0, 0, 1, 1], [], []>} : vector<8x8xf32>, vector<8x8xf32>, vector<8x8xf32> -> vector<8x8xf32>
    %c0_26 = arith.constant 0 : index
    %c0_27 = arith.constant 0 : index
    %c0_28 = arith.constant 0 : index
    %61 = vector.load %arg8[%c0_26, %c0_27, %c0_28] : memref<2x128x128xbf16, #tpu.memory_space<vmem>>, vector<1x8x128xbf16>
    %62 = vector.shape_cast %61 : vector<1x8x128xbf16> to vector<8x128xbf16>
    %63 = arith.extf %62 : vector<8x128xbf16> to vector<8x128xf32>
    %cst_29 = arith.constant dense<0.000000e+00> : vector<8x128xf32>
    %64 = tpu.matmul %60, %63, %cst_29 {dimension_numbers = #tpu.dot_dimension_numbers<[1], [0], [0], [1], [0, 0, 1, 1], [], []>} : vector<8x8xf32>, vector<8x128xf32>, vector<8x128xf32> -> vector<8x128xf32>
    %65 = arith.addf %42, %64 : vector<8x128xf32>
    %66 = vector.extract_strided_slice %41 {offsets = [0, 8], sizes = [8, 8], strides = [1, 1]} : vector<8x384xf32> to vector<8x8xf32>
    %67 = vector.extract_strided_slice %41 {offsets = [0, 136], sizes = [8, 8], strides = [1, 1]} : vector<8x384xf32> to vector<8x8xf32>
    %68 = vector.extract_strided_slice %41 {offsets = [0, 264], sizes = [8, 8], strides = [1, 1]} : vector<8x384xf32> to vector<8x8xf32>
    %cst_30 = arith.constant dense<0.000000e+00> : vector<8x8xf32>
    %69 = tpu.matmul %66, %67, %cst_30 {dimension_numbers = #tpu.dot_dimension_numbers<[1], [1], [0], [0], [0, 0, 1, 0], [], []>} : vector<8x8xf32>, vector<8x8xf32>, vector<8x8xf32> -> vector<8x8xf32>
    %cst_31 = arith.constant 0.353553385 : f32
    %70 = vector.broadcast %cst_31 : f32 to vector<8x8xf32>
    %71 = arith.mulf %69, %70 : vector<8x8xf32>
    %72 = vector.broadcast %9 : vector<1x8xf32> to vector<8x8xf32>
    %73 = arith.addf %71, %72 : vector<8x8xf32>
    %cst_32 = arith.constant dense<0xFF800000> : vector<8xf32>
    %74 = vector.multi_reduction <maximumf>, %73, %cst_32 [1] : vector<8x8xf32> to vector<8xf32>
    %75 = vector.shape_cast %74 : vector<8xf32> to vector<8x1xf32>
    %76 = vector.broadcast %75 : vector<8x1xf32> to vector<8x8xf32>
    %77 = arith.subf %73, %76 : vector<8x8xf32>
    %78 = math.exp %77 : vector<8x8xf32>
    %cst_33 = arith.constant dense<0.000000e+00> : vector<8xf32>
    %79 = vector.multi_reduction <add>, %78, %cst_33 [1] : vector<8x8xf32> to vector<8xf32>
    %80 = vector.shape_cast %79 : vector<8xf32> to vector<8x1xf32>
    %81 = vector.broadcast %80 : vector<8x1xf32> to vector<8x8xf32>
    %82 = arith.divf %78, %81 : vector<8x8xf32>
    %cst_34 = arith.constant dense<0.000000e+00> : vector<8x8xf32>
    %83 = tpu.matmul %82, %68, %cst_34 {dimension_numbers = #tpu.dot_dimension_numbers<[1], [0], [0], [1], [0, 0, 1, 1], [], []>} : vector<8x8xf32>, vector<8x8xf32>, vector<8x8xf32> -> vector<8x8xf32>
    %c0_35 = arith.constant 0 : index
    %c8 = arith.constant 8 : index
    %c0_36 = arith.constant 0 : index
    %84 = vector.load %arg8[%c0_35, %c8, %c0_36] : memref<2x128x128xbf16, #tpu.memory_space<vmem>>, vector<1x8x128xbf16>
    %85 = vector.shape_cast %84 : vector<1x8x128xbf16> to vector<8x128xbf16>
    %86 = arith.extf %85 : vector<8x128xbf16> to vector<8x128xf32>
    %cst_37 = arith.constant dense<0.000000e+00> : vector<8x128xf32>
    %87 = tpu.matmul %83, %86, %cst_37 {dimension_numbers = #tpu.dot_dimension_numbers<[1], [0], [0], [1], [0, 0, 1, 1], [], []>} : vector<8x8xf32>, vector<8x128xf32>, vector<8x128xf32> -> vector<8x128xf32>
    %88 = arith.addf %65, %87 : vector<8x128xf32>
    %89 = vector.extract_strided_slice %41 {offsets = [0, 16], sizes = [8, 8], strides = [1, 1]} : vector<8x384xf32> to vector<8x8xf32>
    %90 = vector.extract_strided_slice %41 {offsets = [0, 144], sizes = [8, 8], strides = [1, 1]} : vector<8x384xf32> to vector<8x8xf32>
    %91 = vector.extract_strided_slice %41 {offsets = [0, 272], sizes = [8, 8], strides = [1, 1]} : vector<8x384xf32> to vector<8x8xf32>
    %cst_38 = arith.constant dense<0.000000e+00> : vector<8x8xf32>
    %92 = tpu.matmul %89, %90, %cst_38 {dimension_numbers = #tpu.dot_dimension_numbers<[1], [1], [0], [0], [0, 0, 1, 0], [], []>} : vector<8x8xf32>, vector<8x8xf32>, vector<8x8xf32> -> vector<8x8xf32>
    %cst_39 = arith.constant 0.353553385 : f32
    %93 = vector.broadcast %cst_39 : f32 to vector<8x8xf32>
    %94 = arith.mulf %92, %93 : vector<8x8xf32>
    %95 = vector.broadcast %9 : vector<1x8xf32> to vector<8x8xf32>
    %96 = arith.addf %94, %95 : vector<8x8xf32>
    %cst_40 = arith.constant dense<0xFF800000> : vector<8xf32>
    %97 = vector.multi_reduction <maximumf>, %96, %cst_40 [1] : vector<8x8xf32> to vector<8xf32>
    %98 = vector.shape_cast %97 : vector<8xf32> to vector<8x1xf32>
    %99 = vector.broadcast %98 : vector<8x1xf32> to vector<8x8xf32>
    %100 = arith.subf %96, %99 : vector<8x8xf32>
    %101 = math.exp %100 : vector<8x8xf32>
    %cst_41 = arith.constant dense<0.000000e+00> : vector<8xf32>
    %102 = vector.multi_reduction <add>, %101, %cst_41 [1] : vector<8x8xf32> to vector<8xf32>
    %103 = vector.shape_cast %102 : vector<8xf32> to vector<8x1xf32>
    %104 = vector.broadcast %103 : vector<8x1xf32> to vector<8x8xf32>
    %105 = arith.divf %101, %104 : vector<8x8xf32>
    %cst_42 = arith.constant dense<0.000000e+00> : vector<8x8xf32>
    %106 = tpu.matmul %105, %91, %cst_42 {dimension_numbers = #tpu.dot_dimension_numbers<[1], [0], [0], [1], [0, 0, 1, 1], [], []>} : vector<8x8xf32>, vector<8x8xf32>, vector<8x8xf32> -> vector<8x8xf32>
    %c0_43 = arith.constant 0 : index
    %c16 = arith.constant 16 : index
    %c0_44 = arith.constant 0 : index
    %107 = vector.load %arg8[%c0_43, %c16, %c0_44] : memref<2x128x128xbf16, #tpu.memory_space<vmem>>, vector<1x8x128xbf16>
    %108 = vector.shape_cast %107 : vector<1x8x128xbf16> to vector<8x128xbf16>
    %109 = arith.extf %108 : vector<8x128xbf16> to vector<8x128xf32>
    %cst_45 = arith.constant dense<0.000000e+00> : vector<8x128xf32>
    %110 = tpu.matmul %106, %109, %cst_45 {dimension_numbers = #tpu.dot_dimension_numbers<[1], [0], [0], [1], [0, 0, 1, 1], [], []>} : vector<8x8xf32>, vector<8x128xf32>, vector<8x128xf32> -> vector<8x128xf32>
    %111 = arith.addf %88, %110 : vector<8x128xf32>
    %112 = vector.extract_strided_slice %41 {offsets = [0, 24], sizes = [8, 8], strides = [1, 1]} : vector<8x384xf32> to vector<8x8xf32>
    %113 = vector.extract_strided_slice %41 {offsets = [0, 152], sizes = [8, 8], strides = [1, 1]} : vector<8x384xf32> to vector<8x8xf32>
    %114 = vector.extract_strided_slice %41 {offsets = [0, 280], sizes = [8, 8], strides = [1, 1]} : vector<8x384xf32> to vector<8x8xf32>
    %cst_46 = arith.constant dense<0.000000e+00> : vector<8x8xf32>
    %115 = tpu.matmul %112, %113, %cst_46 {dimension_numbers = #tpu.dot_dimension_numbers<[1], [1], [0], [0], [0, 0, 1, 0], [], []>} : vector<8x8xf32>, vector<8x8xf32>, vector<8x8xf32> -> vector<8x8xf32>
    %cst_47 = arith.constant 0.353553385 : f32
    %116 = vector.broadcast %cst_47 : f32 to vector<8x8xf32>
    %117 = arith.mulf %115, %116 : vector<8x8xf32>
    %118 = vector.broadcast %9 : vector<1x8xf32> to vector<8x8xf32>
    %119 = arith.addf %117, %118 : vector<8x8xf32>
    %cst_48 = arith.constant dense<0xFF800000> : vector<8xf32>
    %120 = vector.multi_reduction <maximumf>, %119, %cst_48 [1] : vector<8x8xf32> to vector<8xf32>
    %121 = vector.shape_cast %120 : vector<8xf32> to vector<8x1xf32>
    %122 = vector.broadcast %121 : vector<8x1xf32> to vector<8x8xf32>
    %123 = arith.subf %119, %122 : vector<8x8xf32>
    %124 = math.exp %123 : vector<8x8xf32>
    %cst_49 = arith.constant dense<0.000000e+00> : vector<8xf32>
    %125 = vector.multi_reduction <add>, %124, %cst_49 [1] : vector<8x8xf32> to vector<8xf32>
    %126 = vector.shape_cast %125 : vector<8xf32> to vector<8x1xf32>
    %127 = vector.broadcast %126 : vector<8x1xf32> to vector<8x8xf32>
    %128 = arith.divf %124, %127 : vector<8x8xf32>
    %cst_50 = arith.constant dense<0.000000e+00> : vector<8x8xf32>
    %129 = tpu.matmul %128, %114, %cst_50 {dimension_numbers = #tpu.dot_dimension_numbers<[1], [0], [0], [1], [0, 0, 1, 1], [], []>} : vector<8x8xf32>, vector<8x8xf32>, vector<8x8xf32> -> vector<8x8xf32>
    %c0_51 = arith.constant 0 : index
    %c24 = arith.constant 24 : index
    %c0_52 = arith.constant 0 : index
    %130 = vector.load %arg8[%c0_51, %c24, %c0_52] : memref<2x128x128xbf16, #tpu.memory_space<vmem>>, vector<1x8x128xbf16>
    %131 = vector.shape_cast %130 : vector<1x8x128xbf16> to vector<8x128xbf16>
    %132 = arith.extf %131 : vector<8x128xbf16> to vector<8x128xf32>
    %cst_53 = arith.constant dense<0.000000e+00> : vector<8x128xf32>
    %133 = tpu.matmul %129, %132, %cst_53 {dimension_numbers = #tpu.dot_dimension_numbers<[1], [0], [0], [1], [0, 0, 1, 1], [], []>} : vector<8x8xf32>, vector<8x128xf32>, vector<8x128xf32> -> vector<8x128xf32>
    %134 = arith.addf %111, %133 : vector<8x128xf32>
    %c0_54 = arith.constant 0 : index
    %c0_55 = arith.constant 0 : index
    %c0_56 = arith.constant 0 : index
    %135 = vector.load %arg9[%c0_54, %c0_55, %c0_56] : memref<2x1x128xf32, #tpu.memory_space<vmem>>, vector<1x1x128xf32>
    %136 = vector.shape_cast %135 : vector<1x1x128xf32> to vector<1x128xf32>
    %137 = vector.broadcast %136 : vector<1x128xf32> to vector<8x128xf32>
    %138 = arith.addf %134, %137 : vector<8x128xf32>
    %139 = arith.addf %138, %33 : vector<8x128xf32>
    %c0_57 = arith.constant 0 : index
    %c0_58 = arith.constant 0 : index
    %c0_59 = arith.constant 0 : index
    %140 = vector.load %arg10[%c0_57, %c0_58, %c0_59] : memref<2x1x128xf32, #tpu.memory_space<vmem>>, vector<1x1x128xf32>
    %141 = vector.shape_cast %140 : vector<1x1x128xf32> to vector<1x128xf32>
    %c0_60 = arith.constant 0 : index
    %c0_61 = arith.constant 0 : index
    %c0_62 = arith.constant 0 : index
    %142 = vector.load %arg11[%c0_60, %c0_61, %c0_62] : memref<2x1x128xf32, #tpu.memory_space<vmem>>, vector<1x1x128xf32>
    %143 = vector.shape_cast %142 : vector<1x1x128xf32> to vector<1x128xf32>
    %cst_63 = arith.constant dense<0.000000e+00> : vector<8xf32>
    %144 = vector.multi_reduction <add>, %139, %cst_63 [1] : vector<8x128xf32> to vector<8xf32>
    %145 = vector.shape_cast %144 : vector<8xf32> to vector<8x1xf32>
    %cst_64 = arith.constant 3.125000e-02 : f32
    %146 = vector.broadcast %cst_64 : f32 to vector<8x1xf32>
    %147 = arith.mulf %145, %146 : vector<8x1xf32>
    %148 = vector.broadcast %147 : vector<8x1xf32> to vector<8x128xf32>
    %149 = arith.subf %139, %148 : vector<8x128xf32>
    %150 = vector.broadcast %4 : vector<1x128xf32> to vector<8x128xf32>
    %151 = arith.mulf %149, %150 : vector<8x128xf32>
    %152 = arith.mulf %151, %151 : vector<8x128xf32>
    %cst_65 = arith.constant dense<0.000000e+00> : vector<8xf32>
    %153 = vector.multi_reduction <add>, %152, %cst_65 [1] : vector<8x128xf32> to vector<8xf32>
    %154 = vector.shape_cast %153 : vector<8xf32> to vector<8x1xf32>
    %cst_66 = arith.constant 3.125000e-02 : f32
    %155 = vector.broadcast %cst_66 : f32 to vector<8x1xf32>
    %156 = arith.mulf %154, %155 : vector<8x1xf32>
    %cst_67 = arith.constant 9.99999996E-13 : f32
    %157 = vector.broadcast %cst_67 : f32 to vector<8x1xf32>
    %158 = arith.addf %156, %157 : vector<8x1xf32>
    %159 = math.rsqrt %158 : vector<8x1xf32>
    %160 = vector.broadcast %159 : vector<8x1xf32> to vector<8x128xf32>
    %161 = arith.mulf %151, %160 : vector<8x128xf32>
    %162 = vector.broadcast %141 : vector<1x128xf32> to vector<8x128xf32>
    %163 = arith.mulf %161, %162 : vector<8x128xf32>
    %164 = vector.broadcast %143 : vector<1x128xf32> to vector<8x128xf32>
    %165 = arith.addf %163, %164 : vector<8x128xf32>
    %166 = arith.truncf %165 : vector<8x128xf32> to vector<8x128xbf16>
    %c0_68 = arith.constant 0 : index
    %c0_69 = arith.constant 0 : index
    %c0_70 = arith.constant 0 : index
    %167 = vector.load %arg12[%c0_68, %c0_69, %c0_70] : memref<2x128x128xbf16, #tpu.memory_space<vmem>>, vector<1x128x128xbf16>
    %168 = vector.shape_cast %167 : vector<1x128x128xbf16> to vector<128x128xbf16>
    %cst_71 = arith.constant dense<0.000000e+00> : vector<8x128xf32>
    %169 = tpu.matmul %166, %168, %cst_71 {dimension_numbers = #tpu.dot_dimension_numbers<[1], [0], [0], [1], [0, 0, 1, 1], [], []>} : vector<8x128xbf16>, vector<128x128xbf16>, vector<8x128xf32> -> vector<8x128xf32>
    %c0_72 = arith.constant 0 : index
    %c0_73 = arith.constant 0 : index
    %c0_74 = arith.constant 0 : index
    %170 = vector.load %arg13[%c0_72, %c0_73, %c0_74] : memref<2x1x128xf32, #tpu.memory_space<vmem>>, vector<1x1x128xf32>
    %171 = vector.shape_cast %170 : vector<1x1x128xf32> to vector<1x128xf32>
    %172 = vector.broadcast %171 : vector<1x128xf32> to vector<8x128xf32>
    %173 = arith.addf %169, %172 : vector<8x128xf32>
    %cst_75 = arith.constant 5.000000e-01 : f32
    %174 = vector.broadcast %cst_75 : f32 to vector<8x128xf32>
    %175 = arith.mulf %174, %173 : vector<8x128xf32>
    %cst_76 = arith.constant 4.471500e-02 : f32
    %176 = vector.broadcast %cst_76 : f32 to vector<8x128xf32>
    %177 = arith.mulf %176, %173 : vector<8x128xf32>
    %178 = arith.mulf %177, %173 : vector<8x128xf32>
    %179 = arith.mulf %178, %173 : vector<8x128xf32>
    %180 = arith.addf %173, %179 : vector<8x128xf32>
    %cst_77 = arith.constant 0.797884583 : f32
    %181 = vector.broadcast %cst_77 : f32 to vector<8x128xf32>
    %182 = arith.mulf %181, %180 : vector<8x128xf32>
    %183 = math.tanh %182 : vector<8x128xf32>
    %cst_78 = arith.constant 1.000000e+00 : f32
    %184 = vector.broadcast %cst_78 : f32 to vector<8x128xf32>
    %185 = arith.addf %184, %183 : vector<8x128xf32>
    %186 = arith.mulf %175, %185 : vector<8x128xf32>
    %187 = arith.truncf %186 : vector<8x128xf32> to vector<8x128xbf16>
    %c0_79 = arith.constant 0 : index
    %c0_80 = arith.constant 0 : index
    %c0_81 = arith.constant 0 : index
    %188 = vector.load %arg14[%c0_79, %c0_80, %c0_81] : memref<2x128x128xbf16, #tpu.memory_space<vmem>>, vector<1x128x128xbf16>
    %189 = vector.shape_cast %188 : vector<1x128x128xbf16> to vector<128x128xbf16>
    %cst_82 = arith.constant dense<0.000000e+00> : vector<8x128xf32>
    %190 = tpu.matmul %187, %189, %cst_82 {dimension_numbers = #tpu.dot_dimension_numbers<[1], [0], [0], [1], [0, 0, 1, 1], [], []>} : vector<8x128xbf16>, vector<128x128xbf16>, vector<8x128xf32> -> vector<8x128xf32>
    %c0_83 = arith.constant 0 : index
    %c0_84 = arith.constant 0 : index
    %c0_85 = arith.constant 0 : index
    %191 = vector.load %arg15[%c0_83, %c0_84, %c0_85] : memref<2x1x128xf32, #tpu.memory_space<vmem>>, vector<1x1x128xf32>
    %192 = vector.shape_cast %191 : vector<1x1x128xf32> to vector<1x128xf32>
    %193 = vector.broadcast %192 : vector<1x128xf32> to vector<8x128xf32>
    %194 = arith.addf %190, %193 : vector<8x128xf32>
    %195 = arith.addf %194, %165 : vector<8x128xf32>
    %c0_86 = arith.constant 0 : index
    %c0_87 = arith.constant 0 : index
    %c0_88 = arith.constant 0 : index
    %196 = vector.load %arg16[%c0_86, %c0_87, %c0_88] : memref<2x1x128xf32, #tpu.memory_space<vmem>>, vector<1x1x128xf32>
    %197 = vector.shape_cast %196 : vector<1x1x128xf32> to vector<1x128xf32>
    %c0_89 = arith.constant 0 : index
    %c0_90 = arith.constant 0 : index
    %c0_91 = arith.constant 0 : index
    %198 = vector.load %arg17[%c0_89, %c0_90, %c0_91] : memref<2x1x128xf32, #tpu.memory_space<vmem>>, vector<1x1x128xf32>
    %199 = vector.shape_cast %198 : vector<1x1x128xf32> to vector<1x128xf32>
    %cst_92 = arith.constant dense<0.000000e+00> : vector<8xf32>
    %200 = vector.multi_reduction <add>, %195, %cst_92 [1] : vector<8x128xf32> to vector<8xf32>
    %201 = vector.shape_cast %200 : vector<8xf32> to vector<8x1xf32>
    %cst_93 = arith.constant 3.125000e-02 : f32
    %202 = vector.broadcast %cst_93 : f32 to vector<8x1xf32>
    %203 = arith.mulf %201, %202 : vector<8x1xf32>
    %204 = vector.broadcast %203 : vector<8x1xf32> to vector<8x128xf32>
    %205 = arith.subf %195, %204 : vector<8x128xf32>
    %206 = vector.broadcast %4 : vector<1x128xf32> to vector<8x128xf32>
    %207 = arith.mulf %205, %206 : vector<8x128xf32>
    %208 = arith.mulf %207, %207 : vector<8x128xf32>
    %cst_94 = arith.constant dense<0.000000e+00> : vector<8xf32>
    %209 = vector.multi_reduction <add>, %208, %cst_94 [1] : vector<8x128xf32> to vector<8xf32>
    %210 = vector.shape_cast %209 : vector<8xf32> to vector<8x1xf32>
    %cst_95 = arith.constant 3.125000e-02 : f32
    %211 = vector.broadcast %cst_95 : f32 to vector<8x1xf32>
    %212 = arith.mulf %210, %211 : vector<8x1xf32>
    %cst_96 = arith.constant 9.99999996E-13 : f32
    %213 = vector.broadcast %cst_96 : f32 to vector<8x1xf32>
    %214 = arith.addf %212, %213 : vector<8x1xf32>
    %215 = math.rsqrt %214 : vector<8x1xf32>
    %216 = vector.broadcast %215 : vector<8x1xf32> to vector<8x128xf32>
    %217 = arith.mulf %207, %216 : vector<8x128xf32>
    %218 = vector.broadcast %197 : vector<1x128xf32> to vector<8x128xf32>
    %219 = arith.mulf %217, %218 : vector<8x128xf32>
    %220 = vector.broadcast %199 : vector<1x128xf32> to vector<8x128xf32>
    %221 = arith.addf %219, %220 : vector<8x128xf32>
    %222 = arith.truncf %221 : vector<8x128xf32> to vector<8x128xbf16>
    %c1 = arith.constant 1 : index
    %c0_97 = arith.constant 0 : index
    %c0_98 = arith.constant 0 : index
    %223 = vector.load %arg6[%c1, %c0_97, %c0_98] : memref<2x128x384xbf16, #tpu.memory_space<vmem>>, vector<1x128x384xbf16>
    %224 = vector.shape_cast %223 : vector<1x128x384xbf16> to vector<128x384xbf16>
    %cst_99 = arith.constant dense<0.000000e+00> : vector<8x384xf32>
    %225 = tpu.matmul %222, %224, %cst_99 {dimension_numbers = #tpu.dot_dimension_numbers<[1], [0], [0], [1], [0, 0, 1, 1], [], []>} : vector<8x128xbf16>, vector<128x384xbf16>, vector<8x384xf32> -> vector<8x384xf32>
    %c1_100 = arith.constant 1 : index
    %c0_101 = arith.constant 0 : index
    %c0_102 = arith.constant 0 : index
    %226 = vector.load %arg7[%c1_100, %c0_101, %c0_102] : memref<2x1x384xf32, #tpu.memory_space<vmem>>, vector<1x1x384xf32>
    %227 = vector.shape_cast %226 : vector<1x1x384xf32> to vector<1x384xf32>
    %228 = vector.broadcast %227 : vector<1x384xf32> to vector<8x384xf32>
    %229 = arith.addf %225, %228 : vector<8x384xf32>
    %cst_103 = arith.constant 0.000000e+00 : f32
    %230 = vector.broadcast %cst_103 : f32 to vector<8x128xf32>
    %231 = vector.extract_strided_slice %229 {offsets = [0, 0], sizes = [8, 8], strides = [1, 1]} : vector<8x384xf32> to vector<8x8xf32>
    %232 = vector.extract_strided_slice %229 {offsets = [0, 128], sizes = [8, 8], strides = [1, 1]} : vector<8x384xf32> to vector<8x8xf32>
    %233 = vector.extract_strided_slice %229 {offsets = [0, 256], sizes = [8, 8], strides = [1, 1]} : vector<8x384xf32> to vector<8x8xf32>
    %cst_104 = arith.constant dense<0.000000e+00> : vector<8x8xf32>
    %234 = tpu.matmul %231, %232, %cst_104 {dimension_numbers = #tpu.dot_dimension_numbers<[1], [1], [0], [0], [0, 0, 1, 0], [], []>} : vector<8x8xf32>, vector<8x8xf32>, vector<8x8xf32> -> vector<8x8xf32>
    %cst_105 = arith.constant 0.353553385 : f32
    %235 = vector.broadcast %cst_105 : f32 to vector<8x8xf32>
    %236 = arith.mulf %234, %235 : vector<8x8xf32>
    %237 = vector.broadcast %9 : vector<1x8xf32> to vector<8x8xf32>
    %238 = arith.addf %236, %237 : vector<8x8xf32>
    %cst_106 = arith.constant dense<0xFF800000> : vector<8xf32>
    %239 = vector.multi_reduction <maximumf>, %238, %cst_106 [1] : vector<8x8xf32> to vector<8xf32>
    %240 = vector.shape_cast %239 : vector<8xf32> to vector<8x1xf32>
    %241 = vector.broadcast %240 : vector<8x1xf32> to vector<8x8xf32>
    %242 = arith.subf %238, %241 : vector<8x8xf32>
    %243 = math.exp %242 : vector<8x8xf32>
    %cst_107 = arith.constant dense<0.000000e+00> : vector<8xf32>
    %244 = vector.multi_reduction <add>, %243, %cst_107 [1] : vector<8x8xf32> to vector<8xf32>
    %245 = vector.shape_cast %244 : vector<8xf32> to vector<8x1xf32>
    %246 = vector.broadcast %245 : vector<8x1xf32> to vector<8x8xf32>
    %247 = arith.divf %243, %246 : vector<8x8xf32>
    %cst_108 = arith.constant dense<0.000000e+00> : vector<8x8xf32>
    %248 = tpu.matmul %247, %233, %cst_108 {dimension_numbers = #tpu.dot_dimension_numbers<[1], [0], [0], [1], [0, 0, 1, 1], [], []>} : vector<8x8xf32>, vector<8x8xf32>, vector<8x8xf32> -> vector<8x8xf32>
    %c1_109 = arith.constant 1 : index
    %c0_110 = arith.constant 0 : index
    %c0_111 = arith.constant 0 : index
    %249 = vector.load %arg8[%c1_109, %c0_110, %c0_111] : memref<2x128x128xbf16, #tpu.memory_space<vmem>>, vector<1x8x128xbf16>
    %250 = vector.shape_cast %249 : vector<1x8x128xbf16> to vector<8x128xbf16>
    %251 = arith.extf %250 : vector<8x128xbf16> to vector<8x128xf32>
    %cst_112 = arith.constant dense<0.000000e+00> : vector<8x128xf32>
    %252 = tpu.matmul %248, %251, %cst_112 {dimension_numbers = #tpu.dot_dimension_numbers<[1], [0], [0], [1], [0, 0, 1, 1], [], []>} : vector<8x8xf32>, vector<8x128xf32>, vector<8x128xf32> -> vector<8x128xf32>
    %253 = arith.addf %230, %252 : vector<8x128xf32>
    %254 = vector.extract_strided_slice %229 {offsets = [0, 8], sizes = [8, 8], strides = [1, 1]} : vector<8x384xf32> to vector<8x8xf32>
    %255 = vector.extract_strided_slice %229 {offsets = [0, 136], sizes = [8, 8], strides = [1, 1]} : vector<8x384xf32> to vector<8x8xf32>
    %256 = vector.extract_strided_slice %229 {offsets = [0, 264], sizes = [8, 8], strides = [1, 1]} : vector<8x384xf32> to vector<8x8xf32>
    %cst_113 = arith.constant dense<0.000000e+00> : vector<8x8xf32>
    %257 = tpu.matmul %254, %255, %cst_113 {dimension_numbers = #tpu.dot_dimension_numbers<[1], [1], [0], [0], [0, 0, 1, 0], [], []>} : vector<8x8xf32>, vector<8x8xf32>, vector<8x8xf32> -> vector<8x8xf32>
    %cst_114 = arith.constant 0.353553385 : f32
    %258 = vector.broadcast %cst_114 : f32 to vector<8x8xf32>
    %259 = arith.mulf %257, %258 : vector<8x8xf32>
    %260 = vector.broadcast %9 : vector<1x8xf32> to vector<8x8xf32>
    %261 = arith.addf %259, %260 : vector<8x8xf32>
    %cst_115 = arith.constant dense<0xFF800000> : vector<8xf32>
    %262 = vector.multi_reduction <maximumf>, %261, %cst_115 [1] : vector<8x8xf32> to vector<8xf32>
    %263 = vector.shape_cast %262 : vector<8xf32> to vector<8x1xf32>
    %264 = vector.broadcast %263 : vector<8x1xf32> to vector<8x8xf32>
    %265 = arith.subf %261, %264 : vector<8x8xf32>
    %266 = math.exp %265 : vector<8x8xf32>
    %cst_116 = arith.constant dense<0.000000e+00> : vector<8xf32>
    %267 = vector.multi_reduction <add>, %266, %cst_116 [1] : vector<8x8xf32> to vector<8xf32>
    %268 = vector.shape_cast %267 : vector<8xf32> to vector<8x1xf32>
    %269 = vector.broadcast %268 : vector<8x1xf32> to vector<8x8xf32>
    %270 = arith.divf %266, %269 : vector<8x8xf32>
    %cst_117 = arith.constant dense<0.000000e+00> : vector<8x8xf32>
    %271 = tpu.matmul %270, %256, %cst_117 {dimension_numbers = #tpu.dot_dimension_numbers<[1], [0], [0], [1], [0, 0, 1, 1], [], []>} : vector<8x8xf32>, vector<8x8xf32>, vector<8x8xf32> -> vector<8x8xf32>
    %c1_118 = arith.constant 1 : index
    %c8_119 = arith.constant 8 : index
    %c0_120 = arith.constant 0 : index
    %272 = vector.load %arg8[%c1_118, %c8_119, %c0_120] : memref<2x128x128xbf16, #tpu.memory_space<vmem>>, vector<1x8x128xbf16>
    %273 = vector.shape_cast %272 : vector<1x8x128xbf16> to vector<8x128xbf16>
    %274 = arith.extf %273 : vector<8x128xbf16> to vector<8x128xf32>
    %cst_121 = arith.constant dense<0.000000e+00> : vector<8x128xf32>
    %275 = tpu.matmul %271, %274, %cst_121 {dimension_numbers = #tpu.dot_dimension_numbers<[1], [0], [0], [1], [0, 0, 1, 1], [], []>} : vector<8x8xf32>, vector<8x128xf32>, vector<8x128xf32> -> vector<8x128xf32>
    %276 = arith.addf %253, %275 : vector<8x128xf32>
    %277 = vector.extract_strided_slice %229 {offsets = [0, 16], sizes = [8, 8], strides = [1, 1]} : vector<8x384xf32> to vector<8x8xf32>
    %278 = vector.extract_strided_slice %229 {offsets = [0, 144], sizes = [8, 8], strides = [1, 1]} : vector<8x384xf32> to vector<8x8xf32>
    %279 = vector.extract_strided_slice %229 {offsets = [0, 272], sizes = [8, 8], strides = [1, 1]} : vector<8x384xf32> to vector<8x8xf32>
    %cst_122 = arith.constant dense<0.000000e+00> : vector<8x8xf32>
    %280 = tpu.matmul %277, %278, %cst_122 {dimension_numbers = #tpu.dot_dimension_numbers<[1], [1], [0], [0], [0, 0, 1, 0], [], []>} : vector<8x8xf32>, vector<8x8xf32>, vector<8x8xf32> -> vector<8x8xf32>
    %cst_123 = arith.constant 0.353553385 : f32
    %281 = vector.broadcast %cst_123 : f32 to vector<8x8xf32>
    %282 = arith.mulf %280, %281 : vector<8x8xf32>
    %283 = vector.broadcast %9 : vector<1x8xf32> to vector<8x8xf32>
    %284 = arith.addf %282, %283 : vector<8x8xf32>
    %cst_124 = arith.constant dense<0xFF800000> : vector<8xf32>
    %285 = vector.multi_reduction <maximumf>, %284, %cst_124 [1] : vector<8x8xf32> to vector<8xf32>
    %286 = vector.shape_cast %285 : vector<8xf32> to vector<8x1xf32>
    %287 = vector.broadcast %286 : vector<8x1xf32> to vector<8x8xf32>
    %288 = arith.subf %284, %287 : vector<8x8xf32>
    %289 = math.exp %288 : vector<8x8xf32>
    %cst_125 = arith.constant dense<0.000000e+00> : vector<8xf32>
    %290 = vector.multi_reduction <add>, %289, %cst_125 [1] : vector<8x8xf32> to vector<8xf32>
    %291 = vector.shape_cast %290 : vector<8xf32> to vector<8x1xf32>
    %292 = vector.broadcast %291 : vector<8x1xf32> to vector<8x8xf32>
    %293 = arith.divf %289, %292 : vector<8x8xf32>
    %cst_126 = arith.constant dense<0.000000e+00> : vector<8x8xf32>
    %294 = tpu.matmul %293, %279, %cst_126 {dimension_numbers = #tpu.dot_dimension_numbers<[1], [0], [0], [1], [0, 0, 1, 1], [], []>} : vector<8x8xf32>, vector<8x8xf32>, vector<8x8xf32> -> vector<8x8xf32>
    %c1_127 = arith.constant 1 : index
    %c16_128 = arith.constant 16 : index
    %c0_129 = arith.constant 0 : index
    %295 = vector.load %arg8[%c1_127, %c16_128, %c0_129] : memref<2x128x128xbf16, #tpu.memory_space<vmem>>, vector<1x8x128xbf16>
    %296 = vector.shape_cast %295 : vector<1x8x128xbf16> to vector<8x128xbf16>
    %297 = arith.extf %296 : vector<8x128xbf16> to vector<8x128xf32>
    %cst_130 = arith.constant dense<0.000000e+00> : vector<8x128xf32>
    %298 = tpu.matmul %294, %297, %cst_130 {dimension_numbers = #tpu.dot_dimension_numbers<[1], [0], [0], [1], [0, 0, 1, 1], [], []>} : vector<8x8xf32>, vector<8x128xf32>, vector<8x128xf32> -> vector<8x128xf32>
    %299 = arith.addf %276, %298 : vector<8x128xf32>
    %300 = vector.extract_strided_slice %229 {offsets = [0, 24], sizes = [8, 8], strides = [1, 1]} : vector<8x384xf32> to vector<8x8xf32>
    %301 = vector.extract_strided_slice %229 {offsets = [0, 152], sizes = [8, 8], strides = [1, 1]} : vector<8x384xf32> to vector<8x8xf32>
    %302 = vector.extract_strided_slice %229 {offsets = [0, 280], sizes = [8, 8], strides = [1, 1]} : vector<8x384xf32> to vector<8x8xf32>
    %cst_131 = arith.constant dense<0.000000e+00> : vector<8x8xf32>
    %303 = tpu.matmul %300, %301, %cst_131 {dimension_numbers = #tpu.dot_dimension_numbers<[1], [1], [0], [0], [0, 0, 1, 0], [], []>} : vector<8x8xf32>, vector<8x8xf32>, vector<8x8xf32> -> vector<8x8xf32>
    %cst_132 = arith.constant 0.353553385 : f32
    %304 = vector.broadcast %cst_132 : f32 to vector<8x8xf32>
    %305 = arith.mulf %303, %304 : vector<8x8xf32>
    %306 = vector.broadcast %9 : vector<1x8xf32> to vector<8x8xf32>
    %307 = arith.addf %305, %306 : vector<8x8xf32>
    %cst_133 = arith.constant dense<0xFF800000> : vector<8xf32>
    %308 = vector.multi_reduction <maximumf>, %307, %cst_133 [1] : vector<8x8xf32> to vector<8xf32>
    %309 = vector.shape_cast %308 : vector<8xf32> to vector<8x1xf32>
    %310 = vector.broadcast %309 : vector<8x1xf32> to vector<8x8xf32>
    %311 = arith.subf %307, %310 : vector<8x8xf32>
    %312 = math.exp %311 : vector<8x8xf32>
    %cst_134 = arith.constant dense<0.000000e+00> : vector<8xf32>
    %313 = vector.multi_reduction <add>, %312, %cst_134 [1] : vector<8x8xf32> to vector<8xf32>
    %314 = vector.shape_cast %313 : vector<8xf32> to vector<8x1xf32>
    %315 = vector.broadcast %314 : vector<8x1xf32> to vector<8x8xf32>
    %316 = arith.divf %312, %315 : vector<8x8xf32>
    %cst_135 = arith.constant dense<0.000000e+00> : vector<8x8xf32>
    %317 = tpu.matmul %316, %302, %cst_135 {dimension_numbers = #tpu.dot_dimension_numbers<[1], [0], [0], [1], [0, 0, 1, 1], [], []>} : vector<8x8xf32>, vector<8x8xf32>, vector<8x8xf32> -> vector<8x8xf32>
    %c1_136 = arith.constant 1 : index
    %c24_137 = arith.constant 24 : index
    %c0_138 = arith.constant 0 : index
    %318 = vector.load %arg8[%c1_136, %c24_137, %c0_138] : memref<2x128x128xbf16, #tpu.memory_space<vmem>>, vector<1x8x128xbf16>
    %319 = vector.shape_cast %318 : vector<1x8x128xbf16> to vector<8x128xbf16>
    %320 = arith.extf %319 : vector<8x128xbf16> to vector<8x128xf32>
    %cst_139 = arith.constant dense<0.000000e+00> : vector<8x128xf32>
    %321 = tpu.matmul %317, %320, %cst_139 {dimension_numbers = #tpu.dot_dimension_numbers<[1], [0], [0], [1], [0, 0, 1, 1], [], []>} : vector<8x8xf32>, vector<8x128xf32>, vector<8x128xf32> -> vector<8x128xf32>
    %322 = arith.addf %299, %321 : vector<8x128xf32>
    %c1_140 = arith.constant 1 : index
    %c0_141 = arith.constant 0 : index
    %c0_142 = arith.constant 0 : index
    %323 = vector.load %arg9[%c1_140, %c0_141, %c0_142] : memref<2x1x128xf32, #tpu.memory_space<vmem>>, vector<1x1x128xf32>
    %324 = vector.shape_cast %323 : vector<1x1x128xf32> to vector<1x128xf32>
    %325 = vector.broadcast %324 : vector<1x128xf32> to vector<8x128xf32>
    %326 = arith.addf %322, %325 : vector<8x128xf32>
    %327 = arith.addf %326, %221 : vector<8x128xf32>
    %c1_143 = arith.constant 1 : index
    %c0_144 = arith.constant 0 : index
    %c0_145 = arith.constant 0 : index
    %328 = vector.load %arg10[%c1_143, %c0_144, %c0_145] : memref<2x1x128xf32, #tpu.memory_space<vmem>>, vector<1x1x128xf32>
    %329 = vector.shape_cast %328 : vector<1x1x128xf32> to vector<1x128xf32>
    %c1_146 = arith.constant 1 : index
    %c0_147 = arith.constant 0 : index
    %c0_148 = arith.constant 0 : index
    %330 = vector.load %arg11[%c1_146, %c0_147, %c0_148] : memref<2x1x128xf32, #tpu.memory_space<vmem>>, vector<1x1x128xf32>
    %331 = vector.shape_cast %330 : vector<1x1x128xf32> to vector<1x128xf32>
    %cst_149 = arith.constant dense<0.000000e+00> : vector<8xf32>
    %332 = vector.multi_reduction <add>, %327, %cst_149 [1] : vector<8x128xf32> to vector<8xf32>
    %333 = vector.shape_cast %332 : vector<8xf32> to vector<8x1xf32>
    %cst_150 = arith.constant 3.125000e-02 : f32
    %334 = vector.broadcast %cst_150 : f32 to vector<8x1xf32>
    %335 = arith.mulf %333, %334 : vector<8x1xf32>
    %336 = vector.broadcast %335 : vector<8x1xf32> to vector<8x128xf32>
    %337 = arith.subf %327, %336 : vector<8x128xf32>
    %338 = vector.broadcast %4 : vector<1x128xf32> to vector<8x128xf32>
    %339 = arith.mulf %337, %338 : vector<8x128xf32>
    %340 = arith.mulf %339, %339 : vector<8x128xf32>
    %cst_151 = arith.constant dense<0.000000e+00> : vector<8xf32>
    %341 = vector.multi_reduction <add>, %340, %cst_151 [1] : vector<8x128xf32> to vector<8xf32>
    %342 = vector.shape_cast %341 : vector<8xf32> to vector<8x1xf32>
    %cst_152 = arith.constant 3.125000e-02 : f32
    %343 = vector.broadcast %cst_152 : f32 to vector<8x1xf32>
    %344 = arith.mulf %342, %343 : vector<8x1xf32>
    %cst_153 = arith.constant 9.99999996E-13 : f32
    %345 = vector.broadcast %cst_153 : f32 to vector<8x1xf32>
    %346 = arith.addf %344, %345 : vector<8x1xf32>
    %347 = math.rsqrt %346 : vector<8x1xf32>
    %348 = vector.broadcast %347 : vector<8x1xf32> to vector<8x128xf32>
    %349 = arith.mulf %339, %348 : vector<8x128xf32>
    %350 = vector.broadcast %329 : vector<1x128xf32> to vector<8x128xf32>
    %351 = arith.mulf %349, %350 : vector<8x128xf32>
    %352 = vector.broadcast %331 : vector<1x128xf32> to vector<8x128xf32>
    %353 = arith.addf %351, %352 : vector<8x128xf32>
    %354 = arith.truncf %353 : vector<8x128xf32> to vector<8x128xbf16>
    %c1_154 = arith.constant 1 : index
    %c0_155 = arith.constant 0 : index
    %c0_156 = arith.constant 0 : index
    %355 = vector.load %arg12[%c1_154, %c0_155, %c0_156] : memref<2x128x128xbf16, #tpu.memory_space<vmem>>, vector<1x128x128xbf16>
    %356 = vector.shape_cast %355 : vector<1x128x128xbf16> to vector<128x128xbf16>
    %cst_157 = arith.constant dense<0.000000e+00> : vector<8x128xf32>
    %357 = tpu.matmul %354, %356, %cst_157 {dimension_numbers = #tpu.dot_dimension_numbers<[1], [0], [0], [1], [0, 0, 1, 1], [], []>} : vector<8x128xbf16>, vector<128x128xbf16>, vector<8x128xf32> -> vector<8x128xf32>
    %c1_158 = arith.constant 1 : index
    %c0_159 = arith.constant 0 : index
    %c0_160 = arith.constant 0 : index
    %358 = vector.load %arg13[%c1_158, %c0_159, %c0_160] : memref<2x1x128xf32, #tpu.memory_space<vmem>>, vector<1x1x128xf32>
    %359 = vector.shape_cast %358 : vector<1x1x128xf32> to vector<1x128xf32>
    %360 = vector.broadcast %359 : vector<1x128xf32> to vector<8x128xf32>
    %361 = arith.addf %357, %360 : vector<8x128xf32>
    %cst_161 = arith.constant 5.000000e-01 : f32
    %362 = vector.broadcast %cst_161 : f32 to vector<8x128xf32>
    %363 = arith.mulf %362, %361 : vector<8x128xf32>
    %cst_162 = arith.constant 4.471500e-02 : f32
    %364 = vector.broadcast %cst_162 : f32 to vector<8x128xf32>
    %365 = arith.mulf %364, %361 : vector<8x128xf32>
    %366 = arith.mulf %365, %361 : vector<8x128xf32>
    %367 = arith.mulf %366, %361 : vector<8x128xf32>
    %368 = arith.addf %361, %367 : vector<8x128xf32>
    %cst_163 = arith.constant 0.797884583 : f32
    %369 = vector.broadcast %cst_163 : f32 to vector<8x128xf32>
    %370 = arith.mulf %369, %368 : vector<8x128xf32>
    %371 = math.tanh %370 : vector<8x128xf32>
    %cst_164 = arith.constant 1.000000e+00 : f32
    %372 = vector.broadcast %cst_164 : f32 to vector<8x128xf32>
    %373 = arith.addf %372, %371 : vector<8x128xf32>
    %374 = arith.mulf %363, %373 : vector<8x128xf32>
    %375 = arith.truncf %374 : vector<8x128xf32> to vector<8x128xbf16>
    %c1_165 = arith.constant 1 : index
    %c0_166 = arith.constant 0 : index
    %c0_167 = arith.constant 0 : index
    %376 = vector.load %arg14[%c1_165, %c0_166, %c0_167] : memref<2x128x128xbf16, #tpu.memory_space<vmem>>, vector<1x128x128xbf16>
    %377 = vector.shape_cast %376 : vector<1x128x128xbf16> to vector<128x128xbf16>
    %cst_168 = arith.constant dense<0.000000e+00> : vector<8x128xf32>
    %378 = tpu.matmul %375, %377, %cst_168 {dimension_numbers = #tpu.dot_dimension_numbers<[1], [0], [0], [1], [0, 0, 1, 1], [], []>} : vector<8x128xbf16>, vector<128x128xbf16>, vector<8x128xf32> -> vector<8x128xf32>
    %c1_169 = arith.constant 1 : index
    %c0_170 = arith.constant 0 : index
    %c0_171 = arith.constant 0 : index
    %379 = vector.load %arg15[%c1_169, %c0_170, %c0_171] : memref<2x1x128xf32, #tpu.memory_space<vmem>>, vector<1x1x128xf32>
    %380 = vector.shape_cast %379 : vector<1x1x128xf32> to vector<1x128xf32>
    %381 = vector.broadcast %380 : vector<1x128xf32> to vector<8x128xf32>
    %382 = arith.addf %378, %381 : vector<8x128xf32>
    %383 = arith.addf %382, %353 : vector<8x128xf32>
    %c1_172 = arith.constant 1 : index
    %c0_173 = arith.constant 0 : index
    %c0_174 = arith.constant 0 : index
    %384 = vector.load %arg16[%c1_172, %c0_173, %c0_174] : memref<2x1x128xf32, #tpu.memory_space<vmem>>, vector<1x1x128xf32>
    %385 = vector.shape_cast %384 : vector<1x1x128xf32> to vector<1x128xf32>
    %c1_175 = arith.constant 1 : index
    %c0_176 = arith.constant 0 : index
    %c0_177 = arith.constant 0 : index
    %386 = vector.load %arg17[%c1_175, %c0_176, %c0_177] : memref<2x1x128xf32, #tpu.memory_space<vmem>>, vector<1x1x128xf32>
    %387 = vector.shape_cast %386 : vector<1x1x128xf32> to vector<1x128xf32>
    %cst_178 = arith.constant dense<0.000000e+00> : vector<8xf32>
    %388 = vector.multi_reduction <add>, %383, %cst_178 [1] : vector<8x128xf32> to vector<8xf32>
    %389 = vector.shape_cast %388 : vector<8xf32> to vector<8x1xf32>
    %cst_179 = arith.constant 3.125000e-02 : f32
    %390 = vector.broadcast %cst_179 : f32 to vector<8x1xf32>
    %391 = arith.mulf %389, %390 : vector<8x1xf32>
    %392 = vector.broadcast %391 : vector<8x1xf32> to vector<8x128xf32>
    %393 = arith.subf %383, %392 : vector<8x128xf32>
    %394 = vector.broadcast %4 : vector<1x128xf32> to vector<8x128xf32>
    %395 = arith.mulf %393, %394 : vector<8x128xf32>
    %396 = arith.mulf %395, %395 : vector<8x128xf32>
    %cst_180 = arith.constant dense<0.000000e+00> : vector<8xf32>
    %397 = vector.multi_reduction <add>, %396, %cst_180 [1] : vector<8x128xf32> to vector<8xf32>
    %398 = vector.shape_cast %397 : vector<8xf32> to vector<8x1xf32>
    %cst_181 = arith.constant 3.125000e-02 : f32
    %399 = vector.broadcast %cst_181 : f32 to vector<8x1xf32>
    %400 = arith.mulf %398, %399 : vector<8x1xf32>
    %cst_182 = arith.constant 9.99999996E-13 : f32
    %401 = vector.broadcast %cst_182 : f32 to vector<8x1xf32>
    %402 = arith.addf %400, %401 : vector<8x1xf32>
    %403 = math.rsqrt %402 : vector<8x1xf32>
    %404 = vector.broadcast %403 : vector<8x1xf32> to vector<8x128xf32>
    %405 = arith.mulf %395, %404 : vector<8x128xf32>
    %406 = vector.broadcast %385 : vector<1x128xf32> to vector<8x128xf32>
    %407 = arith.mulf %405, %406 : vector<8x128xf32>
    %408 = vector.broadcast %387 : vector<1x128xf32> to vector<8x128xf32>
    %409 = arith.addf %407, %408 : vector<8x128xf32>
    %c0_183 = arith.constant 0 : index
    %c0_184 = arith.constant 0 : index
    %c0_185 = arith.constant 0 : index
    %410 = vector.load %arg28[%c0_183, %c0_184, %c0_185] : memref<1x8x128xf32, #tpu.memory_space<vmem>>, vector<1x8x128xf32>
    %411 = vector.shape_cast %410 : vector<1x8x128xf32> to vector<8x128xf32>
    %412 = vector.shape_cast %409 : vector<8x128xf32> to vector<1x8x128xf32>
    tpu.vector_store %arg28[%c0_183, %c0_184, %c0_185], %412 {strides = array<i32>} : memref<1x8x128xf32, #tpu.memory_space<vmem>>, vector<1x8x128xf32>,
    %413 = vector.extract_strided_slice %409 {offsets = [0, 0], sizes = [1, 128], strides = [1, 1]} : vector<8x128xf32> to vector<1x128xf32>
    %414 = arith.truncf %413 : vector<1x128xf32> to vector<1x128xbf16>
    %c0_186 = arith.constant 0 : index
    %c0_187 = arith.constant 0 : index
    %415 = vector.load %arg18[%c0_186, %c0_187] : memref<128x128xbf16, #tpu.memory_space<vmem>>, vector<128x128xbf16>
    %cst_188 = arith.constant dense<0.000000e+00> : vector<1x128xf32>
    %416 = tpu.matmul %414, %415, %cst_188 {dimension_numbers = #tpu.dot_dimension_numbers<[1], [0], [0], [1], [0, 0, 1, 1], [], []>} : vector<1x128xbf16>, vector<128x128xbf16>, vector<1x128xf32> -> vector<1x128xf32>
    %c0_189 = arith.constant 0 : index
    %c0_190 = arith.constant 0 : index
    %417 = vector.load %arg19[%c0_189, %c0_190] : memref<1x128xf32, #tpu.memory_space<vmem>>, vector<1x128xf32>
    %418 = arith.addf %416, %417 : vector<1x128xf32>
    %419 = math.tanh %418 : vector<1x128xf32>
    %c0_191 = arith.constant 0 : index
    %c0_192 = arith.constant 0 : index
    %c0_193 = arith.constant 0 : index
    %420 = vector.load %arg29[%c0_191, %c0_192, %c0_193] : memref<1x1x128xf32, #tpu.memory_space<vmem>>, vector<1x1x128xf32>
    %421 = vector.shape_cast %420 : vector<1x1x128xf32> to vector<1x128xf32>
    %422 = vector.shape_cast %419 : vector<1x128xf32> to vector<1x1x128xf32>
    tpu.vector_store %arg29[%c0_191, %c0_192, %c0_193], %422 {strides = array<i32>} : memref<1x1x128xf32, #tpu.memory_space<vmem>>, vector<1x1x128xf32>,
    %423 = arith.truncf %419 : vector<1x128xf32> to vector<1x128xbf16>
    %c0_194 = arith.constant 0 : index
    %c0_195 = arith.constant 0 : index
    %424 = vector.load %arg26[%c0_194, %c0_195] : memref<128x128xbf16, #tpu.memory_space<vmem>>, vector<128x128xbf16>
    %cst_196 = arith.constant dense<0.000000e+00> : vector<1x128xf32>
    %425 = tpu.matmul %423, %424, %cst_196 {dimension_numbers = #tpu.dot_dimension_numbers<[1], [0], [0], [1], [0, 0, 1, 1], [], []>} : vector<1x128xbf16>, vector<128x128xbf16>, vector<1x128xf32> -> vector<1x128xf32>
    %c0_197 = arith.constant 0 : index
    %c0_198 = arith.constant 0 : index
    %426 = vector.load %arg27[%c0_197, %c0_198] : memref<1x128xf32, #tpu.memory_space<vmem>>, vector<1x128xf32>
    %427 = arith.addf %425, %426 : vector<1x128xf32>
    %c0_199 = arith.constant 0 : index
    %c0_200 = arith.constant 0 : index
    %c0_201 = arith.constant 0 : index
    %428 = vector.load %arg30[%c0_199, %c0_200, %c0_201] : memref<1x1x128xf32, #tpu.memory_space<vmem>>, vector<1x1x128xf32>
    %429 = vector.shape_cast %428 : vector<1x1x128xf32> to vector<1x128xf32>
    %430 = vector.shape_cast %427 : vector<1x128xf32> to vector<1x1x128xf32>
    tpu.vector_store %arg30[%c0_199, %c0_200, %c0_201], %430 {strides = array<i32>} : memref<1x1x128xf32, #tpu.memory_space<vmem>>, vector<1x1x128xf32>,
    %431 = arith.truncf %409 : vector<8x128xf32> to vector<8x128xbf16>
    %c0_202 = arith.constant 0 : index
    %c0_203 = arith.constant 0 : index
    %432 = vector.load %arg20[%c0_202, %c0_203] : memref<128x128xbf16, #tpu.memory_space<vmem>>, vector<128x128xbf16>
    %cst_204 = arith.constant dense<0.000000e+00> : vector<8x128xf32>
    %433 = tpu.matmul %431, %432, %cst_204 {dimension_numbers = #tpu.dot_dimension_numbers<[1], [0], [0], [1], [0, 0, 1, 1], [], []>} : vector<8x128xbf16>, vector<128x128xbf16>, vector<8x128xf32> -> vector<8x128xf32>
    %c0_205 = arith.constant 0 : index
    %c0_206 = arith.constant 0 : index
    %434 = vector.load %arg21[%c0_205, %c0_206] : memref<1x128xf32, #tpu.memory_space<vmem>>, vector<1x128xf32>
    %435 = vector.broadcast %434 : vector<1x128xf32> to vector<8x128xf32>
    %436 = arith.addf %433, %435 : vector<8x128xf32>
    %cst_207 = arith.constant 5.000000e-01 : f32
    %437 = vector.broadcast %cst_207 : f32 to vector<8x128xf32>
    %438 = arith.mulf %437, %436 : vector<8x128xf32>
    %cst_208 = arith.constant 4.471500e-02 : f32
    %439 = vector.broadcast %cst_208 : f32 to vector<8x128xf32>
    %440 = arith.mulf %439, %436 : vector<8x128xf32>
    %441 = arith.mulf %440, %436 : vector<8x128xf32>
    %442 = arith.mulf %441, %436 : vector<8x128xf32>
    %443 = arith.addf %436, %442 : vector<8x128xf32>
    %cst_209 = arith.constant 0.797884583 : f32
    %444 = vector.broadcast %cst_209 : f32 to vector<8x128xf32>
    %445 = arith.mulf %444, %443 : vector<8x128xf32>
    %446 = math.tanh %445 : vector<8x128xf32>
    %cst_210 = arith.constant 1.000000e+00 : f32
    %447 = vector.broadcast %cst_210 : f32 to vector<8x128xf32>
    %448 = arith.addf %447, %446 : vector<8x128xf32>
    %449 = arith.mulf %438, %448 : vector<8x128xf32>
    %c0_211 = arith.constant 0 : index
    %c0_212 = arith.constant 0 : index
    %450 = vector.load %arg22[%c0_211, %c0_212] : memref<1x128xf32, #tpu.memory_space<vmem>>, vector<1x128xf32>
    %c0_213 = arith.constant 0 : index
    %c0_214 = arith.constant 0 : index
    %451 = vector.load %arg23[%c0_213, %c0_214] : memref<1x128xf32, #tpu.memory_space<vmem>>, vector<1x128xf32>
    %cst_215 = arith.constant dense<0.000000e+00> : vector<8xf32>
    %452 = vector.multi_reduction <add>, %449, %cst_215 [1] : vector<8x128xf32> to vector<8xf32>
    %453 = vector.shape_cast %452 : vector<8xf32> to vector<8x1xf32>
    %cst_216 = arith.constant 3.125000e-02 : f32
    %454 = vector.broadcast %cst_216 : f32 to vector<8x1xf32>
    %455 = arith.mulf %453, %454 : vector<8x1xf32>
    %456 = vector.broadcast %455 : vector<8x1xf32> to vector<8x128xf32>
    %457 = arith.subf %449, %456 : vector<8x128xf32>
    %458 = vector.broadcast %4 : vector<1x128xf32> to vector<8x128xf32>
    %459 = arith.mulf %457, %458 : vector<8x128xf32>
    %460 = arith.mulf %459, %459 : vector<8x128xf32>
    %cst_217 = arith.constant dense<0.000000e+00> : vector<8xf32>
    %461 = vector.multi_reduction <add>, %460, %cst_217 [1] : vector<8x128xf32> to vector<8xf32>
    %462 = vector.shape_cast %461 : vector<8xf32> to vector<8x1xf32>
    %cst_218 = arith.constant 3.125000e-02 : f32
    %463 = vector.broadcast %cst_218 : f32 to vector<8x1xf32>
    %464 = arith.mulf %462, %463 : vector<8x1xf32>
    %cst_219 = arith.constant 9.99999996E-13 : f32
    %465 = vector.broadcast %cst_219 : f32 to vector<8x1xf32>
    %466 = arith.addf %464, %465 : vector<8x1xf32>
    %467 = math.rsqrt %466 : vector<8x1xf32>
    %468 = vector.broadcast %467 : vector<8x1xf32> to vector<8x128xf32>
    %469 = arith.mulf %459, %468 : vector<8x128xf32>
    %470 = vector.broadcast %450 : vector<1x128xf32> to vector<8x128xf32>
    %471 = arith.mulf %469, %470 : vector<8x128xf32>
    %472 = vector.broadcast %451 : vector<1x128xf32> to vector<8x128xf32>
    %473 = arith.addf %471, %472 : vector<8x128xf32>
    %474 = arith.truncf %473 : vector<8x128xf32> to vector<8x128xbf16>
    %c0_220 = arith.constant 0 : index
    %c0_221 = arith.constant 0 : index
    %475 = vector.load %arg24[%c0_220, %c0_221] : memref<128x128xbf16, #tpu.memory_space<vmem>>, vector<128x128xbf16>
    %cst_222 = arith.constant dense<0.000000e+00> : vector<8x128xf32>
    %476 = tpu.matmul %474, %475, %cst_222 {dimension_numbers = #tpu.dot_dimension_numbers<[1], [0], [0], [1], [0, 0, 1, 1], [], []>} : vector<8x128xbf16>, vector<128x128xbf16>, vector<8x128xf32> -> vector<8x128xf32>
    %c0_223 = arith.constant 0 : index
    %c0_224 = arith.constant 0 : index
    %477 = vector.load %arg25[%c0_223, %c0_224] : memref<1x128xf32, #tpu.memory_space<vmem>>, vector<1x128xf32>
    %478 = vector.broadcast %477 : vector<1x128xf32> to vector<8x128xf32>
    %479 = arith.addf %476, %478 : vector<8x128xf32>
    %c0_225 = arith.constant 0 : index
    %c0_226 = arith.constant 0 : index
    %c0_227 = arith.constant 0 : index
    %480 = vector.load %arg3[%c0_225, %c0_226, %c0_227] : memref<1x8x1xi32, #tpu.memory_space<vmem>>, vector<1x8x1xi32>
    %481 = vector.shape_cast %480 : vector<1x8x1xi32> to vector<8x1xi32>
    %482 = tpu.iota {dimensions = array<i32: 1>} : vector<8x128xi32>
    %c100_i32 = arith.constant 100 : i32
    %483 = vector.broadcast %c100_i32 : i32 to vector<8x128xi32>
    %484 = arith.cmpi slt, %482, %483 : vector<8x128xi32>
    %cst_228 = arith.constant -1.000000e+30 : f32
    %485 = vector.broadcast %cst_228 : f32 to vector<8x128xf32>
    %486 = arith.select %484, %479, %485 : vector<8x128xi1>, vector<8x128xf32>
    %cst_229 = arith.constant dense<0xFF800000> : vector<8xf32>
    %487 = vector.multi_reduction <maximumf>, %486, %cst_229 [1] : vector<8x128xf32> to vector<8xf32>
    %488 = vector.shape_cast %487 : vector<8xf32> to vector<8x1xf32>
    %489 = vector.broadcast %488 : vector<8x1xf32> to vector<8x128xf32>
    %490 = arith.subf %486, %489 : vector<8x128xf32>
    %491 = math.exp %490 : vector<8x128xf32>
    %cst_230 = arith.constant dense<0.000000e+00> : vector<8xf32>
    %492 = vector.multi_reduction <add>, %491, %cst_230 [1] : vector<8x128xf32> to vector<8xf32>
    %493 = vector.shape_cast %492 : vector<8xf32> to vector<8x1xf32>
    %494 = math.log %493 : vector<8x1xf32>
    %495 = arith.addf %488, %494 : vector<8x1xf32>
    %496 = vector.broadcast %481 : vector<8x1xi32> to vector<8x128xi32>
    %497 = arith.cmpi eq, %482, %496 : vector<8x128xi32>
    %cst_231 = arith.constant 0.000000e+00 : f32
    %498 = vector.broadcast %cst_231 : f32 to vector<8x128xf32>
    %499 = arith.select %497, %486, %498 : vector<8x128xi1>, vector<8x128xf32>
    %cst_232 = arith.constant dense<0.000000e+00> : vector<8xf32>
    %500 = vector.multi_reduction <add>, %499, %cst_232 [1] : vector<8x128xf32> to vector<8xf32>
    %501 = vector.shape_cast %500 : vector<8xf32> to vector<8x1xf32>
    %c0_i32 = arith.constant 0 : i32
    %502 = vector.broadcast %c0_i32 : i32 to vector<8x1xi32>
    %503 = arith.cmpi ne, %481, %502 : vector<8x1xi32>
    %504 = arith.extui %503 : vector<8x1xi1> to vector<8x1xi32>
    %505 = arith.sitofp %504 : vector<8x1xi32> to vector<8x1xf32>
    %506 = arith.subf %495, %501 : vector<8x1xf32>
    %507 = arith.mulf %506, %505 : vector<8x1xf32>
    %cst_233 = arith.constant dense<0.000000e+00> : vector<1xf32>
    %508 = vector.multi_reduction <add>, %507, %cst_233 [0] : vector<8x1xf32> to vector<1xf32>
    %509 = vector.shape_cast %508 : vector<1xf32> to vector<1x1xf32>
    %cst_234 = arith.constant dense<0.000000e+00> : vector<1xf32>
    %510 = vector.multi_reduction <add>, %505, %cst_234 [0] : vector<8x1xf32> to vector<1xf32>
    %511 = vector.shape_cast %510 : vector<1xf32> to vector<1x1xf32>
    %512 = tpu.iota {dimensions = array<i32: 1>} : vector<1x128xi32>
    %c0_i32_235 = arith.constant 0 : i32
    %513 = vector.broadcast %c0_i32_235 : i32 to vector<1x128xi32>
    %514 = arith.cmpi eq, %512, %513 : vector<1x128xi32>
    %cst_236 = arith.constant 0.000000e+00 : f32
    %515 = vector.shape_cast %509 : vector<1x1xf32> to vector<1x1xf32>
    %516 = vector.broadcast %515 : vector<1x1xf32> to vector<1x128xf32>
    %517 = vector.broadcast %cst_236 : f32 to vector<1x128xf32>
    %518 = arith.select %514, %516, %517 : vector<1x128xi1>, vector<1x128xf32>
    %c1_i32 = arith.constant 1 : i32
    %519 = vector.broadcast %c1_i32 : i32 to vector<1x128xi32>
    %520 = arith.cmpi eq, %512, %519 : vector<1x128xi32>
    %cst_237 = arith.constant 0.000000e+00 : f32
    %521 = vector.shape_cast %511 : vector<1x1xf32> to vector<1x1xf32>
    %522 = vector.broadcast %521 : vector<1x1xf32> to vector<1x128xf32>
    %523 = vector.broadcast %cst_237 : f32 to vector<1x128xf32>
    %524 = arith.select %520, %522, %523 : vector<1x128xi1>, vector<1x128xf32>
    %525 = arith.addf %518, %524 : vector<1x128xf32>
    %c0_238 = arith.constant 0 : index
    %c0_239 = arith.constant 0 : index
    %c0_240 = arith.constant 0 : index
    %526 = vector.load %arg31[%c0_238, %c0_239, %c0_240] : memref<1x1x128xf32, #tpu.memory_space<vmem>>, vector<1x1x128xf32>
    %527 = vector.shape_cast %526 : vector<1x1x128xf32> to vector<1x128xf32>
    %528 = vector.shape_cast %525 : vector<1x128xf32> to vector<1x1x128xf32>
    tpu.vector_store %arg31[%c0_238, %c0_239, %c0_240], %528 {strides = array<i32>} : memref<1x1x128xf32, #tpu.memory_space<vmem>>, vector<1x1x128xf32>,
    return
  }
  func.func @transform_0(%arg0: i32) -> (i32, i32, i32) {
    %c0_i32 = arith.constant 0 : i32
    %c0_i32_0 = arith.constant 0 : i32
    %c0_i32_1 = arith.constant 0 : i32
    return %arg0, %c0_i32, %c0_i32_0 : i32, i32, i32
  }
  func.func @transform_1(%arg0: i32) -> (i32, i32, i32) {
    %c0_i32 = arith.constant 0 : i32
    %c0_i32_0 = arith.constant 0 : i32
    %c0_i32_1 = arith.constant 0 : i32
    return %arg0, %c0_i32, %c0_i32_0 : i32, i32, i32
  }
  func.func @transform_2(%arg0: i32) -> (i32, i32, i32) {
    %c0_i32 = arith.constant 0 : i32
    %c0_i32_0 = arith.constant 0 : i32
    %c0_i32_1 = arith.constant 0 : i32
    return %arg0, %c0_i32, %c0_i32_0 : i32, i32, i32
  }
  func.func @transform_3(%arg0: i32) -> (i32, i32) {
    %c0_i32 = arith.constant 0 : i32
    %c0_i32_0 = arith.constant 0 : i32
    %c0_i32_1 = arith.constant 0 : i32
    return %c0_i32, %c0_i32_0 : i32, i32
  }
  func.func @transform_4(%arg0: i32) -> (i32, i32) {
    %c0_i32 = arith.constant 0 : i32
    %c0_i32_0 = arith.constant 0 : i32
    %c0_i32_1 = arith.constant 0 : i32
    return %c0_i32, %c0_i32_0 : i32, i32
  }
  func.func @transform_5(%arg0: i32) -> (i32, i32, i32) {
    %c0_i32 = arith.constant 0 : i32
    %c0_i32_0 = arith.constant 0 : i32
    %c0_i32_1 = arith.constant 0 : i32
    %c0_i32_2 = arith.constant 0 : i32
    return %c0_i32, %c0_i32_0, %c0_i32_1 : i32, i32, i32
  }
  func.func @transform_6(%arg0: i32) -> (i32, i32, i32) {
    %c0_i32 = arith.constant 0 : i32
    %c0_i32_0 = arith.constant 0 : i32
    %c0_i32_1 = arith.constant 0 : i32
    %c0_i32_2 = arith.constant 0 : i32
    return %c0_i32, %c0_i32_0, %c0_i32_1 : i32, i32, i32
  }
  func.func @transform_7(%arg0: i32) -> (i32, i32, i32) {
    %c0_i32 = arith.constant 0 : i32
    %c0_i32_0 = arith.constant 0 : i32
    %c0_i32_1 = arith.constant 0 : i32
    %c0_i32_2 = arith.constant 0 : i32
    return %c0_i32, %c0_i32_0, %c0_i32_1 : i32, i32, i32
  }
  func.func @transform_8(%arg0: i32) -> (i32, i32, i32) {
    %c0_i32 = arith.constant 0 : i32
    %c0_i32_0 = arith.constant 0 : i32
    %c0_i32_1 = arith.constant 0 : i32
    %c0_i32_2 = arith.constant 0 : i32
    return %c0_i32, %c0_i32_0, %c0_i32_1 : i32, i32, i32
  }
  func.func @transform_9(%arg0: i32) -> (i32, i32, i32) {
    %c0_i32 = arith.constant 0 : i32
    %c0_i32_0 = arith.constant 0 : i32
    %c0_i32_1 = arith.constant 0 : i32
    %c0_i32_2 = arith.constant 0 : i32
    return %c0_i32, %c0_i32_0, %c0_i32_1 : i32, i32, i32
  }
  func.func @transform_10(%arg0: i32) -> (i32, i32, i32) {
    %c0_i32 = arith.constant 0 : i32
    %c0_i32_0 = arith.constant 0 : i32
    %c0_i32_1 = arith.constant 0 : i32
    %c0_i32_2 = arith.constant 0 : i32
    return %c0_i32, %c0_i32_0, %c0_i32_1 : i32, i32, i32
  }
  func.func @transform_11(%arg0: i32) -> (i32, i32, i32) {
    %c0_i32 = arith.constant 0 : i32
    %c0_i32_0 = arith.constant 0 : i32
    %c0_i32_1 = arith.constant 0 : i32
    %c0_i32_2 = arith.constant 0 : i32
    return %c0_i32, %c0_i32_0, %c0_i32_1 : i32, i32, i32
  }
  func.func @transform_12(%arg0: i32) -> (i32, i32, i32) {
    %c0_i32 = arith.constant 0 : i32
    %c0_i32_0 = arith.constant 0 : i32
    %c0_i32_1 = arith.constant 0 : i32
    %c0_i32_2 = arith.constant 0 : i32
    return %c0_i32, %c0_i32_0, %c0_i32_1 : i32, i32, i32
  }
  func.func @transform_13(%arg0: i32) -> (i32, i32, i32) {
    %c0_i32 = arith.constant 0 : i32
    %c0_i32_0 = arith.constant 0 : i32
    %c0_i32_1 = arith.constant 0 : i32
    %c0_i32_2 = arith.constant 0 : i32
    return %c0_i32, %c0_i32_0, %c0_i32_1 : i32, i32, i32
  }
  func.func @transform_14(%arg0: i32) -> (i32, i32, i32) {
    %c0_i32 = arith.constant 0 : i32
    %c0_i32_0 = arith.constant 0 : i32
    %c0_i32_1 = arith.constant 0 : i32
    %c0_i32_2 = arith.constant 0 : i32
    return %c0_i32, %c0_i32_0, %c0_i32_1 : i32, i32, i32
  }
  func.func @transform_15(%arg0: i32) -> (i32, i32, i32) {
    %c0_i32 = arith.constant 0 : i32
    %c0_i32_0 = arith.constant 0 : i32
    %c0_i32_1 = arith.constant 0 : i32
    %c0_i32_2 = arith.constant 0 : i32
    return %c0_i32, %c0_i32_0, %c0_i32_1 : i32, i32, i32
  }
  func.func @transform_16(%arg0: i32) -> (i32, i32, i32) {
    %c0_i32 = arith.constant 0 : i32
    %c0_i32_0 = arith.constant 0 : i32
    %c0_i32_1 = arith.constant 0 : i32
    %c0_i32_2 = arith.constant 0 : i32
    return %c0_i32, %c0_i32_0, %c0_i32_1 : i32, i32, i32
  }
  func.func @transform_17(%arg0: i32) -> (i32, i32) {
    %c0_i32 = arith.constant 0 : i32
    %c0_i32_0 = arith.constant 0 : i32
    %c0_i32_1 = arith.constant 0 : i32
    return %c0_i32, %c0_i32_0 : i32, i32
  }
  func.func @transform_18(%arg0: i32) -> (i32, i32) {
    %c0_i32 = arith.constant 0 : i32
    %c0_i32_0 = arith.constant 0 : i32
    %c0_i32_1 = arith.constant 0 : i32
    return %c0_i32, %c0_i32_0 : i32, i32
  }
  func.func @transform_19(%arg0: i32) -> (i32, i32) {
    %c0_i32 = arith.constant 0 : i32
    %c0_i32_0 = arith.constant 0 : i32
    %c0_i32_1 = arith.constant 0 : i32
    return %c0_i32, %c0_i32_0 : i32, i32
  }
  func.func @transform_20(%arg0: i32) -> (i32, i32) {
    %c0_i32 = arith.constant 0 : i32
    %c0_i32_0 = arith.constant 0 : i32
    %c0_i32_1 = arith.constant 0 : i32
    return %c0_i32, %c0_i32_0 : i32, i32
  }
  func.func @transform_21(%arg0: i32) -> (i32, i32) {
    %c0_i32 = arith.constant 0 : i32
    %c0_i32_0 = arith.constant 0 : i32
    %c0_i32_1 = arith.constant 0 : i32
    return %c0_i32, %c0_i32_0 : i32, i32
  }
  func.func @transform_22(%arg0: i32) -> (i32, i32) {
    %c0_i32 = arith.constant 0 : i32
    %c0_i32_0 = arith.constant 0 : i32
    %c0_i32_1 = arith.constant 0 : i32
    return %c0_i32, %c0_i32_0 : i32, i32
  }
  func.func @transform_23(%arg0: i32) -> (i32, i32) {
    %c0_i32 = arith.constant 0 : i32
    %c0_i32_0 = arith.constant 0 : i32
    %c0_i32_1 = arith.constant 0 : i32
    return %c0_i32, %c0_i32_0 : i32, i32
  }
  func.func @transform_24(%arg0: i32) -> (i32, i32) {
    %c0_i32 = arith.constant 0 : i32
    %c0_i32_0 = arith.constant 0 : i32
    %c0_i32_1 = arith.constant 0 : i32
    return %c0_i32, %c0_i32_0 : i32, i32
  }
  func.func @transform_25(%arg0: i32) -> (i32, i32) {
    %c0_i32 = arith.constant 0 : i32
    %c0_i32_0 = arith.constant 0 : i32
    %c0_i32_1 = arith.constant 0 : i32
    return %c0_i32, %c0_i32_0 : i32, i32
  }
  func.func @transform_26(%arg0: i32) -> (i32, i32) {
    %c0_i32 = arith.constant 0 : i32
    %c0_i32_0 = arith.constant 0 : i32
    %c0_i32_1 = arith.constant 0 : i32
    return %c0_i32, %c0_i32_0 : i32, i32
  }
  func.func @transform_27(%arg0: i32) -> (i32, i32, i32) {
    %c0_i32 = arith.constant 0 : i32
    %c0_i32_0 = arith.constant 0 : i32
    %c0_i32_1 = arith.constant 0 : i32
    return %arg0, %c0_i32, %c0_i32_0 : i32, i32, i32
  }
  func.func @transform_28(%arg0: i32) -> (i32, i32, i32) {
    %c0_i32 = arith.constant 0 : i32
    %c0_i32_0 = arith.constant 0 : i32
    %c0_i32_1 = arith.constant 0 : i32
    return %arg0, %c0_i32, %c0_i32_0 : i32, i32, i32
  }
  func.func @transform_29(%arg0: i32) -> (i32, i32, i32) {
    %c0_i32 = arith.constant 0 : i32
    %c0_i32_0 = arith.constant 0 : i32
    %c0_i32_1 = arith.constant 0 : i32
    return %arg0, %c0_i32, %c0_i32_0 : i32, i32, i32
  }
  func.func @transform_30(%arg0: i32) -> (i32, i32, i32) {
    %c0_i32 = arith.constant 0 : i32
    %c0_i32_0 = arith.constant 0 : i32
    %c0_i32_1 = arith.constant 0 : i32
    return %arg0, %c0_i32, %c0_i32_0 : i32, i32, i32
  }
}

</mosaic_0001>

<llo_original>
// kernel: forward.1
$region0: #{forward.1}
  #allocation0 [shape = 'u32[]', space=smem, size = 0x4, offset = 0x4, fixed_abs, tag = 'smem constant byte address 0x4 - core index']
  #allocation1 [shape = 'u32[72,128]{1,0:T(1,128)}', space=vmem, size = 0x9000, scoped, tag = 'internal scratch']
  %s0 = inlined_call_operand.smem [shape: u32[31], index: -1, kind: input, shape index: {}]
  %s1 = sld [smem:[%s0]]
  %s2 = scalar_lea.smem %s0, 1
  %s3 = sld [smem:[%s2]]
  %s4 = scalar_lea.smem %s0, 2
  %s5 = sld [smem:[%s4]]
  %s6 = scalar_lea.smem %s0, 3
  %s7 = sld [smem:[%s6]]
  %s8 = scalar_lea.smem %s0, 4
  %s9 = sld [smem:[%s8]]
  %s10 = scalar_lea.smem %s0, 5
  %s11 = sld [smem:[%s10]]
  %s12 = scalar_lea.smem %s0, 6
  %s13 = sld [smem:[%s12]]
  %s14 = scalar_lea.smem %s0, 7
  %s15 = sld [smem:[%s14]]
  %s16 = scalar_lea.smem %s0, 8
  %s17 = sld [smem:[%s16]]
  %s18 = scalar_lea.smem %s0, 9
  %s19 = sld [smem:[%s18]]
  %s20 = scalar_lea.smem %s0, 10
  %s21 = sld [smem:[%s20]]
  %s22 = scalar_lea.smem %s0, 11
  %s23 = sld [smem:[%s22]]
  %s24 = scalar_lea.smem %s0, 12
  %s25 = sld [smem:[%s24]]
  %s26 = scalar_lea.smem %s0, 13
  %s27 = sld [smem:[%s26]]
  %s28 = scalar_lea.smem %s0, 14
  %s29 = sld [smem:[%s28]]
  %s30 = scalar_lea.smem %s0, 15
  %s31 = sld [smem:[%s30]]
  %s32 = scalar_lea.smem %s0, 16
  %s33 = sld [smem:[%s32]]
  %s34 = scalar_lea.smem %s0, 17
  %s35 = sld [smem:[%s34]]
  %s36 = scalar_lea.smem %s0, 18
  %s37 = sld [smem:[%s36]]
  %s38 = scalar_lea.smem %s0, 19
  %s39 = sld [smem:[%s38]]
  %s40 = scalar_lea.smem %s0, 20
  %s41 = sld [smem:[%s40]]
  %s42 = scalar_lea.smem %s0, 21
  %s43 = sld [smem:[%s42]]
  %s44 = scalar_lea.smem %s0, 22
  %s45 = sld [smem:[%s44]]
  %s46 = scalar_lea.smem %s0, 23
  %s47 = sld [smem:[%s46]]
  %s48 = scalar_lea.smem %s0, 24
  %s49 = sld [smem:[%s48]]
  %s50 = scalar_lea.smem %s0, 25
  %s51 = sld [smem:[%s50]]
  %s52 = scalar_lea.smem %s0, 26
  %s53 = sld [smem:[%s52]]
  %s54 = scalar_lea.smem %s0, 27
  %s55 = sld [smem:[%s54]]
  %s56 = scalar_lea.smem %s0, 28
  %s57 = sld [smem:[%s56]]
  %s58 = scalar_lea.smem %s0, 29
  %s59 = sld [smem:[%s58]]
  %s60 = scalar_lea.smem %s0, 30
  %s61 = sld [smem:[%s60]]
  %62 = xla_tuple %s55, %s57, %s59, %s61
  %s63 = sld [smem:[#allocation0]]
  $region185: #{forward.1} parent=0
    _
  %s65 = ssub.s32 1, %s63
  %s66 = scalar_select 0, %s65, %s63
  $region1: #{forward.1} parent=0
    #allocation2 [shape = 'u8[196608]{0}', space=vmem, size = 0x30000, scoped, tag = 'input window, operand 5, single buffered']
    #allocation3 [shape = 's32[2]{0}', space=sflag, size = 0x8, scoped, tag = 'scoped memory for forward.1']
    #allocation4 [shape = 's32[2]{0}', space=sflag, size = 0x8, scoped, tag = 'scoped memory for forward.1']
    #allocation5 [shape = 'u8[65536]{0}', space=vmem, size = 0x10000, scoped, tag = 'input window, operand 13, single buffered']
    #allocation6 [shape = 's32[1]{0}', space=sflag, size = 0x4, scoped, tag = 'scoped memory for forward.1']
    #allocation7 [shape = 'u8[32768]{0}', space=vmem, size = 0x8000, scoped, tag = 'input window, operand 19, single buffered']
    #allocation8 [shape = 'u8[32768]{0}', space=vmem, size = 0x8000, scoped, tag = 'input window, operand 23, single buffered']
    #allocation9 [shape = 's32[1]{0}', space=sflag, size = 0x4, scoped, tag = 'scoped memory for forward.1']
    #allocation10 [shape = 'u8[32768]{0}', space=vmem, size = 0x8000, scoped, tag = 'input window, operand 25, single buffered']
    #allocation11 [shape = 'u8[8192]{0}', space=vmem, size = 0x2000, scoped, tag = 'output window, operand 0']
    #allocation12 [shape = 'u8[1024]{0}', space=vmem, size = 0x400, scoped, tag = 'output window, operand 1']
    #allocation13 [shape = 's32[2]{0}', space=sflag, size = 0x8, scoped, tag = 'scoped memory for forward.1']
    %67 = vsyncpa [#allocation3], 0
    %68 = vsyncpa [#allocation6], 0
    %69 = vsyncpa [#allocation9], 0
    %70 = vsyncpa [#allocation4], 0
    %s71 = scalar_lea.sflag [#allocation4], 1
    %72 = vsyncpa %s71, 0
    %73 = vsyncpa [#allocation13], 0
    %s74 = scalar_lea.sflag [#allocation13], 1
    %75 = vsyncpa %s74, 0
    loop: start=0, step=1, limit=4
    $region2: #{forward.1} parent=1 // loop_pre_header
      _
    $region3: #{forward.1} parent=1 // loop_header
      %s77 = sphi 0, %s81
      %p78 = scmp.ge.s32.totalorder %s77, 4
      %s87 = sphi 0, %s89
      %s90 = sphi 0, %s87
      %s91 = sphi 0, %s90
      %s107 = sphi 0, %s91
      %s113 = sphi 0, %s115
      %s116 = sphi 0, %s113
      %s117 = sphi 0, %s116
      %s133 = sphi 0, %s117
      %s139 = sphi 0, %s141
      %s142 = sphi 0, %s139
      %s143 = sphi 0, %s142
      %s159 = sphi 0, %s143
      %s163 = sphi 0, %s163
      %s165 = sphi 0, %s163
      %s166 = sphi 0, %s165
      %s180 = sphi 0, %s166
      %s184 = sphi 0, %s184
      %s186 = sphi 0, %s184
      %s187 = sphi 0, %s186
      %s201 = sphi 0, %s187
      %s205 = sphi 0, %s205
      %s207 = sphi 0, %s205
      %s208 = sphi 0, %s207
      %s222 = sphi 0, %s208
      %s226 = sphi 0, %s226
      %s228 = sphi 0, %s226
      %s229 = sphi 0, %s228
      %s243 = sphi 0, %s229
      %s247 = sphi 0, %s247
      %s249 = sphi 0, %s247
      %s250 = sphi 0, %s249
      %s264 = sphi 0, %s250
      %s268 = sphi 0, %s268
      %s270 = sphi 0, %s268
      %s271 = sphi 0, %s270
      %s285 = sphi 0, %s271
      %s289 = sphi 0, %s289
      %s291 = sphi 0, %s289
      %s292 = sphi 0, %s291
      %s306 = sphi 0, %s292
      %s310 = sphi 0, %s310
      %s312 = sphi 0, %s310
      %s313 = sphi 0, %s312
      %s327 = sphi 0, %s313
      %s331 = sphi 0, %s331
      %s333 = sphi 0, %s331
      %s334 = sphi 0, %s333
      %s348 = sphi 0, %s334
      %s352 = sphi 0, %s352
      %s354 = sphi 0, %s352
      %s355 = sphi 0, %s354
      %s369 = sphi 0, %s355
      %s373 = sphi 0, %s373
      %s375 = sphi 0, %s373
      %s376 = sphi 0, %s375
      %s390 = sphi 0, %s376
      %s394 = sphi 0, %s394
      %s396 = sphi 0, %s394
      %s397 = sphi 0, %s396
      %s411 = sphi 0, %s397
      %s415 = sphi 0, %s415
      %s417 = sphi 0, %s415
      %s418 = sphi 0, %s417
      %s432 = sphi 0, %s418
      %s436 = sphi 0, %s436
      %s438 = sphi 0, %s436
      %s439 = sphi 0, %s438
      %s453 = sphi 0, %s439
      %s457 = sphi 0, %s457
      %s459 = sphi 0, %s457
      %s460 = sphi 0, %s459
      %s474 = sphi 0, %s460
      %s478 = sphi 0, %s478
      %s480 = sphi 0, %s478
      %s481 = sphi 0, %s480
      %s495 = sphi 0, %s481
      %s499 = sphi 0, %s499
      %s501 = sphi 0, %s499
      %s502 = sphi 0, %s501
      %s516 = sphi 0, %s502
      %s520 = sphi 0, %s520
      %s522 = sphi 0, %s520
      %s523 = sphi 0, %s522
      %s537 = sphi 0, %s523
      %s541 = sphi 0, %s541
      %s543 = sphi 0, %s541
      %s544 = sphi 0, %s543
      %s558 = sphi 0, %s544
      %s562 = sphi 0, %s562
      %s564 = sphi 0, %s562
      %s565 = sphi 0, %s564
      %s579 = sphi 0, %s565
      %s583 = sphi 0, %s583
      %s585 = sphi 0, %s583
      %s586 = sphi 0, %s585
      %s600 = sphi 0, %s586
      %s604 = sphi 0, %s604
      %s606 = sphi 0, %s604
      %s607 = sphi 0, %s606
      %s621 = sphi 0, %s607
      %s625 = sphi 0, %s625
      %s627 = sphi 0, %s625
      %s628 = sphi 0, %s627
      %s642 = sphi 0, %s628
      %s646 = sphi 0, %s646
      %s648 = sphi 0, %s646
      %s649 = sphi 0, %s648
      %s663 = sphi 0, %s649
      %s669 = sphi 0, %s671
      %s672 = sphi 0, %s669
      %s673 = sphi 0, %s672
      %s689 = sphi 0, %s673
      %s695 = sphi 0, %s697
      %s698 = sphi 0, %s695
      %s699 = sphi 0, %s698
      %s715 = sphi 0, %s699
      %s721 = sphi 0, %s723
      %s724 = sphi 0, %s721
      %s725 = sphi 0, %s724
      %s741 = sphi 0, %s725
      %s747 = sphi 0, %s749
      %s750 = sphi 0, %s747
      %s751 = sphi 0, %s750
      %s767 = sphi 0, %s751
    $region4: #{forward.1} parent=1 // loop_header_branch
      %80 = sbr.rel (%p78) target = $region8
    $region5: #{forward.1} parent=1 // loop_body
      %s82 = ssub.s32 %s77, 1
      %s83 = ssub.s32 %s77, 2
      %s84 = sadd.s32 %s77, 1
      %s85 = ssub.s32 %s77, %s84
      %p86 = scmp.eq.s32.totalorder %s85, 0
      %s88 = sadd.s32 %s87, 1
      %s89 = scalar_select %p86, %s87, %s88
      %p92 = pneg %p86
      %p93 = scmp.eq.s32.totalorder %s77, 1
      %p94 = por %p92, %p93
      %p95 = scmp.ne.s32.totalorder %s87, %s90
      %p96 = scmp.eq.s32.totalorder %s77, 0
      %p97 = por %p95, %p96
      %p98 = scmp.ne.s32.totalorder %s87, %s90
      %p99 = scmp.eq.s32.totalorder %s82, 1
      %p100 = por %p98, %p99
      %p101 = scmp.ne.s32.totalorder %s90, %s91
      %p102 = scmp.eq.s32.totalorder %s82, 0
      %p103 = por %p101, %p102
      %p104 = scmp.ne.s32.totalorder %s90, %s91
      %p105 = scmp.eq.s32.totalorder %s83, 1
      %p106 = por %p104, %p105
      %p108 = scmp.ne.s32.totalorder %s91, %s107
      %p109 = scmp.eq.s32.totalorder %s83, 0
      %p110 = por %p108, %p109
      %s111 = ssub.s32 %s77, %s84
      %p112 = scmp.eq.s32.totalorder %s111, 0
      %s114 = sadd.s32 %s113, 1
      %s115 = scalar_select %p112, %s113, %s114
      %p118 = pneg %p112
      %p119 = scmp.eq.s32.totalorder %s77, 1
      %p120 = por %p118, %p119
      %p121 = scmp.ne.s32.totalorder %s113, %s116
      %p122 = scmp.eq.s32.totalorder %s77, 0
      %p123 = por %p121, %p122
      %p124 = scmp.ne.s32.totalorder %s113, %s116
      %p125 = scmp.eq.s32.totalorder %s82, 1
      %p126 = por %p124, %p125
      %p127 = scmp.ne.s32.totalorder %s116, %s117
      %p128 = scmp.eq.s32.totalorder %s82, 0
      %p129 = por %p127, %p128
      %p130 = scmp.ne.s32.totalorder %s116, %s117
      %p131 = scmp.eq.s32.totalorder %s83, 1
      %p132 = por %p130, %p131
      %p134 = scmp.ne.s32.totalorder %s117, %s133
      %p135 = scmp.eq.s32.totalorder %s83, 0
      %p136 = por %p134, %p135
      %s137 = ssub.s32 %s77, %s84
      %p138 = scmp.eq.s32.totalorder %s137, 0
      %s140 = sadd.s32 %s139, 1
      %s141 = scalar_select %p138, %s139, %s140
      %p144 = pneg %p138
      %p145 = scmp.eq.s32.totalorder %s77, 1
      %p146 = por %p144, %p145
      %p147 = scmp.ne.s32.totalorder %s139, %s142
      %p148 = scmp.eq.s32.totalorder %s77, 0
      %p149 = por %p147, %p148
      %p150 = scmp.ne.s32.totalorder %s139, %s142
      %p151 = scmp.eq.s32.totalorder %s82, 1
      %p152 = por %p150, %p151
      %p153 = scmp.ne.s32.totalorder %s142, %s143
      %p154 = scmp.eq.s32.totalorder %s82, 0
      %p155 = por %p153, %p154
      %p156 = scmp.ne.s32.totalorder %s142, %s143
      %p157 = scmp.eq.s32.totalorder %s83, 1
      %p158 = por %p156, %p157
      %p160 = scmp.ne.s32.totalorder %s143, %s159
      %p161 = scmp.eq.s32.totalorder %s83, 0
      %p162 = por %p160, %p161
      %s164 = sadd.s32 %s163, 1
      %p167 = scmp.eq.s32.totalorder %s77, 1
      %p168 = scmp.ne.s32.totalorder %s163, %s165
      %p169 = scmp.eq.s32.totalorder %s77, 0
      %p170 = por %p168, %p169
      %p171 = scmp.ne.s32.totalorder %s163, %s165
      %p172 = scmp.eq.s32.totalorder %s82, 1
      %p173 = por %p171, %p172
      %p174 = scmp.ne.s32.totalorder %s165, %s166
      %p175 = scmp.eq.s32.totalorder %s82, 0
      %p176 = por %p174, %p175
      %p177 = scmp.ne.s32.totalorder %s165, %s166
      %p178 = scmp.eq.s32.totalorder %s83, 1
      %p179 = por %p177, %p178
      %p181 = scmp.ne.s32.totalorder %s166, %s180
      %p182 = scmp.eq.s32.totalorder %s83, 0
      %p183 = por %p181, %p182
      %s185 = sadd.s32 %s184, 1
      %p188 = scmp.eq.s32.totalorder %s77, 1
      %p189 = scmp.ne.s32.totalorder %s184, %s186
      %p190 = scmp.eq.s32.totalorder %s77, 0
      %p191 = por %p189, %p190
      %p192 = scmp.ne.s32.totalorder %s184, %s186
      %p193 = scmp.eq.s32.totalorder %s82, 1
      %p194 = por %p192, %p193
      %p195 = scmp.ne.s32.totalorder %s186, %s187
      %p196 = scmp.eq.s32.totalorder %s82, 0
      %p197 = por %p195, %p196
      %p198 = scmp.ne.s32.totalorder %s186, %s187
      %p199 = scmp.eq.s32.totalorder %s83, 1
      %p200 = por %p198, %p199
      %p202 = scmp.ne.s32.totalorder %s187, %s201
      %p203 = scmp.eq.s32.totalorder %s83, 0
      %p204 = por %p202, %p203
      %s206 = sadd.s32 %s205, 1
      %p209 = scmp.eq.s32.totalorder %s77, 1
      %p210 = scmp.ne.s32.totalorder %s205, %s207
      %p211 = scmp.eq.s32.totalorder %s77, 0
      %p212 = por %p210, %p211
      %p213 = scmp.ne.s32.totalorder %s205, %s207
      %p214 = scmp.eq.s32.totalorder %s82, 1
      %p215 = por %p213, %p214
      %p216 = scmp.ne.s32.totalorder %s207, %s208
      %p217 = scmp.eq.s32.totalorder %s82, 0
      %p218 = por %p216, %p217
      %p219 = scmp.ne.s32.totalorder %s207, %s208
      %p220 = scmp.eq.s32.totalorder %s83, 1
      %p221 = por %p219, %p220
      %p223 = scmp.ne.s32.totalorder %s208, %s222
      %p224 = scmp.eq.s32.totalorder %s83, 0
      %p225 = por %p223, %p224
      %s227 = sadd.s32 %s226, 1
      %p230 = scmp.eq.s32.totalorder %s77, 1
      %p231 = scmp.ne.s32.totalorder %s226, %s228
      %p232 = scmp.eq.s32.totalorder %s77, 0
      %p233 = por %p231, %p232
      %p234 = scmp.ne.s32.totalorder %s226, %s228
      %p235 = scmp.eq.s32.totalorder %s82, 1
      %p236 = por %p234, %p235
      %p237 = scmp.ne.s32.totalorder %s228, %s229
      %p238 = scmp.eq.s32.totalorder %s82, 0
      %p239 = por %p237, %p238
      %p240 = scmp.ne.s32.totalorder %s228, %s229
      %p241 = scmp.eq.s32.totalorder %s83, 1
      %p242 = por %p240, %p241
      %p244 = scmp.ne.s32.totalorder %s229, %s243
      %p245 = scmp.eq.s32.totalorder %s83, 0
      %p246 = por %p244, %p245
      %s248 = sadd.s32 %s247, 1
      %p251 = scmp.eq.s32.totalorder %s77, 1
      %p252 = scmp.ne.s32.totalorder %s247, %s249
      %p253 = scmp.eq.s32.totalorder %s77, 0
      %p254 = por %p252, %p253
      %p255 = scmp.ne.s32.totalorder %s247, %s249
      %p256 = scmp.eq.s32.totalorder %s82, 1
      %p257 = por %p255, %p256
      %p258 = scmp.ne.s32.totalorder %s249, %s250
      %p259 = scmp.eq.s32.totalorder %s82, 0
      %p260 = por %p258, %p259
      %p261 = scmp.ne.s32.totalorder %s249, %s250
      %p262 = scmp.eq.s32.totalorder %s83, 1
      %p263 = por %p261, %p262
      %p265 = scmp.ne.s32.totalorder %s250, %s264
      %p266 = scmp.eq.s32.totalorder %s83, 0
      %p267 = por %p265, %p266
      %s269 = sadd.s32 %s268, 1
      %p272 = scmp.eq.s32.totalorder %s77, 1
      %p273 = scmp.ne.s32.totalorder %s268, %s270
      %p274 = scmp.eq.s32.totalorder %s77, 0
      %p275 = por %p273, %p274
      %p276 = scmp.ne.s32.totalorder %s268, %s270
      %p277 = scmp.eq.s32.totalorder %s82, 1
      %p278 = por %p276, %p277
      %p279 = scmp.ne.s32.totalorder %s270, %s271
      %p280 = scmp.eq.s32.totalorder %s82, 0
      %p281 = por %p279, %p280
      %p282 = scmp.ne.s32.totalorder %s270, %s271
      %p283 = scmp.eq.s32.totalorder %s83, 1
      %p284 = por %p282, %p283
      %p286 = scmp.ne.s32.totalorder %s271, %s285
      %p287 = scmp.eq.s32.totalorder %s83, 0
      %p288 = por %p286, %p287
      %s290 = sadd.s32 %s289, 1
      %p293 = scmp.eq.s32.totalorder %s77, 1
      %p294 = scmp.ne.s32.totalorder %s289, %s291
      %p295 = scmp.eq.s32.totalorder %s77, 0
      %p296 = por %p294, %p295
      %p297 = scmp.ne.s32.totalorder %s289, %s291
      %p298 = scmp.eq.s32.totalorder %s82, 1
      %p299 = por %p297, %p298
      %p300 = scmp.ne.s32.totalorder %s291, %s292
      %p301 = scmp.eq.s32.totalorder %s82, 0
      %p302 = por %p300, %p301
      %p303 = scmp.ne.s32.totalorder %s291, %s292
      %p304 = scmp.eq.s32.totalorder %s83, 1
      %p305 = por %p303, %p304
      %p307 = scmp.ne.s32.totalorder %s292, %s306
      %p308 = scmp.eq.s32.totalorder %s83, 0
      %p309 = por %p307, %p308
      %s311 = sadd.s32 %s310, 1
      %p314 = scmp.eq.s32.totalorder %s77, 1
      %p315 = scmp.ne.s32.totalorder %s310, %s312
      %p316 = scmp.eq.s32.totalorder %s77, 0
      %p317 = por %p315, %p316
      %p318 = scmp.ne.s32.totalorder %s310, %s312
      %p319 = scmp.eq.s32.totalorder %s82, 1
      %p320 = por %p318, %p319
      %p321 = scmp.ne.s32.totalorder %s312, %s313
      %p322 = scmp.eq.s32.totalorder %s82, 0
      %p323 = por %p321, %p322
      %p324 = scmp.ne.s32.totalorder %s312, %s313
      %p325 = scmp.eq.s32.totalorder %s83, 1
      %p326 = por %p324, %p325
      %p328 = scmp.ne.s32.totalorder %s313, %s327
      %p329 = scmp.eq.s32.totalorder %s83, 0
      %p330 = por %p328, %p329
      %s332 = sadd.s32 %s331, 1
      %p335 = scmp.eq.s32.totalorder %s77, 1
      %p336 = scmp.ne.s32.totalorder %s331, %s333
      %p337 = scmp.eq.s32.totalorder %s77, 0
      %p338 = por %p336, %p337
      %p339 = scmp.ne.s32.totalorder %s331, %s333
      %p340 = scmp.eq.s32.totalorder %s82, 1
      %p341 = por %p339, %p340
      %p342 = scmp.ne.s32.totalorder %s333, %s334
      %p343 = scmp.eq.s32.totalorder %s82, 0
      %p344 = por %p342, %p343
      %p345 = scmp.ne.s32.totalorder %s333, %s334
      %p346 = scmp.eq.s32.totalorder %s83, 1
      %p347 = por %p345, %p346
      %p349 = scmp.ne.s32.totalorder %s334, %s348
      %p350 = scmp.eq.s32.totalorder %s83, 0
      %p351 = por %p349, %p350
      %s353 = sadd.s32 %s352, 1
      %p356 = scmp.eq.s32.totalorder %s77, 1
      %p357 = scmp.ne.s32.totalorder %s352, %s354
      %p358 = scmp.eq.s32.totalorder %s77, 0
      %p359 = por %p357, %p358
      %p360 = scmp.ne.s32.totalorder %s352, %s354
      %p361 = scmp.eq.s32.totalorder %s82, 1
      %p362 = por %p360, %p361
      %p363 = scmp.ne.s32.totalorder %s354, %s355
      %p364 = scmp.eq.s32.totalorder %s82, 0
      %p365 = por %p363, %p364
      %p366 = scmp.ne.s32.totalorder %s354, %s355
      %p367 = scmp.eq.s32.totalorder %s83, 1
      %p368 = por %p366, %p367
      %p370 = scmp.ne.s32.totalorder %s355, %s369
      %p371 = scmp.eq.s32.totalorder %s83, 0
      %p372 = por %p370, %p371
      %s374 = sadd.s32 %s373, 1
      %p377 = scmp.eq.s32.totalorder %s77, 1
      %p378 = scmp.ne.s32.totalorder %s373, %s375
      %p379 = scmp.eq.s32.totalorder %s77, 0
      %p380 = por %p378, %p379
      %p381 = scmp.ne.s32.totalorder %s373, %s375
      %p382 = scmp.eq.s32.totalorder %s82, 1
      %p383 = por %p381, %p382
      %p384 = scmp.ne.s32.totalorder %s375, %s376
      %p385 = scmp.eq.s32.totalorder %s82, 0
      %p386 = por %p384, %p385
      %p387 = scmp.ne.s32.totalorder %s375, %s376
      %p388 = scmp.eq.s32.totalorder %s83, 1
      %p389 = por %p387, %p388
      %p391 = scmp.ne.s32.totalorder %s376, %s390
      %p392 = scmp.eq.s32.totalorder %s83, 0
      %p393 = por %p391, %p392
      %s395 = sadd.s32 %s394, 1
      %p398 = scmp.eq.s32.totalorder %s77, 1
      %p399 = scmp.ne.s32.totalorder %s394, %s396
      %p400 = scmp.eq.s32.totalorder %s77, 0
      %p401 = por %p399, %p400
      %p402 = scmp.ne.s32.totalorder %s394, %s396
      %p403 = scmp.eq.s32.totalorder %s82, 1
      %p404 = por %p402, %p403
      %p405 = scmp.ne.s32.totalorder %s396, %s397
      %p406 = scmp.eq.s32.totalorder %s82, 0
      %p407 = por %p405, %p406
      %p408 = scmp.ne.s32.totalorder %s396, %s397
      %p409 = scmp.eq.s32.totalorder %s83, 1
      %p410 = por %p408, %p409
      %p412 = scmp.ne.s32.totalorder %s397, %s411
      %p413 = scmp.eq.s32.totalorder %s83, 0
      %p414 = por %p412, %p413
      %s416 = sadd.s32 %s415, 1
      %p419 = scmp.eq.s32.totalorder %s77, 1
      %p420 = scmp.ne.s32.totalorder %s415, %s417
      %p421 = scmp.eq.s32.totalorder %s77, 0
      %p422 = por %p420, %p421
      %p423 = scmp.ne.s32.totalorder %s415, %s417
      %p424 = scmp.eq.s32.totalorder %s82, 1
      %p425 = por %p423, %p424
      %p426 = scmp.ne.s32.totalorder %s417, %s418
      %p427 = scmp.eq.s32.totalorder %s82, 0
      %p428 = por %p426, %p427
      %p429 = scmp.ne.s32.totalorder %s417, %s418
      %p430 = scmp.eq.s32.totalorder %s83, 1
      %p431 = por %p429, %p430
      %p433 = scmp.ne.s32.totalorder %s418, %s432
      %p434 = scmp.eq.s32.totalorder %s83, 0
      %p435 = por %p433, %p434
      %s437 = sadd.s32 %s436, 1
      %p440 = scmp.eq.s32.totalorder %s77, 1
      %p441 = scmp.ne.s32.totalorder %s436, %s438
      %p442 = scmp.eq.s32.totalorder %s77, 0
      %p443 = por %p441, %p442
      %p444 = scmp.ne.s32.totalorder %s436, %s438
      %p445 = scmp.eq.s32.totalorder %s82, 1
      %p446 = por %p444, %p445
      %p447 = scmp.ne.s32.totalorder %s438, %s439
      %p448 = scmp.eq.s32.totalorder %s82, 0
      %p449 = por %p447, %p448
      %p450 = scmp.ne.s32.totalorder %s438, %s439
      %p451 = scmp.eq.s32.totalorder %s83, 1
      %p452 = por %p450, %p451
      %p454 = scmp.ne.s32.totalorder %s439, %s453
      %p455 = scmp.eq.s32.totalorder %s83, 0
      %p456 = por %p454, %p455
      %s458 = sadd.s32 %s457, 1
      %p461 = scmp.eq.s32.totalorder %s77, 1
      %p462 = scmp.ne.s32.totalorder %s457, %s459
      %p463 = scmp.eq.s32.totalorder %s77, 0
      %p464 = por %p462, %p463
      %p465 = scmp.ne.s32.totalorder %s457, %s459
      %p466 = scmp.eq.s32.totalorder %s82, 1
      %p467 = por %p465, %p466
      %p468 = scmp.ne.s32.totalorder %s459, %s460
      %p469 = scmp.eq.s32.totalorder %s82, 0
      %p470 = por %p468, %p469
      %p471 = scmp.ne.s32.totalorder %s459, %s460
      %p472 = scmp.eq.s32.totalorder %s83, 1
      %p473 = por %p471, %p472
      %p475 = scmp.ne.s32.totalorder %s460, %s474
      %p476 = scmp.eq.s32.totalorder %s83, 0
      %p477 = por %p475, %p476
      %s479 = sadd.s32 %s478, 1
      %p482 = scmp.eq.s32.totalorder %s77, 1
      %p483 = scmp.ne.s32.totalorder %s478, %s480
      %p484 = scmp.eq.s32.totalorder %s77, 0
      %p485 = por %p483, %p484
      %p486 = scmp.ne.s32.totalorder %s478, %s480
      %p487 = scmp.eq.s32.totalorder %s82, 1
      %p488 = por %p486, %p487
      %p489 = scmp.ne.s32.totalorder %s480, %s481
      %p490 = scmp.eq.s32.totalorder %s82, 0
      %p491 = por %p489, %p490
      %p492 = scmp.ne.s32.totalorder %s480, %s481
      %p493 = scmp.eq.s32.totalorder %s83, 1
      %p494 = por %p492, %p493
      %p496 = scmp.ne.s32.totalorder %s481, %s495
      %p497 = scmp.eq.s32.totalorder %s83, 0
      %p498 = por %p496, %p497
      %s500 = sadd.s32 %s499, 1
      %p503 = scmp.eq.s32.totalorder %s77, 1
      %p504 = scmp.ne.s32.totalorder %s499, %s501
      %p505 = scmp.eq.s32.totalorder %s77, 0
      %p506 = por %p504, %p505
      %p507 = scmp.ne.s32.totalorder %s499, %s501
      %p508 = scmp.eq.s32.totalorder %s82, 1
      %p509 = por %p507, %p508
      %p510 = scmp.ne.s32.totalorder %s501, %s502
      %p511 = scmp.eq.s32.totalorder %s82, 0
      %p512 = por %p510, %p511
      %p513 = scmp.ne.s32.totalorder %s501, %s502
      %p514 = scmp.eq.s32.totalorder %s83, 1
      %p515 = por %p513, %p514
      %p517 = scmp.ne.s32.totalorder %s502, %s516
      %p518 = scmp.eq.s32.totalorder %s83, 0
      %p519 = por %p517, %p518
      %s521 = sadd.s32 %s520, 1
      %p524 = scmp.eq.s32.totalorder %s77, 1
      %p525 = scmp.ne.s32.totalorder %s520, %s522
      %p526 = scmp.eq.s32.totalorder %s77, 0
      %p527 = por %p525, %p526
      %p528 = scmp.ne.s32.totalorder %s520, %s522
      %p529 = scmp.eq.s32.totalorder %s82, 1
      %p530 = por %p528, %p529
      %p531 = scmp.ne.s32.totalorder %s522, %s523
      %p532 = scmp.eq.s32.totalorder %s82, 0
      %p533 = por %p531, %p532
      %p534 = scmp.ne.s32.totalorder %s522, %s523
      %p535 = scmp.eq.s32.totalorder %s83, 1
      %p536 = por %p534, %p535
      %p538 = scmp.ne.s32.totalorder %s523, %s537
      %p539 = scmp.eq.s32.totalorder %s83, 0
      %p540 = por %p538, %p539
      %s542 = sadd.s32 %s541, 1
      %p545 = scmp.eq.s32.totalorder %s77, 1
      %p546 = scmp.ne.s32.totalorder %s541, %s543
      %p547 = scmp.eq.s32.totalorder %s77, 0
      %p548 = por %p546, %p547
      %p549 = scmp.ne.s32.totalorder %s541, %s543
      %p550 = scmp.eq.s32.totalorder %s82, 1
      %p551 = por %p549, %p550
      %p552 = scmp.ne.s32.totalorder %s543, %s544
      %p553 = scmp.eq.s32.totalorder %s82, 0
      %p554 = por %p552, %p553
      %p555 = scmp.ne.s32.totalorder %s543, %s544
      %p556 = scmp.eq.s32.totalorder %s83, 1
      %p557 = por %p555, %p556
      %p559 = scmp.ne.s32.totalorder %s544, %s558
      %p560 = scmp.eq.s32.totalorder %s83, 0
      %p561 = por %p559, %p560
      %s563 = sadd.s32 %s562, 1
      %p566 = scmp.eq.s32.totalorder %s77, 1
      %p567 = scmp.ne.s32.totalorder %s562, %s564
      %p568 = scmp.eq.s32.totalorder %s77, 0
      %p569 = por %p567, %p568
      %p570 = scmp.ne.s32.totalorder %s562, %s564
      %p571 = scmp.eq.s32.totalorder %s82, 1
      %p572 = por %p570, %p571
      %p573 = scmp.ne.s32.totalorder %s564, %s565
      %p574 = scmp.eq.s32.totalorder %s82, 0
      %p575 = por %p573, %p574
      %p576 = scmp.ne.s32.totalorder %s564, %s565
      %p577 = scmp.eq.s32.totalorder %s83, 1
      %p578 = por %p576, %p577
      %p580 = scmp.ne.s32.totalorder %s565, %s579
      %p581 = scmp.eq.s32.totalorder %s83, 0
      %p582 = por %p580, %p581
      %s584 = sadd.s32 %s583, 1
      %p587 = scmp.eq.s32.totalorder %s77, 1
      %p588 = scmp.ne.s32.totalorder %s583, %s585
      %p589 = scmp.eq.s32.totalorder %s77, 0
      %p590 = por %p588, %p589
      %p591 = scmp.ne.s32.totalorder %s583, %s585
      %p592 = scmp.eq.s32.totalorder %s82, 1
      %p593 = por %p591, %p592
      %p594 = scmp.ne.s32.totalorder %s585, %s586
      %p595 = scmp.eq.s32.totalorder %s82, 0
      %p596 = por %p594, %p595
      %p597 = scmp.ne.s32.totalorder %s585, %s586
      %p598 = scmp.eq.s32.totalorder %s83, 1
      %p599 = por %p597, %p598
      %p601 = scmp.ne.s32.totalorder %s586, %s600
      %p602 = scmp.eq.s32.totalorder %s83, 0
      %p603 = por %p601, %p602
      %s605 = sadd.s32 %s604, 1
      %p608 = scmp.eq.s32.totalorder %s77, 1
      %p609 = scmp.ne.s32.totalorder %s604, %s606
      %p610 = scmp.eq.s32.totalorder %s77, 0
      %p611 = por %p609, %p610
      %p612 = scmp.ne.s32.totalorder %s604, %s606
      %p613 = scmp.eq.s32.totalorder %s82, 1
      %p614 = por %p612, %p613
      %p615 = scmp.ne.s32.totalorder %s606, %s607
      %p616 = scmp.eq.s32.totalorder %s82, 0
      %p617 = por %p615, %p616
      %p618 = scmp.ne.s32.totalorder %s606, %s607
      %p619 = scmp.eq.s32.totalorder %s83, 1
      %p620 = por %p618, %p619
      %p622 = scmp.ne.s32.totalorder %s607, %s621
      %p623 = scmp.eq.s32.totalorder %s83, 0
      %p624 = por %p622, %p623
      %s626 = sadd.s32 %s625, 1
      %p629 = scmp.eq.s32.totalorder %s77, 1
      %p630 = scmp.ne.s32.totalorder %s625, %s627
      %p631 = scmp.eq.s32.totalorder %s77, 0
      %p632 = por %p630, %p631
      %p633 = scmp.ne.s32.totalorder %s625, %s627
      %p634 = scmp.eq.s32.totalorder %s82, 1
      %p635 = por %p633, %p634
      %p636 = scmp.ne.s32.totalorder %s627, %s628
      %p637 = scmp.eq.s32.totalorder %s82, 0
      %p638 = por %p636, %p637
      %p639 = scmp.ne.s32.totalorder %s627, %s628
      %p640 = scmp.eq.s32.totalorder %s83, 1
      %p641 = por %p639, %p640
      %p643 = scmp.ne.s32.totalorder %s628, %s642
      %p644 = scmp.eq.s32.totalorder %s83, 0
      %p645 = por %p643, %p644
      %s647 = sadd.s32 %s646, 1
      %p650 = scmp.eq.s32.totalorder %s77, 1
      %p651 = scmp.ne.s32.totalorder %s646, %s648
      %p652 = scmp.eq.s32.totalorder %s77, 0
      %p653 = por %p651, %p652
      %p654 = scmp.ne.s32.totalorder %s646, %s648
      %p655 = scmp.eq.s32.totalorder %s82, 1
      %p656 = por %p654, %p655
      %p657 = scmp.ne.s32.totalorder %s648, %s649
      %p658 = scmp.eq.s32.totalorder %s82, 0
      %p659 = por %p657, %p658
      %p660 = scmp.ne.s32.totalorder %s648, %s649
      %p661 = scmp.eq.s32.totalorder %s83, 1
      %p662 = por %p660, %p661
      %p664 = scmp.ne.s32.totalorder %s649, %s663
      %p665 = scmp.eq.s32.totalorder %s83, 0
      %p666 = por %p664, %p665
      %s667 = ssub.s32 %s77, %s84
      %p668 = scmp.eq.s32.totalorder %s667, 0
      %s670 = sadd.s32 %s669, 1
      %s671 = scalar_select %p668, %s669, %s670
      %p674 = pneg %p668
      %p675 = scmp.eq.s32.totalorder %s77, 1
      %p676 = por %p674, %p675
      %p677 = scmp.ne.s32.totalorder %s669, %s672
      %p678 = scmp.eq.s32.totalorder %s77, 0
      %p679 = por %p677, %p678
      %p680 = scmp.ne.s32.totalorder %s669, %s672
      %p681 = scmp.eq.s32.totalorder %s82, 1
      %p682 = por %p680, %p681
      %p683 = scmp.ne.s32.totalorder %s672, %s673
      %p684 = scmp.eq.s32.totalorder %s82, 0
      %p685 = por %p683, %p684
      %p686 = scmp.ne.s32.totalorder %s672, %s673
      %p687 = scmp.eq.s32.totalorder %s83, 1
      %p688 = por %p686, %p687
      %p690 = scmp.ne.s32.totalorder %s673, %s689
      %p691 = scmp.eq.s32.totalorder %s83, 0
      %p692 = por %p690, %p691
      %s693 = ssub.s32 %s77, %s84
      %p694 = scmp.eq.s32.totalorder %s693, 0
      %s696 = sadd.s32 %s695, 1
      %s697 = scalar_select %p694, %s695, %s696
      %p700 = pneg %p694
      %p701 = scmp.eq.s32.totalorder %s77, 1
      %p702 = por %p700, %p701
      %p703 = scmp.ne.s32.totalorder %s695, %s698
      %p704 = scmp.eq.s32.totalorder %s77, 0
      %p705 = por %p703, %p704
      %p706 = scmp.ne.s32.totalorder %s695, %s698
      %p707 = scmp.eq.s32.totalorder %s82, 1
      %p708 = por %p706, %p707
      %p709 = scmp.ne.s32.totalorder %s698, %s699
      %p710 = scmp.eq.s32.totalorder %s82, 0
      %p711 = por %p709, %p710
      %p712 = scmp.ne.s32.totalorder %s698, %s699
      %p713 = scmp.eq.s32.totalorder %s83, 1
      %p714 = por %p712, %p713
      %p716 = scmp.ne.s32.totalorder %s699, %s715
      %p717 = scmp.eq.s32.totalorder %s83, 0
      %p718 = por %p716, %p717
      %s719 = ssub.s32 %s77, %s84
      %p720 = scmp.eq.s32.totalorder %s719, 0
      %s722 = sadd.s32 %s721, 1
      %s723 = scalar_select %p720, %s721, %s722
      %p726 = pneg %p720
      %p727 = scmp.eq.s32.totalorder %s77, 1
      %p728 = por %p726, %p727
      %p729 = scmp.ne.s32.totalorder %s721, %s724
      %p730 = scmp.eq.s32.totalorder %s77, 0
      %p731 = por %p729, %p730
      %p732 = scmp.ne.s32.totalorder %s721, %s724
      %p733 = scmp.eq.s32.totalorder %s82, 1
      %p734 = por %p732, %p733
      %p735 = scmp.ne.s32.totalorder %s724, %s725
      %p736 = scmp.eq.s32.totalorder %s82, 0
      %p737 = por %p735, %p736
      %p738 = scmp.ne.s32.totalorder %s724, %s725
      %p739 = scmp.eq.s32.totalorder %s83, 1
      %p740 = por %p738, %p739
      %p742 = scmp.ne.s32.totalorder %s725, %s741
      %p743 = scmp.eq.s32.totalorder %s83, 0
      %p744 = por %p742, %p743
      %s745 = ssub.s32 %s77, %s84
      %p746 = scmp.eq.s32.totalorder %s745, 0
      %s748 = sadd.s32 %s747, 1
      %s749 = scalar_select %p746, %s747, %s748
      %p752 = pneg %p746
      %p753 = scmp.eq.s32.totalorder %s77, 1
      %p754 = por %p752, %p753
      %p755 = scmp.ne.s32.totalorder %s747, %s750
      %p756 = scmp.eq.s32.totalorder %s77, 0
      %p757 = por %p755, %p756
      %p758 = scmp.ne.s32.totalorder %s747, %s750
      %p759 = scmp.eq.s32.totalorder %s82, 1
      %p760 = por %p758, %p759
      %p761 = scmp.ne.s32.totalorder %s750, %s751
      %p762 = scmp.eq.s32.totalorder %s82, 0
      %p763 = por %p761, %p762
      %p764 = scmp.ne.s32.totalorder %s750, %s751
      %p765 = scmp.eq.s32.totalorder %s83, 1
      %p766 = por %p764, %p765
      %p768 = scmp.ne.s32.totalorder %s751, %s767
      %p769 = scmp.eq.s32.totalorder %s83, 0
      %p770 = por %p768, %p769
      %p771 = scmp.le.s32.totalorder 1, %s77
      %p772 = scmp.lt.s32.totalorder %s77, 3
      %p773 = pnand %p771, %p772
      %p774 = pneg %p773
      // Predicated region
      $region9: #{forward.1} parent=5 // pred_check
        _
      $region10: #{forward.1} parent=5 // pred_check_branch
        %776 = sbr.rel (%p773) target = $region12
      $region11: #{forward.1} parent=5 // pred_region
        %s777 = ssub.s32 %s77, 1
        // Predicated region
        $region13: #{forward.1} parent=11 // pred_check
          %p778 = pneg %p176
        $region14: #{forward.1} parent=11 // pred_check_branch
          %780 = sbr.rel (%p778) target = $region16
        $region15: #{forward.1} parent=11 // pred_region
          _
        $region16: #{forward.1} parent=11 // pred_fallthru
          _
        // Predicated region
        $region17: #{forward.1} parent=11 // pred_check
          %p781 = pneg %p197
        $region18: #{forward.1} parent=11 // pred_check_branch
          %783 = sbr.rel (%p781) target = $region20
        $region19: #{forward.1} parent=11 // pred_region
          _
        $region20: #{forward.1} parent=11 // pred_fallthru
          _
        // Predicated region
        $region21: #{forward.1} parent=11 // pred_check
          %p784 = pneg %p218
        $region22: #{forward.1} parent=11 // pred_check_branch
          %786 = sbr.rel (%p784) target = $region24
        $region23: #{forward.1} parent=11 // pred_region
          %788 = vsyncadd [#allocation3], 0
          %s789 = sshll.u32 %s11, 4
          %s790 = int_to_ptr.hbm [resolvable:$true] %s789
          %s791 = sshll.u32 [#allocation2], 4
          %s792 = int_to_ptr.vmem [resolvable:$true] %s791
          %797 = dma.hbm_to_vmem [thread:$0]  %s790, 6144, %s792, [#allocation3], 192, 192, 12
        $region24: #{forward.1} parent=11 // pred_fallthru
          _
        // Predicated region
        $region25: #{forward.1} parent=11 // pred_check
          %p798 = pneg %p239
        $region26: #{forward.1} parent=11 // pred_check_branch
          %800 = sbr.rel (%p798) target = $region28
        $region27: #{forward.1} parent=11 // pred_region
          _
        $region28: #{forward.1} parent=11 // pred_fallthru
          _
        // Predicated region
        $region29: #{forward.1} parent=11 // pred_check
          %p801 = pneg %p260
        $region30: #{forward.1} parent=11 // pred_check_branch
          %803 = sbr.rel (%p801) target = $region32
        $region31: #{forward.1} parent=11 // pred_region
          _
        $region32: #{forward.1} parent=11 // pred_fallthru
          _
        // Predicated region
        $region33: #{forward.1} parent=11 // pred_check
          %p804 = pneg %p281
        $region34: #{forward.1} parent=11 // pred_check_branch
          %806 = sbr.rel (%p804) target = $region36
        $region35: #{forward.1} parent=11 // pred_region
          _
        $region36: #{forward.1} parent=11 // pred_fallthru
          _
        // Predicated region
        $region37: #{forward.1} parent=11 // pred_check
          %p807 = pneg %p302
        $region38: #{forward.1} parent=11 // pred_check_branch
          %809 = sbr.rel (%p807) target = $region40
        $region39: #{forward.1} parent=11 // pred_region
          _
        $region40: #{forward.1} parent=11 // pred_fallthru
          _
        // Predicated region
        $region41: #{forward.1} parent=11 // pred_check
          %p810 = pneg %p323
        $region42: #{forward.1} parent=11 // pred_check_branch
          %812 = sbr.rel (%p810) target = $region44
        $region43: #{forward.1} parent=11 // pred_region
          _
        $region44: #{forward.1} parent=11 // pred_fallthru
          _
        // Predicated region
        $region45: #{forward.1} parent=11 // pred_check
          %p813 = pneg %p344
        $region46: #{forward.1} parent=11 // pred_check_branch
          %815 = sbr.rel (%p813) target = $region48
        $region47: #{forward.1} parent=11 // pred_region
          _
        $region48: #{forward.1} parent=11 // pred_fallthru
          _
        // Predicated region
        $region49: #{forward.1} parent=11 // pred_check
          %p816 = pneg %p365
        $region50: #{forward.1} parent=11 // pred_check_branch
          %818 = sbr.rel (%p816) target = $region52
        $region51: #{forward.1} parent=11 // pred_region
          _
        $region52: #{forward.1} parent=11 // pred_fallthru
          _
        // Predicated region
        $region53: #{forward.1} parent=11 // pred_check
          %p819 = pneg %p386
        $region54: #{forward.1} parent=11 // pred_check_branch
          %821 = sbr.rel (%p819) target = $region56
        $region55: #{forward.1} parent=11 // pred_region
          %823 = vsyncadd [#allocation6], 0
          %s824 = sshll.u32 %s27, 4
          %s825 = int_to_ptr.hbm [resolvable:$true] %s824
          %s826 = sshll.u32 [#allocation5], 4
          %s827 = int_to_ptr.vmem [resolvable:$true] %s826
          %832 = dma.hbm_to_vmem [thread:$0]  %s825, 2048, %s827, [#allocation6], 64, 64, 4
        $region56: #{forward.1} parent=11 // pred_fallthru
          _
        // Predicated region
        $region57: #{forward.1} parent=11 // pred_check
          %p833 = pneg %p407
        $region58: #{forward.1} parent=11 // pred_check_branch
          %835 = sbr.rel (%p833) target = $region60
        $region59: #{forward.1} parent=11 // pred_region
          _
        $region60: #{forward.1} parent=11 // pred_fallthru
          _
        // Predicated region
        $region61: #{forward.1} parent=11 // pred_check
          %p836 = pneg %p428
        $region62: #{forward.1} parent=11 // pred_check_branch
          %838 = sbr.rel (%p836) target = $region64
        $region63: #{forward.1} parent=11 // pred_region
          _
        $region64: #{forward.1} parent=11 // pred_fallthru
          _
        // Predicated region
        $region65: #{forward.1} parent=11 // pred_check
          %p839 = pneg %p449
        $region66: #{forward.1} parent=11 // pred_check_branch
          %841 = sbr.rel (%p839) target = $region68
        $region67: #{forward.1} parent=11 // pred_region
          _
        $region68: #{forward.1} parent=11 // pred_fallthru
          _
        // Predicated region
        $region69: #{forward.1} parent=11 // pred_check
          %p842 = pneg %p470
        $region70: #{forward.1} parent=11 // pred_check_branch
          %844 = sbr.rel (%p842) target = $region72
        $region71: #{forward.1} parent=11 // pred_region
          _
        $region72: #{forward.1} parent=11 // pred_fallthru
          _
        // Predicated region
        $region73: #{forward.1} parent=11 // pred_check
          %p845 = pneg %p491
        $region74: #{forward.1} parent=11 // pred_check_branch
          %847 = sbr.rel (%p845) target = $region76
        $region75: #{forward.1} parent=11 // pred_region
          _
        $region76: #{forward.1} parent=11 // pred_fallthru
          _
        // Predicated region
        $region77: #{forward.1} parent=11 // pred_check
          %p848 = pneg %p512
        $region78: #{forward.1} parent=11 // pred_check_branch
          %850 = sbr.rel (%p848) target = $region80
        $region79: #{forward.1} parent=11 // pred_region
          %852 = vsyncadd [#allocation6], 0
          %s853 = sshll.u32 %s39, 4
          %s854 = int_to_ptr.hbm [resolvable:$true] %s853
          %s855 = sshll.u32 [#allocation7], 4
          %s856 = int_to_ptr.vmem [resolvable:$true] %s855
          %861 = dma.hbm_to_vmem [thread:$0]  %s854, 1024, %s856, [#allocation6], 64, 64, 4
        $region80: #{forward.1} parent=11 // pred_fallthru
          _
        // Predicated region
        $region81: #{forward.1} parent=11 // pred_check
          %p862 = pneg %p533
        $region82: #{forward.1} parent=11 // pred_check_branch
          %864 = sbr.rel (%p862) target = $region84
        $region83: #{forward.1} parent=11 // pred_region
          _
        $region84: #{forward.1} parent=11 // pred_fallthru
          _
        // Predicated region
        $region85: #{forward.1} parent=11 // pred_check
          %p865 = pneg %p554
        $region86: #{forward.1} parent=11 // pred_check_branch
          %867 = sbr.rel (%p865) target = $region88
        $region87: #{forward.1} parent=11 // pred_region
          _
        $region88: #{forward.1} parent=11 // pred_fallthru
          _
        // Predicated region
        $region89: #{forward.1} parent=11 // pred_check
          %p868 = pneg %p575
        $region90: #{forward.1} parent=11 // pred_check_branch
          %870 = sbr.rel (%p868) target = $region92
        $region91: #{forward.1} parent=11 // pred_region
          _
        $region92: #{forward.1} parent=11 // pred_fallthru
          _
        // Predicated region
        $region93: #{forward.1} parent=11 // pred_check
          %p871 = pneg %p596
        $region94: #{forward.1} parent=11 // pred_check_branch
          %873 = sbr.rel (%p871) target = $region96
        $region95: #{forward.1} parent=11 // pred_region
          %875 = vsyncadd [#allocation9], 0
          %s876 = sshll.u32 %s47, 4
          %s877 = int_to_ptr.hbm [resolvable:$true] %s876
          %s878 = sshll.u32 [#allocation8], 4
          %s879 = int_to_ptr.vmem [resolvable:$true] %s878
          %884 = dma.hbm_to_vmem [thread:$0]  %s877, 1024, %s879, [#allocation9], 64, 64, 4
        $region96: #{forward.1} parent=11 // pred_fallthru
          _
        // Predicated region
        $region97: #{forward.1} parent=11 // pred_check
          %p885 = pneg %p617
        $region98: #{forward.1} parent=11 // pred_check_branch
          %887 = sbr.rel (%p885) target = $region100
        $region99: #{forward.1} parent=11 // pred_region
          _
        $region100: #{forward.1} parent=11 // pred_fallthru
          _
        // Predicated region
        $region101: #{forward.1} parent=11 // pred_check
          %p888 = pneg %p638
        $region102: #{forward.1} parent=11 // pred_check_branch
          %890 = sbr.rel (%p888) target = $region104
        $region103: #{forward.1} parent=11 // pred_region
          %892 = vsyncadd [#allocation9], 0
          %s893 = sshll.u32 %s51, 4
          %s894 = int_to_ptr.hbm [resolvable:$true] %s893
          %s895 = sshll.u32 [#allocation10], 4
          %s896 = int_to_ptr.vmem [resolvable:$true] %s895
          %901 = dma.hbm_to_vmem [thread:$0]  %s894, 1024, %s896, [#allocation9], 64, 64, 4
        $region104: #{forward.1} parent=11 // pred_fallthru
          _
        // Predicated region
        $region105: #{forward.1} parent=11 // pred_check
          %p902 = pneg %p659
        $region106: #{forward.1} parent=11 // pred_check_branch
          %904 = sbr.rel (%p902) target = $region108
        $region107: #{forward.1} parent=11 // pred_region
          _
        $region108: #{forward.1} parent=11 // pred_fallthru
          _
      $region12: #{forward.1} parent=5 // pred_fallthru
        _
      %p905 = scmp.lt.s32.totalorder %s77, 2
      // Predicated region
      $region109: #{forward.1} parent=5 // pred_check
        %p906 = pneg %p905
      $region110: #{forward.1} parent=5 // pred_check_branch
        %908 = sbr.rel (%p906) target = $region112
      $region111: #{forward.1} parent=5 // pred_region
        // Predicated region
        $region113: #{forward.1} parent=111 // pred_check
          %p909 = pneg %p97
        $region114: #{forward.1} parent=111 // pred_check_branch
          %911 = sbr.rel (%p909) target = $region116
        $region115: #{forward.1} parent=111 // pred_region
          %p912 = scmp.lt.s32.totalorder %s77, 1
          %s913 = scalar_select %p912, %s77, 1
          %s914 = smul.addr %s913, 8
          %s915 = scalar_lea.vmem %s1, %s914
        $region116: #{forward.1} parent=111 // pred_fallthru
          _
        // Predicated region
        $region117: #{forward.1} parent=111 // pred_check
          %p916 = pneg %p123
        $region118: #{forward.1} parent=111 // pred_check_branch
          %918 = sbr.rel (%p916) target = $region120
        $region119: #{forward.1} parent=111 // pred_region
          %p919 = scmp.lt.s32.totalorder %s77, 1
          %s920 = scalar_select %p919, %s77, 1
          %s921 = scalar_lea.vmem %s3, %s920
        $region120: #{forward.1} parent=111 // pred_fallthru
          _
        // Predicated region
        $region121: #{forward.1} parent=111 // pred_check
          %p922 = pneg %p149
        $region122: #{forward.1} parent=111 // pred_check_branch
          %924 = sbr.rel (%p922) target = $region124
        $region123: #{forward.1} parent=111 // pred_region
          %p925 = scmp.lt.s32.totalorder %s77, 1
          %s926 = scalar_select %p925, %s77, 1
          %s927 = smul.addr %s926, 8
          %s928 = scalar_lea.vmem %s5, %s927
        $region124: #{forward.1} parent=111 // pred_fallthru
          _
      $region112: #{forward.1} parent=5 // pred_fallthru
        _
      %p929 = scmp.le.s32.totalorder 1, %s77
      %p930 = scmp.lt.s32.totalorder %s77, 3
      %p931 = pnand %p929, %p930
      %p932 = pneg %p931
      // Predicated region
      $region125: #{forward.1} parent=5 // pred_check
        _
      $region126: #{forward.1} parent=5 // pred_check_branch
        %934 = sbr.rel (%p931) target = $region128
      $region127: #{forward.1} parent=5 // pred_region
        %s935 = ssub.s32 %s77, 1
        // Predicated region
        $region129: #{forward.1} parent=127 // pred_check
          %p936 = pneg %p218
        $region130: #{forward.1} parent=127 // pred_check_branch
          %938 = sbr.rel (%p936) target = $region132
        $region131: #{forward.1} parent=127 // pred_region
          %940 = dma.done [#allocation3], 6144
        $region132: #{forward.1} parent=127 // pred_fallthru
          _
        // Predicated region
        $region133: #{forward.1} parent=127 // pred_check
          %p941 = pneg %p386
        $region134: #{forward.1} parent=127 // pred_check_branch
          %943 = sbr.rel (%p941) target = $region136
        $region135: #{forward.1} parent=127 // pred_region
          %945 = dma.done [#allocation6], 2048
        $region136: #{forward.1} parent=127 // pred_fallthru
          _
        // Predicated region
        $region137: #{forward.1} parent=127 // pred_check
          %p946 = pneg %p512
        $region138: #{forward.1} parent=127 // pred_check_branch
          %948 = sbr.rel (%p946) target = $region140
        $region139: #{forward.1} parent=127 // pred_region
          %950 = dma.done [#allocation6], 1024
        $region140: #{forward.1} parent=127 // pred_fallthru
          _
        // Predicated region
        $region141: #{forward.1} parent=127 // pred_check
          %p951 = pneg %p596
        $region142: #{forward.1} parent=127 // pred_check_branch
          %953 = sbr.rel (%p951) target = $region144
        $region143: #{forward.1} parent=127 // pred_region
          %955 = dma.done [#allocation9], 1024
        $region144: #{forward.1} parent=127 // pred_fallthru
          _
        // Predicated region
        $region145: #{forward.1} parent=127 // pred_check
          %p956 = pneg %p638
        $region146: #{forward.1} parent=127 // pred_check_branch
          %958 = sbr.rel (%p956) target = $region148
        $region147: #{forward.1} parent=127 // pred_region
          %960 = dma.done [#allocation9], 1024
        $region148: #{forward.1} parent=127 // pred_fallthru
          _
        %p961 = scmp.lt.s32.totalorder %s82, 1
        %s962 = scalar_select %p961, %s82, 1
        %s963 = smul.addr %s962, 8
        %s964 = scalar_lea.vmem %s1, %s963
        %p965 = pneg %p103
        %p966 = pneg %p100
        %p967 = scmp.lt.s32.totalorder %s82, 1
        %s968 = scalar_select %p967, %s82, 1
        %s969 = scalar_lea.vmem %s3, %s968
        %p970 = pneg %p129
        %p971 = pneg %p126
        %p972 = scmp.lt.s32.totalorder %s82, 1
        %s973 = scalar_select %p972, %s82, 1
        %s974 = smul.addr %s973, 8
        %s975 = scalar_lea.vmem %s5, %s974
        %p976 = pneg %p155
        %p977 = pneg %p152
        %p978 = pneg %p176
        %p979 = pneg %p173
        %p980 = pneg %p197
        %p981 = pneg %p194
        %p982 = pneg %p218
        %p983 = pneg %p215
        %p984 = pneg %p239
        %p985 = pneg %p236
        %p986 = pneg %p260
        %p987 = pneg %p257
        %p988 = pneg %p281
        %p989 = pneg %p278
        %p990 = pneg %p302
        %p991 = pneg %p299
        %p992 = pneg %p323
        %p993 = pneg %p320
        %p994 = pneg %p344
        %p995 = pneg %p341
        %p996 = pneg %p365
        %p997 = pneg %p362
        %p998 = pneg %p386
        %p999 = pneg %p383
        %p1000 = pneg %p407
        %p1001 = pneg %p404
        %p1002 = pneg %p428
        %p1003 = pneg %p425
        %p1004 = pneg %p449
        %p1005 = pneg %p446
        %p1006 = pneg %p470
        %p1007 = pneg %p467
        %p1008 = pneg %p491
        %p1009 = pneg %p488
        %p1010 = pneg %p512
        %p1011 = pneg %p509
        %p1012 = pneg %p533
        %p1013 = pneg %p530
        %p1014 = pneg %p554
        %p1015 = pneg %p551
        %p1016 = pneg %p575
        %p1017 = pneg %p572
        %p1018 = pneg %p596
        %p1019 = pneg %p593
        %p1020 = pneg %p617
        %p1021 = pneg %p614
        %p1022 = pneg %p638
        %p1023 = pneg %p635
        %p1024 = pneg %p659
        %p1025 = pneg %p656
        %p1026 = pneg %p685
        %p1027 = pneg %p682
        %s1028 = sand.u32 %s672, 1
        %s1029 = scalar_lea.sflag [#allocation4], %s1028
        %s1030 = sand.u32 %s672, 1
        %s1031 = smul.addr %s1030, 8
        %s1032 = scalar_lea.vmem [#allocation11], %s1031
        %p1033 = pneg %p711
        %p1034 = pneg %p708
        %s1035 = sand.u32 %s698, 1
        %s1036 = scalar_lea.sflag [#allocation13], %s1035
        %s1037 = sand.u32 %s698, 1
        %s1038 = scalar_lea.vmem [#allocation12], %s1037
        %p1039 = pneg %p737
        %p1040 = pneg %p734
        %p1041 = scmp.lt.s32.totalorder %s82, 1
        %s1042 = scalar_select %p1041, %s82, 1
        %s1043 = scalar_lea.vmem %s59, %s1042
        %p1044 = pneg %p763
        %p1045 = pneg %p760
        %p1046 = scmp.lt.s32.totalorder %s82, 1
        %s1047 = scalar_select %p1046, %s82, 1
        %s1048 = scalar_lea.vmem %s61, %s1047
        %p1049 = scmp.lt.s32.totalorder %s82, 1
        %s1050 = scalar_select %p1049, %s82, 1
        %s1051 = smul.addr %s1050, 8
        %s1052 = scalar_lea.vmem %s1, %s1051
        %p1053 = scmp.lt.s32.totalorder %s82, 1
        %s1054 = scalar_select %p1053, %s82, 1
        %s1055 = scalar_lea.vmem %s3, %s1054
        %p1056 = scmp.lt.s32.totalorder %s82, 1
        %s1057 = scalar_select %p1056, %s82, 1
        %s1058 = smul.addr %s1057, 8
        %s1059 = scalar_lea.vmem %s5, %s1058
        %p1060 = scmp.lt.s32.totalorder %s82, 1
        %s1061 = scalar_select %p1060, %s82, 1
        %s1062 = scalar_lea.vmem %s59, %s1061
        %p1063 = scmp.lt.s32.totalorder %s82, 1
        %s1064 = scalar_select %p1063, %s82, 1
        %s1065 = scalar_lea.vmem %s61, %s1064
        %v1066 = vlaneseq
        %v1067 = vand.u32 %v1066, 127
        %vm1068 = vcmp.lt.s32.totalorder %v1067, 32
        %v1069 = vsel %vm1068, 1, 0
        %v1070 = vcvt.s32.f32 %v1069
        %v1071 = vld [vmem:[%s1052] sm:$0xff]
        %v1072 = vld [vmem:[%s1055] sm:$0x1]
        %v1073 = vld [vmem:[%s7] sm:$0x1]
        %v1074 = vld [vmem:[%s9] sm:$0x1]
        %1075 = vadd.xlane.f32.xlu0 %v1071
        %v1076 = vpop.xlane.xlu0 %1075
        %v1077 = vmul.f32 %v1076, 0.03125
        %v1078 = vsub.f32 %v1071, %v1077
        %v1079 = vmul.f32 %v1078, %v1070
        %v1080 = vmul.f32 %v1079, %v1079
        %1081 = vadd.xlane.f32.xlu0 %v1080
        %v1082 = vpop.xlane.xlu0 %1081
        %v1083 = vmul.f32 %v1082, 0.03125
        %v1084 = vadd.f32 %v1083, 1e-12
        %v1085 = vrsqrt.pop %v1084
        %v1086 = vmul.f32 %v1085, %v1084
        %v1087 = vmul.f32 %v1086, %v1085
        %v1088 = vmul.f32 0.5, %v1087
        %v1089 = vsub.f32 1.5, %v1088
        %v1090 = vmul.f32 %v1085, %v1089
        %vm1091 = vweird.f32 %v1084
        %vm1092 = vweird.f32 %v1085
        %vm1093 = vmor %vm1091, %vm1092
        %v1094 = vsel %vm1093, %v1085, %v1090
        %v1095 = vmul.f32 %v1079, %v1094
        %v1097 = vperm.slane %v1073, 0
        %v1099 = vmul.f32 %v1095, %v1097
        %v1101 = vperm.slane %v1074, 0
        %v1103 = vadd.f32 %v1099, %v1101
        %v1104 = vpack.c.bf16 %v1103, %v1103
        %v1105 = vld [vmem:[#allocation2] sm:$0xff]
        %v1106 = vld [vmem:[#allocation2 + $0x8] sm:$0xf]
        %v1107 = vld [vmem:[#allocation2 + $0xc] sm:$0xff]
        %v1108 = vld [vmem:[#allocation2 + $0x14] sm:$0xf]
        %v1109 = vld [vmem:[#allocation2 + $0x18] sm:$0xff]
        %v1110 = vld [vmem:[#allocation2 + $0x20] sm:$0xf]
        %v1111 = vld [vmem:[#allocation2 + $0x24] sm:$0xff]
        %v1112 = vld [vmem:[#allocation2 + $0x2c] sm:$0xf]
        %v1113 = vld [vmem:[#allocation2 + $0x30] sm:$0xff]
        %v1114 = vld [vmem:[#allocation2 + $0x38] sm:$0xf]
        %v1115 = vld [vmem:[#allocation2 + $0x3c] sm:$0xff]
        %v1116 = vld [vmem:[#allocation2 + $0x44] sm:$0xf]
        %v1117 = vld [vmem:[#allocation2 + $0x48] sm:$0xff]
        %v1118 = vld [vmem:[#allocation2 + $0x50] sm:$0xf]
        %v1119 = vld [vmem:[#allocation2 + $0x54] sm:$0xff]
        %v1120 = vld [vmem:[#allocation2 + $0x5c] sm:$0xf]
        %v1121 = vld [vmem:[#allocation2 + $0x60] sm:$0xff]
        %v1122 = vld [vmem:[#allocation2 + $0x68] sm:$0xf]
        %v1123 = vld [vmem:[#allocation2 + $0x6c] sm:$0xff]
        %v1124 = vld [vmem:[#allocation2 + $0x74] sm:$0xf]
        %v1125 = vld [vmem:[#allocation2 + $0x78] sm:$0xff]
        %v1126 = vld [vmem:[#allocation2 + $0x80] sm:$0xf]
        %v1127 = vld [vmem:[#allocation2 + $0x84] sm:$0xff]
        %v1128 = vld [vmem:[#allocation2 + $0x8c] sm:$0xf]
        %v1129 = vld [vmem:[#allocation2 + $0x90] sm:$0xff]
        %v1130 = vld [vmem:[#allocation2 + $0x98] sm:$0xf]
        %v1131 = vld [vmem:[#allocation2 + $0x9c] sm:$0xff]
        %v1132 = vld [vmem:[#allocation2 + $0xa4] sm:$0xf]
        %v1133 = vld [vmem:[#allocation2 + $0xa8] sm:$0xff]
        %v1134 = vld [vmem:[#allocation2 + $0xb0] sm:$0xf]
        %v1135 = vld [vmem:[#allocation2 + $0xb4] sm:$0xff]
        %v1136 = vld [vmem:[#allocation2 + $0xbc] sm:$0xf]
        %v1137 = vld [vmem:[%s13] sm:$0x7]
        %v1139 = vperm.slane %v1137, 0
        %v1140 = vperm.slane %v1137, 1
        %v1141 = vperm.slane %v1137, 2
        %v1177 = vunpack.c.l.b16 %v1105
        %v1178 = vunpack.c.h.b16 %v1105
        %v1179 = vunpack.c.l.b16 %v1106
        %v1180 = vunpack.c.l.b16 %v1107
        %v1181 = vunpack.c.h.b16 %v1107
        %v1182 = vunpack.c.l.b16 %v1108
        %v1183 = vunpack.c.l.b16 %v1109
        %v1184 = vunpack.c.h.b16 %v1109
        %v1185 = vunpack.c.l.b16 %v1110
        %v1186 = vunpack.c.l.b16 %v1111
        %v1187 = vunpack.c.h.b16 %v1111
        %v1188 = vunpack.c.l.b16 %v1112
        %v1189 = vunpack.c.l.b16 %v1113
        %v1190 = vunpack.c.h.b16 %v1113
        %v1191 = vunpack.c.l.b16 %v1114
        %v1192 = vunpack.c.l.b16 %v1115
        %v1193 = vunpack.c.h.b16 %v1115
        %v1194 = vunpack.c.l.b16 %v1116
        %v1195 = vunpack.c.l.b16 %v1117
        %v1196 = vunpack.c.h.b16 %v1117
        %v1197 = vunpack.c.l.b16 %v1118
        %v1198 = vunpack.c.l.b16 %v1119
        %v1199 = vunpack.c.h.b16 %v1119
        %v1200 = vunpack.c.l.b16 %v1120
        %v1201 = vunpack.c.l.b16 %v1121
        %v1202 = vunpack.c.h.b16 %v1121
        %v1203 = vunpack.c.l.b16 %v1122
        %v1204 = vunpack.c.l.b16 %v1123
        %v1205 = vunpack.c.h.b16 %v1123
        %v1206 = vunpack.c.l.b16 %v1124
        %v1207 = vunpack.c.l.b16 %v1125
        %v1208 = vunpack.c.h.b16 %v1125
        %v1209 = vunpack.c.l.b16 %v1126
        %v1210 = vunpack.c.l.b16 %v1127
        %v1211 = vunpack.c.h.b16 %v1127
        %v1212 = vunpack.c.l.b16 %v1128
        %v1213 = vunpack.c.l.b16 %v1129
        %v1214 = vunpack.c.h.b16 %v1129
        %v1215 = vunpack.c.l.b16 %v1130
        %v1216 = vunpack.c.l.b16 %v1131
        %v1217 = vunpack.c.h.b16 %v1131
        %v1218 = vunpack.c.l.b16 %v1132
        %v1219 = vunpack.c.l.b16 %v1133
        %v1220 = vunpack.c.h.b16 %v1133
        %v1221 = vunpack.c.l.b16 %v1134
        %v1222 = vunpack.c.l.b16 %v1135
        %v1223 = vunpack.c.h.b16 %v1135
        %v1224 = vunpack.c.l.b16 %v1136
        %v1225 = vpack.c.b16 %v1180, %v1177
        %v1226 = vpack.c.b16 %v1181, %v1178
        %v1227 = vpack.c.b16 %v1182, %v1179
        %v1228 = vpack.c.b16 %v1186, %v1183
        %v1229 = vpack.c.b16 %v1187, %v1184
        %v1230 = vpack.c.b16 %v1188, %v1185
        %v1231 = vpack.c.b16 %v1192, %v1189
        %v1232 = vpack.c.b16 %v1193, %v1190
        %v1233 = vpack.c.b16 %v1194, %v1191
        %v1234 = vpack.c.b16 %v1198, %v1195
        %v1235 = vpack.c.b16 %v1199, %v1196
        %v1236 = vpack.c.b16 %v1200, %v1197
        %v1237 = vpack.c.b16 %v1204, %v1201
        %v1238 = vpack.c.b16 %v1205, %v1202
        %v1239 = vpack.c.b16 %v1206, %v1203
        %v1240 = vpack.c.b16 %v1210, %v1207
        %v1241 = vpack.c.b16 %v1211, %v1208
        %v1242 = vpack.c.b16 %v1212, %v1209
        %v1243 = vpack.c.b16 %v1216, %v1213
        %v1244 = vpack.c.b16 %v1217, %v1214
        %v1245 = vpack.c.b16 %v1218, %v1215
        %v1246 = vpack.c.b16 %v1222, %v1219
        %v1247 = vpack.c.b16 %v1223, %v1220
        %v1248 = vpack.c.b16 %v1224, %v1221
        %1273 = vmatpush.bf16.msra.mxu0 %v1246
        %1274 = vmatpush.bf16.msra.mxu0 %v1243
        %1275 = vmatpush.bf16.msra.mxu0 %v1240
        %1276 = vmatpush.bf16.msra.mxu0 %v1237
        %1277 = vmatpush.bf16.msra.mxu0 %v1234
        %1278 = vmatpush.bf16.msra.mxu0 %v1231
        %1279 = vmatpush.bf16.msra.mxu0 %v1228
        %1280 = vmatpush.bf16.msra.mxu0 %v1225
        %1281 = vmatmul.bf16.gmra.mxu0 %v1104
        %v1282 = vpop.f32.mrf.mxu0
        %v1283 = vadd.f32 %v1139, %v1282
        %v1284 = vpop.f32.mrf.mxu0
        %1285 = vdwg.mxu0
        %1286 = vmatpush.bf16.msra.mxu0 %v1247
        %1287 = vmatpush.bf16.msra.mxu0 %v1244
        %1288 = vmatpush.bf16.msra.mxu0 %v1241
        %1289 = vmatpush.bf16.msra.mxu0 %v1238
        %1290 = vmatpush.bf16.msra.mxu0 %v1235
        %1291 = vmatpush.bf16.msra.mxu0 %v1232
        %1292 = vmatpush.bf16.msra.mxu0 %v1229
        %1293 = vmatpush.bf16.msra.mxu0 %v1226
        %1294 = vmatmul.bf16.gmra.mxu0 %v1104
        %v1295 = vpop.f32.mrf.mxu0
        %v1296 = vadd.f32 %v1140, %v1295
        %v1297 = vpop.f32.mrf.mxu0
        %1298 = vdwg.mxu0
        %1299 = vmatpush.bf16.msra.mxu0 %v1248
        %1300 = vmatpush.bf16.msra.mxu0 %v1245
        %1301 = vmatpush.bf16.msra.mxu0 %v1242
        %1302 = vmatpush.bf16.msra.mxu0 %v1239
        %1303 = vmatpush.bf16.msra.mxu0 %v1236
        %1304 = vmatpush.bf16.msra.mxu0 %v1233
        %1305 = vmatpush.bf16.msra.mxu0 %v1230
        %1306 = vmatpush.bf16.msra.mxu0 %v1227
        %1307 = vmatmul.bf16.gmra.mxu0 %v1104
        %v1308 = vpop.f32.mrf.mxu0
        %v1309 = vadd.f32 %v1141, %v1308
        %v1310 = vpop.f32.mrf.mxu0
        %1311 = vdwg.mxu0
        %vm1312 = vcmask 64512
        %v1314 = vsel %vm1312, %v1283, 0
        %v1317 = vsel %vm1312, %v1296, 0
        %1319 = vmatpush.xpose.msra.mxu0 0.0
        %1320 = vmatpush.xpose.msra.mxu0 0.0
        %1321 = vmatpush.xpose.msra.mxu0 0.0
        %1322 = vmatpush.xpose.msra.mxu0 0.0
        %1323 = vmatpush.xpose.msra.mxu0 0.0
        %1324 = vmatpush.xpose.msra.mxu0 0.0
        %1325 = vmatpush.xpose.msra.mxu0 0.0
        %1326 = vmatpush.xpose.msra.mxu0 0.0
        %1327 = vmatpush.xpose.msra.mxu0 0.0
        %1328 = vmatpush.xpose.msra.mxu0 0.0
        %1329 = vmatpush.xpose.msra.mxu0 0.0
        %1330 = vmatpush.xpose.msra.mxu0 0.0
        %1331 = vmatpush.xpose.msra.mxu0 0.0
        %1332 = vmatpush.xpose.msra.mxu0 0.0
        %1333 = vmatpush.xpose.msra.mxu0 0.0
        %1334 = vmatpush.xpose.msra.mxu0 %v1317
        %1335 = vmatmul.f32.gmra.mxu0 %v1314
        %v1336 = vpop.f32.mrf.mxu0
        %v1337 = vadd.f32 0.0, %v1336
        %1338 = vdwg.mxu0
        %v1339 = vmul.f32 %v1337, 0.35355338
        %v1341 = vperm.slane %v1072, 0
        %v1343 = vadd.f32 %v1339, %v1341
        %v1344 = vsel %vm1312, %v1343, -inf
        %1345 = vmax.xlane.f32.xlu0 %v1344
        %v1346 = vpop.xlane.xlu0 %1345
        %v1347 = vsub.f32 %v1343, %v1346
        %v1348 = vmul.f32 %v1347, 1.442695
        %v1349 = vpow.pop %v1348
        %v1350 = vsel %vm1312, %v1349, 0.0
        %1351 = vadd.xlane.f32.xlu0 %v1350
        %v1352 = vpop.xlane.xlu0 %1351
        %v1353 = vrcp.pop %v1352
        %v1354 = vmul.f32 %v1352, %v1353
        %v1355 = vsub.f32 1.0, %v1354
        %v1356 = vmul.f32 %v1353, %v1355
        %v1357 = vadd.f32 %v1353, %v1356
        %vm1358 = vweird.f32 %v1352
        %vm1359 = vweird.f32 %v1353
        %vm1360 = vmor %vm1358, %vm1359
        %v1361 = vsel %vm1360, %v1353, %v1357
        %v1362 = vand.u32 2147483647, %v1352
        %vm1363 = vcmp.eq.f32.partialorder %v1362, 8.507059e+37
        %v1364 = vand.u32 %v1352, 2147483648
        %v1365 = vor.u32 1.1754944e-38, %v1364
        %v1366 = vsel %vm1363, %v1365, %v1361
        %v1367 = vmul.f32 %v1349, %v1366
        %v1369 = vsel %vm1312, %v1367, 0
        %1371 = vmatpush.msra.mxu0 0.0
        %1372 = vmatpush.msra.mxu0 0.0
        %1373 = vmatpush.msra.mxu0 0.0
        %1374 = vmatpush.msra.mxu0 0.0
        %1375 = vmatpush.msra.mxu0 0.0
        %1376 = vmatpush.msra.mxu0 0.0
        %1377 = vmatpush.msra.mxu0 0.0
        %1378 = vmatpush.msra.mxu0 0.0
        %1379 = vmatpush.msra.mxu0 0.0
        %1380 = vmatpush.msra.mxu0 0.0
        %1381 = vmatpush.msra.mxu0 0.0
        %1382 = vmatpush.msra.mxu0 0.0
        %1383 = vmatpush.msra.mxu0 0.0
        %1384 = vmatpush.msra.mxu0 0.0
        %1385 = vmatpush.msra.mxu0 0.0
        %1386 = vmatpush.msra.mxu0 %v1309
        %1387 = vmatmul.f32.gmra.mxu0 %v1369
        %v1388 = vpop.f32.mrf.mxu0
        %v1389 = vadd.f32 0.0, %v1388
        %1390 = vdwg.mxu0
        %v1391 = vld [vmem:[%s15] sm:$0xf]
        %v1392 = vunpack.c.l.bf16 %v1391
        %1393 = vrot.lane.b32.xlu0 %v1283, 120
        %v1394 = vpop.permute.xlu0 %1393
        %1395 = vrot.lane.b32.xlu0 %v1296, 120
        %v1396 = vpop.permute.xlu0 %1395
        %v1397 = vsel %vm1312, %v1394, 0
        %v1399 = vsel %vm1312, %v1396, 0
        %1401 = vmatpush.xpose.msra.mxu0 0.0
        %1402 = vmatpush.xpose.msra.mxu0 0.0
        %1403 = vmatpush.xpose.msra.mxu0 0.0
        %1404 = vmatpush.xpose.msra.mxu0 0.0
        %1405 = vmatpush.xpose.msra.mxu0 0.0
        %1406 = vmatpush.xpose.msra.mxu0 0.0
        %1407 = vmatpush.xpose.msra.mxu0 0.0
        %1408 = vmatpush.xpose.msra.mxu0 0.0
        %1409 = vmatpush.xpose.msra.mxu0 0.0
        %1410 = vmatpush.xpose.msra.mxu0 0.0
        %1411 = vmatpush.xpose.msra.mxu0 0.0
        %1412 = vmatpush.xpose.msra.mxu0 0.0
        %1413 = vmatpush.xpose.msra.mxu0 0.0
        %1414 = vmatpush.xpose.msra.mxu0 0.0
        %1415 = vmatpush.xpose.msra.mxu0 0.0
        %1416 = vmatpush.xpose.msra.mxu0 %v1399
        %1417 = vmatmul.f32.gmra.mxu0 %v1397
        %v1418 = vpop.f32.mrf.mxu0
        %v1419 = vadd.f32 0.0, %v1418
        %1420 = vdwg.mxu0
        %v1421 = vmul.f32 %v1419, 0.35355338
        %v1422 = vadd.f32 %v1421, %v1341
        %v1423 = vsel %vm1312, %v1422, -inf
        %1424 = vmax.xlane.f32.xlu0 %v1423
        %v1425 = vpop.xlane.xlu0 %1424
        %v1426 = vsub.f32 %v1422, %v1425
        %v1427 = vmul.f32 %v1426, 1.442695
        %v1428 = vpow.pop %v1427
        %v1429 = vsel %vm1312, %v1428, 0.0
        %1430 = vadd.xlane.f32.xlu0 %v1429
        %v1431 = vpop.xlane.xlu0 %1430
        %v1432 = vrcp.pop %v1431
        %v1433 = vmul.f32 %v1431, %v1432
        %v1434 = vsub.f32 1.0, %v1433
        %v1435 = vmul.f32 %v1432, %v1434
        %v1436 = vadd.f32 %v1432, %v1435
        %vm1437 = vweird.f32 %v1431
        %vm1438 = vweird.f32 %v1432
        %vm1439 = vmor %vm1437, %vm1438
        %v1440 = vsel %vm1439, %v1432, %v1436
        %v1441 = vand.u32 2147483647, %v1431
        %vm1442 = vcmp.eq.f32.partialorder %v1441, 8.507059e+37
        %v1443 = vand.u32 %v1431, 2147483648
        %v1444 = vor.u32 1.1754944e-38, %v1443
        %v1445 = vsel %vm1442, %v1444, %v1440
        %v1446 = vmul.f32 %v1428, %v1445
        %1448 = vrot.lane.b32.xlu0 %v1309, 120
        %v1449 = vpop.permute.xlu0 %1448
        %v1452 = vsel %vm1312, %v1446, 0
        %1454 = vmatpush.msra.mxu0 0.0
        %1455 = vmatpush.msra.mxu0 0.0
        %1456 = vmatpush.msra.mxu0 0.0
        %1457 = vmatpush.msra.mxu0 0.0
        %1458 = vmatpush.msra.mxu0 0.0
        %1459 = vmatpush.msra.mxu0 0.0
        %1460 = vmatpush.msra.mxu0 0.0
        %1461 = vmatpush.msra.mxu0 0.0
        %1462 = vmatpush.msra.mxu0 0.0
        %1463 = vmatpush.msra.mxu0 0.0
        %1464 = vmatpush.msra.mxu0 0.0
        %1465 = vmatpush.msra.mxu0 0.0
        %1466 = vmatpush.msra.mxu0 0.0
        %1467 = vmatpush.msra.mxu0 0.0
        %1468 = vmatpush.msra.mxu0 0.0
        %1469 = vmatpush.msra.mxu0 %v1449
        %1470 = vmatmul.f32.gmra.mxu0 %v1452
        %v1471 = vpop.f32.mrf.mxu0
        %v1472 = vadd.f32 0.0, %v1471
        %1473 = vdwg.mxu0
        %v1474 = vld [vmem:[%s15 + $0x4] sm:$0xf]
        %v1475 = vunpack.c.l.bf16 %v1474
        %v1477 = vsel %vm1312, %v1472, 0
        %1479 = vmatpush.msra.mxu0 0.0
        %1480 = vmatpush.msra.mxu0 0.0
        %1481 = vmatpush.msra.mxu0 0.0
        %1482 = vmatpush.msra.mxu0 0.0
        %1483 = vmatpush.msra.mxu0 0.0
        %1484 = vmatpush.msra.mxu0 0.0
        %1485 = vmatpush.msra.mxu0 0.0
        %1486 = vmatpush.msra.mxu0 0.0
        %1487 = vmatpush.msra.mxu0 0.0
        %1488 = vmatpush.msra.mxu0 0.0
        %1489 = vmatpush.msra.mxu0 0.0
        %1490 = vmatpush.msra.mxu0 0.0
        %1491 = vmatpush.msra.mxu0 0.0
        %1492 = vmatpush.msra.mxu0 0.0
        %1493 = vmatpush.msra.mxu0 0.0
        %1494 = vmatpush.msra.mxu0 %v1475
        %1495 = vmatmul.f32.gmra.mxu0 %v1477
        %v1496 = vpop.f32.mrf.mxu0
        %v1497 = vadd.f32 0.0, %v1496
        %1498 = vdwg.mxu0
        %v1500 = vsel %vm1312, %v1389, 0
        %1502 = vmatpush.msra.mxu0 0.0
        %1503 = vmatpush.msra.mxu0 0.0
        %1504 = vmatpush.msra.mxu0 0.0
        %1505 = vmatpush.msra.mxu0 0.0
        %1506 = vmatpush.msra.mxu0 0.0
        %1507 = vmatpush.msra.mxu0 0.0
        %1508 = vmatpush.msra.mxu0 0.0
        %1509 = vmatpush.msra.mxu0 0.0
        %1510 = vmatpush.msra.mxu0 0.0
        %1511 = vmatpush.msra.mxu0 0.0
        %1512 = vmatpush.msra.mxu0 0.0
        %1513 = vmatpush.msra.mxu0 0.0
        %1514 = vmatpush.msra.mxu0 0.0
        %1515 = vmatpush.msra.mxu0 0.0
        %1516 = vmatpush.msra.mxu0 0.0
        %1517 = vmatpush.msra.mxu0 %v1392
        %1518 = vmatmul.f32.gmra.mxu0 %v1500
        %v1519 = vpop.f32.mrf.mxu0
        %v1520 = vadd.f32 %v1497, %v1519
        %1521 = vdwg.mxu0
        %1522 = vrot.lane.b32.xlu0 %v1283, 112
        %v1523 = vpop.permute.xlu0 %1522
        %1524 = vrot.lane.b32.xlu0 %v1296, 112
        %v1525 = vpop.permute.xlu0 %1524
        %v1526 = vsel %vm1312, %v1523, 0
        %v1528 = vsel %vm1312, %v1525, 0
        %1530 = vmatpush.xpose.msra.mxu0 0.0
        %1531 = vmatpush.xpose.msra.mxu0 0.0
        %1532 = vmatpush.xpose.msra.mxu0 0.0
        %1533 = vmatpush.xpose.msra.mxu0 0.0
        %1534 = vmatpush.xpose.msra.mxu0 0.0
        %1535 = vmatpush.xpose.msra.mxu0 0.0
        %1536 = vmatpush.xpose.msra.mxu0 0.0
        %1537 = vmatpush.xpose.msra.mxu0 0.0
        %1538 = vmatpush.xpose.msra.mxu0 0.0
        %1539 = vmatpush.xpose.msra.mxu0 0.0
        %1540 = vmatpush.xpose.msra.mxu0 0.0
        %1541 = vmatpush.xpose.msra.mxu0 0.0
        %1542 = vmatpush.xpose.msra.mxu0 0.0
        %1543 = vmatpush.xpose.msra.mxu0 0.0
        %1544 = vmatpush.xpose.msra.mxu0 0.0
        %1545 = vmatpush.xpose.msra.mxu0 %v1528
        %1546 = vmatmul.f32.gmra.mxu0 %v1526
        %v1547 = vpop.f32.mrf.mxu0
        %v1548 = vadd.f32 0.0, %v1547
        %1549 = vdwg.mxu0
        %v1550 = vmul.f32 %v1548, 0.35355338
        %v1551 = vadd.f32 %v1550, %v1341
        %v1552 = vsel %vm1312, %v1551, -inf
        %1553 = vmax.xlane.f32.xlu0 %v1552
        %v1554 = vpop.xlane.xlu0 %1553
        %v1555 = vsub.f32 %v1551, %v1554
        %v1556 = vmul.f32 %v1555, 1.442695
        %v1557 = vpow.pop %v1556
        %v1558 = vsel %vm1312, %v1557, 0.0
        %1559 = vadd.xlane.f32.xlu0 %v1558
        %v1560 = vpop.xlane.xlu0 %1559
        %v1561 = vrcp.pop %v1560
        %v1562 = vmul.f32 %v1560, %v1561
        %v1563 = vsub.f32 1.0, %v1562
        %v1564 = vmul.f32 %v1561, %v1563
        %v1565 = vadd.f32 %v1561, %v1564
        %vm1566 = vweird.f32 %v1560
        %vm1567 = vweird.f32 %v1561
        %vm1568 = vmor %vm1566, %vm1567
        %v1569 = vsel %vm1568, %v1561, %v1565
        %v1570 = vand.u32 2147483647, %v1560
        %vm1571 = vcmp.eq.f32.partialorder %v1570, 8.507059e+37
        %v1572 = vand.u32 %v1560, 2147483648
        %v1573 = vor.u32 1.1754944e-38, %v1572
        %v1574 = vsel %vm1571, %v1573, %v1569
        %v1575 = vmul.f32 %v1557, %v1574
        %1576 = vrot.lane.b32.xlu0 %v1309, 112
        %v1577 = vpop.permute.xlu0 %1576
        %v1580 = vsel %vm1312, %v1575, 0
        %1582 = vmatpush.msra.mxu0 0.0
        %1583 = vmatpush.msra.mxu0 0.0
        %1584 = vmatpush.msra.mxu0 0.0
        %1585 = vmatpush.msra.mxu0 0.0
        %1586 = vmatpush.msra.mxu0 0.0
        %1587 = vmatpush.msra.mxu0 0.0
        %1588 = vmatpush.msra.mxu0 0.0
        %1589 = vmatpush.msra.mxu0 0.0
        %1590 = vmatpush.msra.mxu0 0.0
        %1591 = vmatpush.msra.mxu0 0.0
        %1592 = vmatpush.msra.mxu0 0.0
        %1593 = vmatpush.msra.mxu0 0.0
        %1594 = vmatpush.msra.mxu0 0.0
        %1595 = vmatpush.msra.mxu0 0.0
        %1596 = vmatpush.msra.mxu0 0.0
        %1597 = vmatpush.msra.mxu0 %v1577
        %1598 = vmatmul.f32.gmra.mxu0 %v1580
        %v1599 = vpop.f32.mrf.mxu0
        %v1600 = vadd.f32 0.0, %v1599
        %1601 = vdwg.mxu0
        %v1602 = vld [vmem:[%s15 + $0x8] sm:$0xf]
        %v1603 = vunpack.c.l.bf16 %v1602
        %v1605 = vsel %vm1312, %v1600, 0
        %1607 = vmatpush.msra.mxu0 0.0
        %1608 = vmatpush.msra.mxu0 0.0
        %1609 = vmatpush.msra.mxu0 0.0
        %1610 = vmatpush.msra.mxu0 0.0
        %1611 = vmatpush.msra.mxu0 0.0
        %1612 = vmatpush.msra.mxu0 0.0
        %1613 = vmatpush.msra.mxu0 0.0
        %1614 = vmatpush.msra.mxu0 0.0
        %1615 = vmatpush.msra.mxu0 0.0
        %1616 = vmatpush.msra.mxu0 0.0
        %1617 = vmatpush.msra.mxu0 0.0
        %1618 = vmatpush.msra.mxu0 0.0
        %1619 = vmatpush.msra.mxu0 0.0
        %1620 = vmatpush.msra.mxu0 0.0
        %1621 = vmatpush.msra.mxu0 0.0
        %1622 = vmatpush.msra.mxu0 %v1603
        %1623 = vmatmul.f32.gmra.mxu0 %v1605
        %v1624 = vpop.f32.mrf.mxu0
        %v1625 = vadd.f32 0.0, %v1624
        %1626 = vdwg.mxu0
        %v1627 = vadd.f32 %v1520, %v1625
        %1628 = vrot.lane.b32.xlu0 %v1283, 104
        %v1629 = vpop.permute.xlu0 %1628
        %1630 = vrot.lane.b32.xlu0 %v1296, 104
        %v1631 = vpop.permute.xlu0 %1630
        %v1632 = vsel %vm1312, %v1629, 0
        %v1634 = vsel %vm1312, %v1631, 0
        %1636 = vmatpush.xpose.msra.mxu0 0.0
        %1637 = vmatpush.xpose.msra.mxu0 0.0
        %1638 = vmatpush.xpose.msra.mxu0 0.0
        %1639 = vmatpush.xpose.msra.mxu0 0.0
        %1640 = vmatpush.xpose.msra.mxu0 0.0
        %1641 = vmatpush.xpose.msra.mxu0 0.0
        %1642 = vmatpush.xpose.msra.mxu0 0.0
        %1643 = vmatpush.xpose.msra.mxu0 0.0
        %1644 = vmatpush.xpose.msra.mxu0 0.0
        %1645 = vmatpush.xpose.msra.mxu0 0.0
        %1646 = vmatpush.xpose.msra.mxu0 0.0
        %1647 = vmatpush.xpose.msra.mxu0 0.0
        %1648 = vmatpush.xpose.msra.mxu0 0.0
        %1649 = vmatpush.xpose.msra.mxu0 0.0
        %1650 = vmatpush.xpose.msra.mxu0 0.0
        %1651 = vmatpush.xpose.msra.mxu0 %v1634
        %1652 = vmatmul.f32.gmra.mxu0 %v1632
        %v1653 = vpop.f32.mrf.mxu0
        %v1654 = vadd.f32 0.0, %v1653
        %1655 = vdwg.mxu0
        %v1656 = vmul.f32 %v1654, 0.35355338
        %v1657 = vadd.f32 %v1656, %v1341
        %v1658 = vsel %vm1312, %v1657, -inf
        %1659 = vmax.xlane.f32.xlu0 %v1658
        %v1660 = vpop.xlane.xlu0 %1659
        %v1661 = vsub.f32 %v1657, %v1660
        %v1662 = vmul.f32 %v1661, 1.442695
        %v1663 = vpow.pop %v1662
        %v1664 = vsel %vm1312, %v1663, 0.0
        %1665 = vadd.xlane.f32.xlu0 %v1664
        %v1666 = vpop.xlane.xlu0 %1665
        %v1667 = vrcp.pop %v1666
        %v1668 = vmul.f32 %v1666, %v1667
        %v1669 = vsub.f32 1.0, %v1668
        %v1670 = vmul.f32 %v1667, %v1669
        %v1671 = vadd.f32 %v1667, %v1670
        %vm1672 = vweird.f32 %v1666
        %vm1673 = vweird.f32 %v1667
        %vm1674 = vmor %vm1672, %vm1673
        %v1675 = vsel %vm1674, %v1667, %v1671
        %v1676 = vand.u32 2147483647, %v1666
        %vm1677 = vcmp.eq.f32.partialorder %v1676, 8.507059e+37
        %v1678 = vand.u32 %v1666, 2147483648
        %v1679 = vor.u32 1.1754944e-38, %v1678
        %v1680 = vsel %vm1677, %v1679, %v1675
        %v1681 = vmul.f32 %v1663, %v1680
        %1682 = vrot.lane.b32.xlu0 %v1309, 104
        %v1683 = vpop.permute.xlu0 %1682
        %v1686 = vsel %vm1312, %v1681, 0
        %1688 = vmatpush.msra.mxu0 0.0
        %1689 = vmatpush.msra.mxu0 0.0
        %1690 = vmatpush.msra.mxu0 0.0
        %1691 = vmatpush.msra.mxu0 0.0
        %1692 = vmatpush.msra.mxu0 0.0
        %1693 = vmatpush.msra.mxu0 0.0
        %1694 = vmatpush.msra.mxu0 0.0
        %1695 = vmatpush.msra.mxu0 0.0
        %1696 = vmatpush.msra.mxu0 0.0
        %1697 = vmatpush.msra.mxu0 0.0
        %1698 = vmatpush.msra.mxu0 0.0
        %1699 = vmatpush.msra.mxu0 0.0
        %1700 = vmatpush.msra.mxu0 0.0
        %1701 = vmatpush.msra.mxu0 0.0
        %1702 = vmatpush.msra.mxu0 0.0
        %1703 = vmatpush.msra.mxu0 %v1683
        %1704 = vmatmul.f32.gmra.mxu0 %v1686
        %v1705 = vpop.f32.mrf.mxu0
        %v1706 = vadd.f32 0.0, %v1705
        %1707 = vdwg.mxu0
        %v1708 = vld [vmem:[%s15 + $0xc] sm:$0xf]
        %v1709 = vunpack.c.l.bf16 %v1708
        %v1711 = vsel %vm1312, %v1706, 0
        %1713 = vmatpush.msra.mxu0 0.0
        %1714 = vmatpush.msra.mxu0 0.0
        %1715 = vmatpush.msra.mxu0 0.0
        %1716 = vmatpush.msra.mxu0 0.0
        %1717 = vmatpush.msra.mxu0 0.0
        %1718 = vmatpush.msra.mxu0 0.0
        %1719 = vmatpush.msra.mxu0 0.0
        %1720 = vmatpush.msra.mxu0 0.0
        %1721 = vmatpush.msra.mxu0 0.0
        %1722 = vmatpush.msra.mxu0 0.0
        %1723 = vmatpush.msra.mxu0 0.0
        %1724 = vmatpush.msra.mxu0 0.0
        %1725 = vmatpush.msra.mxu0 0.0
        %1726 = vmatpush.msra.mxu0 0.0
        %1727 = vmatpush.msra.mxu0 0.0
        %1728 = vmatpush.msra.mxu0 %v1709
        %1729 = vmatmul.f32.gmra.mxu0 %v1711
        %v1730 = vpop.f32.mrf.mxu0
        %v1731 = vadd.f32 0.0, %v1730
        %1732 = vdwg.mxu0
        %v1733 = vadd.f32 %v1627, %v1731
        %v1734 = vld [vmem:[%s17] sm:$0x1]
        %v1736 = vperm.slane %v1734, 0
        %v1738 = vadd.f32 %v1733, %v1736
        %v1739 = vadd.f32 %v1738, %v1103
        %v1740 = vld [vmem:[%s19] sm:$0x1]
        %v1741 = vld [vmem:[%s21] sm:$0x1]
        %1742 = vadd.xlane.f32.xlu0 %v1739
        %v1743 = vpop.xlane.xlu0 %1742
        %v1744 = vmul.f32 %v1743, 0.03125
        %v1745 = vsub.f32 %v1739, %v1744
        %v1746 = vmul.f32 %v1745, %v1070
        %v1747 = vmul.f32 %v1746, %v1746
        %1748 = vadd.xlane.f32.xlu0 %v1747
        %v1749 = vpop.xlane.xlu0 %1748
        %v1750 = vmul.f32 %v1749, 0.03125
        %v1751 = vadd.f32 %v1750, 1e-12
        %v1752 = vrsqrt.pop %v1751
        %v1753 = vmul.f32 %v1752, %v1751
        %v1754 = vmul.f32 %v1753, %v1752
        %v1755 = vmul.f32 0.5, %v1754
        %v1756 = vsub.f32 1.5, %v1755
        %v1757 = vmul.f32 %v1752, %v1756
        %vm1758 = vweird.f32 %v1751
        %vm1759 = vweird.f32 %v1752
        %vm1760 = vmor %vm1758, %vm1759
        %v1761 = vsel %vm1760, %v1752, %v1757
        %v1762 = vmul.f32 %v1746, %v1761
        %v1764 = vperm.slane %v1740, 0
        %v1766 = vmul.f32 %v1762, %v1764
        %v1768 = vperm.slane %v1741, 0
        %v1770 = vadd.f32 %v1766, %v1768
        %v1771 = vpack.c.bf16 %v1770, %v1770
        %v1772 = vld [vmem:[%s23] sm:$0xf]
        %v1773 = vld [vmem:[%s23 + $0x4] sm:$0xf]
        %v1774 = vld [vmem:[%s23 + $0x8] sm:$0xf]
        %v1775 = vld [vmem:[%s23 + $0xc] sm:$0xf]
        %v1776 = vld [vmem:[%s23 + $0x10] sm:$0xf]
        %v1777 = vld [vmem:[%s23 + $0x14] sm:$0xf]
        %v1778 = vld [vmem:[%s23 + $0x18] sm:$0xf]
        %v1779 = vld [vmem:[%s23 + $0x1c] sm:$0xf]
        %v1780 = vld [vmem:[%s23 + $0x20] sm:$0xf]
        %v1781 = vld [vmem:[%s23 + $0x24] sm:$0xf]
        %v1782 = vld [vmem:[%s23 + $0x28] sm:$0xf]
        %v1783 = vld [vmem:[%s23 + $0x2c] sm:$0xf]
        %v1784 = vld [vmem:[%s23 + $0x30] sm:$0xf]
        %v1785 = vld [vmem:[%s23 + $0x34] sm:$0xf]
        %v1786 = vld [vmem:[%s23 + $0x38] sm:$0xf]
        %v1787 = vld [vmem:[%s23 + $0x3c] sm:$0xf]
        %v1788 = vld [vmem:[%s25] sm:$0x1]
        %v1790 = vperm.slane %v1788, 0
        %v1808 = vunpack.c.l.b16 %v1772
        %v1809 = vunpack.c.l.b16 %v1773
        %v1810 = vunpack.c.l.b16 %v1774
        %v1811 = vunpack.c.l.b16 %v1775
        %v1812 = vunpack.c.l.b16 %v1776
        %v1813 = vunpack.c.l.b16 %v1777
        %v1814 = vunpack.c.l.b16 %v1778
        %v1815 = vunpack.c.l.b16 %v1779
        %v1816 = vunpack.c.l.b16 %v1780
        %v1817 = vunpack.c.l.b16 %v1781
        %v1818 = vunpack.c.l.b16 %v1782
        %v1819 = vunpack.c.l.b16 %v1783
        %v1820 = vunpack.c.l.b16 %v1784
        %v1821 = vunpack.c.l.b16 %v1785
        %v1822 = vunpack.c.l.b16 %v1786
        %v1823 = vunpack.c.l.b16 %v1787
        %v1824 = vpack.c.b16 %v1809, %v1808
        %v1825 = vpack.c.b16 %v1811, %v1810
        %v1826 = vpack.c.b16 %v1813, %v1812
        %v1827 = vpack.c.b16 %v1815, %v1814
        %v1828 = vpack.c.b16 %v1817, %v1816
        %v1829 = vpack.c.b16 %v1819, %v1818
        %v1830 = vpack.c.b16 %v1821, %v1820
        %v1831 = vpack.c.b16 %v1823, %v1822
        %1840 = vmatpush.bf16.msra.mxu0 %v1831
        %1841 = vmatpush.bf16.msra.mxu0 %v1830
        %1842 = vmatpush.bf16.msra.mxu0 %v1829
        %1843 = vmatpush.bf16.msra.mxu0 %v1828
        %1844 = vmatpush.bf16.msra.mxu0 %v1827
        %1845 = vmatpush.bf16.msra.mxu0 %v1826
        %1846 = vmatpush.bf16.msra.mxu0 %v1825
        %1847 = vmatpush.bf16.msra.mxu0 %v1824
        %1848 = vmatmul.bf16.gmra.mxu0 %v1771
        %v1849 = vpop.f32.mrf.mxu0
        %v1850 = vadd.f32 %v1790, %v1849
        %v1851 = vpop.f32.mrf.mxu0
        %1852 = vdwg.mxu0
        %v1853 = vmul.f32 %v1850, 0.5
        %v1854 = vmul.f32 %v1850, 0.044715
        %v1855 = vmul.f32 %v1854, %v1850
        %v1856 = vmul.f32 %v1855, %v1850
        %v1857 = vadd.f32 %v1850, %v1856
        %v1858 = vmul.f32 %v1857, 0.7978846
        %v1859 = vtanh.pop %v1858
        %v1860 = vadd.f32 %v1859, 1.0
        %v1861 = vmul.f32 %v1853, %v1860
        %v1862 = vpack.c.bf16 %v1861, %v1861
        %v1863 = vld [vmem:[#allocation5] sm:$0xf]
        %v1864 = vld [vmem:[#allocation5 + $0x4] sm:$0xf]
        %v1865 = vld [vmem:[#allocation5 + $0x8] sm:$0xf]
        %v1866 = vld [vmem:[#allocation5 + $0xc] sm:$0xf]
        %v1867 = vld [vmem:[#allocation5 + $0x10] sm:$0xf]
        %v1868 = vld [vmem:[#allocation5 + $0x14] sm:$0xf]
        %v1869 = vld [vmem:[#allocation5 + $0x18] sm:$0xf]
        %v1870 = vld [vmem:[#allocation5 + $0x1c] sm:$0xf]
        %v1871 = vld [vmem:[#allocation5 + $0x20] sm:$0xf]
        %v1872 = vld [vmem:[#allocation5 + $0x24] sm:$0xf]
        %v1873 = vld [vmem:[#allocation5 + $0x28] sm:$0xf]
        %v1874 = vld [vmem:[#allocation5 + $0x2c] sm:$0xf]
        %v1875 = vld [vmem:[#allocation5 + $0x30] sm:$0xf]
        %v1876 = vld [vmem:[#allocation5 + $0x34] sm:$0xf]
        %v1877 = vld [vmem:[#allocation5 + $0x38] sm:$0xf]
        %v1878 = vld [vmem:[#allocation5 + $0x3c] sm:$0xf]
        %v1879 = vld [vmem:[%s29] sm:$0x1]
        %v1881 = vperm.slane %v1879, 0
        %v1899 = vunpack.c.l.b16 %v1863
        %v1900 = vunpack.c.l.b16 %v1864
        %v1901 = vunpack.c.l.b16 %v1865
        %v1902 = vunpack.c.l.b16 %v1866
        %v1903 = vunpack.c.l.b16 %v1867
        %v1904 = vunpack.c.l.b16 %v1868
        %v1905 = vunpack.c.l.b16 %v1869
        %v1906 = vunpack.c.l.b16 %v1870
        %v1907 = vunpack.c.l.b16 %v1871
        %v1908 = vunpack.c.l.b16 %v1872
        %v1909 = vunpack.c.l.b16 %v1873
        %v1910 = vunpack.c.l.b16 %v1874
        %v1911 = vunpack.c.l.b16 %v1875
        %v1912 = vunpack.c.l.b16 %v1876
        %v1913 = vunpack.c.l.b16 %v1877
        %v1914 = vunpack.c.l.b16 %v1878
        %v1915 = vpack.c.b16 %v1900, %v1899
        %v1916 = vpack.c.b16 %v1902, %v1901
        %v1917 = vpack.c.b16 %v1904, %v1903
        %v1918 = vpack.c.b16 %v1906, %v1905
        %v1919 = vpack.c.b16 %v1908, %v1907
        %v1920 = vpack.c.b16 %v1910, %v1909
        %v1921 = vpack.c.b16 %v1912, %v1911
        %v1922 = vpack.c.b16 %v1914, %v1913
        %1931 = vmatpush.bf16.msra.mxu0 %v1922
        %1932 = vmatpush.bf16.msra.mxu0 %v1921
        %1933 = vmatpush.bf16.msra.mxu0 %v1920
        %1934 = vmatpush.bf16.msra.mxu0 %v1919
        %1935 = vmatpush.bf16.msra.mxu0 %v1918
        %1936 = vmatpush.bf16.msra.mxu0 %v1917
        %1937 = vmatpush.bf16.msra.mxu0 %v1916
        %1938 = vmatpush.bf16.msra.mxu0 %v1915
        %1939 = vmatmul.bf16.gmra.mxu0 %v1862
        %v1940 = vpop.f32.mrf.mxu0
        %v1941 = vadd.f32 %v1881, %v1940
        %v1942 = vpop.f32.mrf.mxu0
        %1943 = vdwg.mxu0
        %v1944 = vadd.f32 %v1941, %v1770
        %v1945 = vld [vmem:[%s31] sm:$0x1]
        %v1946 = vld [vmem:[%s33] sm:$0x1]
        %1947 = vadd.xlane.f32.xlu0 %v1944
        %v1948 = vpop.xlane.xlu0 %1947
        %v1949 = vmul.f32 %v1948, 0.03125
        %v1950 = vsub.f32 %v1944, %v1949
        %v1951 = vmul.f32 %v1950, %v1070
        %v1952 = vmul.f32 %v1951, %v1951
        %1953 = vadd.xlane.f32.xlu0 %v1952
        %v1954 = vpop.xlane.xlu0 %1953
        %v1955 = vmul.f32 %v1954, 0.03125
        %v1956 = vadd.f32 %v1955, 1e-12
        %v1957 = vrsqrt.pop %v1956
        %v1958 = vmul.f32 %v1957, %v1956
        %v1959 = vmul.f32 %v1958, %v1957
        %v1960 = vmul.f32 0.5, %v1959
        %v1961 = vsub.f32 1.5, %v1960
        %v1962 = vmul.f32 %v1957, %v1961
        %vm1963 = vweird.f32 %v1956
        %vm1964 = vweird.f32 %v1957
        %vm1965 = vmor %vm1963, %vm1964
        %v1966 = vsel %vm1965, %v1957, %v1962
        %v1967 = vmul.f32 %v1951, %v1966
        %v1969 = vperm.slane %v1945, 0
        %v1971 = vmul.f32 %v1967, %v1969
        %v1973 = vperm.slane %v1946, 0
        %v1975 = vadd.f32 %v1971, %v1973
        %v1976 = vpack.c.bf16 %v1975, %v1975
        %s1977 = scalar_lea.vmem [#allocation2], 192
        %v1978 = vld [vmem:[%s1977] sm:$0xff]
        %v1979 = vld [vmem:[%s1977 + $0x8] sm:$0xf]
        %v1980 = vld [vmem:[%s1977 + $0xc] sm:$0xff]
        %v1981 = vld [vmem:[%s1977 + $0x14] sm:$0xf]
        %v1982 = vld [vmem:[%s1977 + $0x18] sm:$0xff]
        %v1983 = vld [vmem:[%s1977 + $0x20] sm:$0xf]
        %v1984 = vld [vmem:[%s1977 + $0x24] sm:$0xff]
        %v1985 = vld [vmem:[%s1977 + $0x2c] sm:$0xf]
        %v1986 = vld [vmem:[%s1977 + $0x30] sm:$0xff]
        %v1987 = vld [vmem:[%s1977 + $0x38] sm:$0xf]
        %v1988 = vld [vmem:[%s1977 + $0x3c] sm:$0xff]
        %v1989 = vld [vmem:[%s1977 + $0x44] sm:$0xf]
        %v1990 = vld [vmem:[%s1977 + $0x48] sm:$0xff]
        %v1991 = vld [vmem:[%s1977 + $0x50] sm:$0xf]
        %v1992 = vld [vmem:[%s1977 + $0x54] sm:$0xff]
        %v1993 = vld [vmem:[%s1977 + $0x5c] sm:$0xf]
        %v1994 = vld [vmem:[%s1977 + $0x60] sm:$0xff]
        %v1995 = vld [vmem:[%s1977 + $0x68] sm:$0xf]
        %v1996 = vld [vmem:[%s1977 + $0x6c] sm:$0xff]
        %v1997 = vld [vmem:[%s1977 + $0x74] sm:$0xf]
        %v1998 = vld [vmem:[%s1977 + $0x78] sm:$0xff]
        %v1999 = vld [vmem:[%s1977 + $0x80] sm:$0xf]
        %v2000 = vld [vmem:[%s1977 + $0x84] sm:$0xff]
        %v2001 = vld [vmem:[%s1977 + $0x8c] sm:$0xf]
        %v2002 = vld [vmem:[%s1977 + $0x90] sm:$0xff]
        %v2003 = vld [vmem:[%s1977 + $0x98] sm:$0xf]
        %v2004 = vld [vmem:[%s1977 + $0x9c] sm:$0xff]
        %v2005 = vld [vmem:[%s1977 + $0xa4] sm:$0xf]
        %v2006 = vld [vmem:[%s1977 + $0xa8] sm:$0xff]
        %v2007 = vld [vmem:[%s1977 + $0xb0] sm:$0xf]
        %v2008 = vld [vmem:[%s1977 + $0xb4] sm:$0xff]
        %v2009 = vld [vmem:[%s1977 + $0xbc] sm:$0xf]
        %s2010 = scalar_lea.vmem %s13, 3
        %v2011 = vld [vmem:[%s2010] sm:$0x7]
        %v2013 = vperm.slane %v2011, 0
        %v2014 = vperm.slane %v2011, 1
        %v2015 = vperm.slane %v2011, 2
        %v2051 = vunpack.c.l.b16 %v1978
        %v2052 = vunpack.c.h.b16 %v1978
        %v2053 = vunpack.c.l.b16 %v1979
        %v2054 = vunpack.c.l.b16 %v1980
        %v2055 = vunpack.c.h.b16 %v1980
        %v2056 = vunpack.c.l.b16 %v1981
        %v2057 = vunpack.c.l.b16 %v1982
        %v2058 = vunpack.c.h.b16 %v1982
        %v2059 = vunpack.c.l.b16 %v1983
        %v2060 = vunpack.c.l.b16 %v1984
        %v2061 = vunpack.c.h.b16 %v1984
        %v2062 = vunpack.c.l.b16 %v1985
        %v2063 = vunpack.c.l.b16 %v1986
        %v2064 = vunpack.c.h.b16 %v1986
        %v2065 = vunpack.c.l.b16 %v1987
        %v2066 = vunpack.c.l.b16 %v1988
        %v2067 = vunpack.c.h.b16 %v1988
        %v2068 = vunpack.c.l.b16 %v1989
        %v2069 = vunpack.c.l.b16 %v1990
        %v2070 = vunpack.c.h.b16 %v1990
        %v2071 = vunpack.c.l.b16 %v1991
        %v2072 = vunpack.c.l.b16 %v1992
        %v2073 = vunpack.c.h.b16 %v1992
        %v2074 = vunpack.c.l.b16 %v1993
        %v2075 = vunpack.c.l.b16 %v1994
        %v2076 = vunpack.c.h.b16 %v1994
        %v2077 = vunpack.c.l.b16 %v1995
        %v2078 = vunpack.c.l.b16 %v1996
        %v2079 = vunpack.c.h.b16 %v1996
        %v2080 = vunpack.c.l.b16 %v1997
        %v2081 = vunpack.c.l.b16 %v1998
        %v2082 = vunpack.c.h.b16 %v1998
        %v2083 = vunpack.c.l.b16 %v1999
        %v2084 = vunpack.c.l.b16 %v2000
        %v2085 = vunpack.c.h.b16 %v2000
        %v2086 = vunpack.c.l.b16 %v2001
        %v2087 = vunpack.c.l.b16 %v2002
        %v2088 = vunpack.c.h.b16 %v2002
        %v2089 = vunpack.c.l.b16 %v2003
        %v2090 = vunpack.c.l.b16 %v2004
        %v2091 = vunpack.c.h.b16 %v2004
        %v2092 = vunpack.c.l.b16 %v2005
        %v2093 = vunpack.c.l.b16 %v2006
        %v2094 = vunpack.c.h.b16 %v2006
        %v2095 = vunpack.c.l.b16 %v2007
        %v2096 = vunpack.c.l.b16 %v2008
        %v2097 = vunpack.c.h.b16 %v2008
        %v2098 = vunpack.c.l.b16 %v2009
        %v2099 = vpack.c.b16 %v2054, %v2051
        %v2100 = vpack.c.b16 %v2055, %v2052
        %v2101 = vpack.c.b16 %v2056, %v2053
        %v2102 = vpack.c.b16 %v2060, %v2057
        %v2103 = vpack.c.b16 %v2061, %v2058
        %v2104 = vpack.c.b16 %v2062, %v2059
        %v2105 = vpack.c.b16 %v2066, %v2063
        %v2106 = vpack.c.b16 %v2067, %v2064
        %v2107 = vpack.c.b16 %v2068, %v2065
        %v2108 = vpack.c.b16 %v2072, %v2069
        %v2109 = vpack.c.b16 %v2073, %v2070
        %v2110 = vpack.c.b16 %v2074, %v2071
        %v2111 = vpack.c.b16 %v2078, %v2075
        %v2112 = vpack.c.b16 %v2079, %v2076
        %v2113 = vpack.c.b16 %v2080, %v2077
        %v2114 = vpack.c.b16 %v2084, %v2081
        %v2115 = vpack.c.b16 %v2085, %v2082
        %v2116 = vpack.c.b16 %v2086, %v2083
        %v2117 = vpack.c.b16 %v2090, %v2087
        %v2118 = vpack.c.b16 %v2091, %v2088
        %v2119 = vpack.c.b16 %v2092, %v2089
        %v2120 = vpack.c.b16 %v2096, %v2093
        %v2121 = vpack.c.b16 %v2097, %v2094
        %v2122 = vpack.c.b16 %v2098, %v2095
        %2147 = vmatpush.bf16.msra.mxu0 %v2120
        %2148 = vmatpush.bf16.msra.mxu0 %v2117
        %2149 = vmatpush.bf16.msra.mxu0 %v2114
        %2150 = vmatpush.bf16.msra.mxu0 %v2111
        %2151 = vmatpush.bf16.msra.mxu0 %v2108
        %2152 = vmatpush.bf16.msra.mxu0 %v2105
        %2153 = vmatpush.bf16.msra.mxu0 %v2102
        %2154 = vmatpush.bf16.msra.mxu0 %v2099
        %2155 = vmatmul.bf16.gmra.mxu0 %v1976
        %v2156 = vpop.f32.mrf.mxu0
        %v2157 = vadd.f32 %v2013, %v2156
        %v2158 = vpop.f32.mrf.mxu0
        %2159 = vdwg.mxu0
        %2160 = vmatpush.bf16.msra.mxu0 %v2121
        %2161 = vmatpush.bf16.msra.mxu0 %v2118
        %2162 = vmatpush.bf16.msra.mxu0 %v2115
        %2163 = vmatpush.bf16.msra.mxu0 %v2112
        %2164 = vmatpush.bf16.msra.mxu0 %v2109
        %2165 = vmatpush.bf16.msra.mxu0 %v2106
        %2166 = vmatpush.bf16.msra.mxu0 %v2103
        %2167 = vmatpush.bf16.msra.mxu0 %v2100
        %2168 = vmatmul.bf16.gmra.mxu0 %v1976
        %v2169 = vpop.f32.mrf.mxu0
        %v2170 = vadd.f32 %v2014, %v2169
        %v2171 = vpop.f32.mrf.mxu0
        %2172 = vdwg.mxu0
        %2173 = vmatpush.bf16.msra.mxu0 %v2122
        %2174 = vmatpush.bf16.msra.mxu0 %v2119
        %2175 = vmatpush.bf16.msra.mxu0 %v2116
        %2176 = vmatpush.bf16.msra.mxu0 %v2113
        %2177 = vmatpush.bf16.msra.mxu0 %v2110
        %2178 = vmatpush.bf16.msra.mxu0 %v2107
        %2179 = vmatpush.bf16.msra.mxu0 %v2104
        %2180 = vmatpush.bf16.msra.mxu0 %v2101
        %2181 = vmatmul.bf16.gmra.mxu0 %v1976
        %v2182 = vpop.f32.mrf.mxu0
        %v2183 = vadd.f32 %v2015, %v2182
        %v2184 = vpop.f32.mrf.mxu0
        %2185 = vdwg.mxu0
        %v2187 = vsel %vm1312, %v2157, 0
        %v2190 = vsel %vm1312, %v2170, 0
        %2192 = vmatpush.xpose.msra.mxu0 0.0
        %2193 = vmatpush.xpose.msra.mxu0 0.0
        %2194 = vmatpush.xpose.msra.mxu0 0.0
        %2195 = vmatpush.xpose.msra.mxu0 0.0
        %2196 = vmatpush.xpose.msra.mxu0 0.0
        %2197 = vmatpush.xpose.msra.mxu0 0.0
        %2198 = vmatpush.xpose.msra.mxu0 0.0
        %2199 = vmatpush.xpose.msra.mxu0 0.0
        %2200 = vmatpush.xpose.msra.mxu0 0.0
        %2201 = vmatpush.xpose.msra.mxu0 0.0
        %2202 = vmatpush.xpose.msra.mxu0 0.0
        %2203 = vmatpush.xpose.msra.mxu0 0.0
        %2204 = vmatpush.xpose.msra.mxu0 0.0
        %2205 = vmatpush.xpose.msra.mxu0 0.0
        %2206 = vmatpush.xpose.msra.mxu0 0.0
        %2207 = vmatpush.xpose.msra.mxu0 %v2190
        %2208 = vmatmul.f32.gmra.mxu0 %v2187
        %v2209 = vpop.f32.mrf.mxu0
        %v2210 = vadd.f32 0.0, %v2209
        %2211 = vdwg.mxu0
        %v2212 = vmul.f32 %v2210, 0.35355338
        %v2213 = vadd.f32 %v2212, %v1341
        %v2214 = vsel %vm1312, %v2213, -inf
        %2215 = vmax.xlane.f32.xlu0 %v2214
        %v2216 = vpop.xlane.xlu0 %2215
        %v2217 = vsub.f32 %v2213, %v2216
        %v2218 = vmul.f32 %v2217, 1.442695
        %v2219 = vpow.pop %v2218
        %v2220 = vsel %vm1312, %v2219, 0.0
        %2221 = vadd.xlane.f32.xlu0 %v2220
        %v2222 = vpop.xlane.xlu0 %2221
        %v2223 = vrcp.pop %v2222
        %v2224 = vmul.f32 %v2222, %v2223
        %v2225 = vsub.f32 1.0, %v2224
        %v2226 = vmul.f32 %v2223, %v2225
        %v2227 = vadd.f32 %v2223, %v2226
        %vm2228 = vweird.f32 %v2222
        %vm2229 = vweird.f32 %v2223
        %vm2230 = vmor %vm2228, %vm2229
        %v2231 = vsel %vm2230, %v2223, %v2227
        %v2232 = vand.u32 2147483647, %v2222
        %vm2233 = vcmp.eq.f32.partialorder %v2232, 8.507059e+37
        %v2234 = vand.u32 %v2222, 2147483648
        %v2235 = vor.u32 1.1754944e-38, %v2234
        %v2236 = vsel %vm2233, %v2235, %v2231
        %v2237 = vmul.f32 %v2219, %v2236
        %v2239 = vsel %vm1312, %v2237, 0
        %2241 = vmatpush.msra.mxu0 0.0
        %2242 = vmatpush.msra.mxu0 0.0
        %2243 = vmatpush.msra.mxu0 0.0
        %2244 = vmatpush.msra.mxu0 0.0
        %2245 = vmatpush.msra.mxu0 0.0
        %2246 = vmatpush.msra.mxu0 0.0
        %2247 = vmatpush.msra.mxu0 0.0
        %2248 = vmatpush.msra.mxu0 0.0
        %2249 = vmatpush.msra.mxu0 0.0
        %2250 = vmatpush.msra.mxu0 0.0
        %2251 = vmatpush.msra.mxu0 0.0
        %2252 = vmatpush.msra.mxu0 0.0
        %2253 = vmatpush.msra.mxu0 0.0
        %2254 = vmatpush.msra.mxu0 0.0
        %2255 = vmatpush.msra.mxu0 0.0
        %2256 = vmatpush.msra.mxu0 %v2183
        %2257 = vmatmul.f32.gmra.mxu0 %v2239
        %v2258 = vpop.f32.mrf.mxu0
        %v2259 = vadd.f32 0.0, %v2258
        %2260 = vdwg.mxu0
        %s2261 = scalar_lea.vmem %s15, 64
        %v2262 = vld [vmem:[%s2261] sm:$0xf]
        %v2263 = vunpack.c.l.bf16 %v2262
        %2264 = vrot.lane.b32.xlu0 %v2157, 120
        %v2265 = vpop.permute.xlu0 %2264
        %2266 = vrot.lane.b32.xlu0 %v2170, 120
        %v2267 = vpop.permute.xlu0 %2266
        %v2268 = vsel %vm1312, %v2265, 0
        %v2270 = vsel %vm1312, %v2267, 0
        %2272 = vmatpush.xpose.msra.mxu0 0.0
        %2273 = vmatpush.xpose.msra.mxu0 0.0
        %2274 = vmatpush.xpose.msra.mxu0 0.0
        %2275 = vmatpush.xpose.msra.mxu0 0.0
        %2276 = vmatpush.xpose.msra.mxu0 0.0
        %2277 = vmatpush.xpose.msra.mxu0 0.0
        %2278 = vmatpush.xpose.msra.mxu0 0.0
        %2279 = vmatpush.xpose.msra.mxu0 0.0
        %2280 = vmatpush.xpose.msra.mxu0 0.0
        %2281 = vmatpush.xpose.msra.mxu0 0.0
        %2282 = vmatpush.xpose.msra.mxu0 0.0
        %2283 = vmatpush.xpose.msra.mxu0 0.0
        %2284 = vmatpush.xpose.msra.mxu0 0.0
        %2285 = vmatpush.xpose.msra.mxu0 0.0
        %2286 = vmatpush.xpose.msra.mxu0 0.0
        %2287 = vmatpush.xpose.msra.mxu0 %v2270
        %2288 = vmatmul.f32.gmra.mxu0 %v2268
        %v2289 = vpop.f32.mrf.mxu0
        %v2290 = vadd.f32 0.0, %v2289
        %2291 = vdwg.mxu0
        %v2292 = vmul.f32 %v2290, 0.35355338
        %v2293 = vadd.f32 %v2292, %v1341
        %v2294 = vsel %vm1312, %v2293, -inf
        %2295 = vmax.xlane.f32.xlu0 %v2294
        %v2296 = vpop.xlane.xlu0 %2295
        %v2297 = vsub.f32 %v2293, %v2296
        %v2298 = vmul.f32 %v2297, 1.442695
        %v2299 = vpow.pop %v2298
        %v2300 = vsel %vm1312, %v2299, 0.0
        %2301 = vadd.xlane.f32.xlu0 %v2300
        %v2302 = vpop.xlane.xlu0 %2301
        %v2303 = vrcp.pop %v2302
        %v2304 = vmul.f32 %v2302, %v2303
        %v2305 = vsub.f32 1.0, %v2304
        %v2306 = vmul.f32 %v2303, %v2305
        %v2307 = vadd.f32 %v2303, %v2306
        %vm2308 = vweird.f32 %v2302
        %vm2309 = vweird.f32 %v2303
        %vm2310 = vmor %vm2308, %vm2309
        %v2311 = vsel %vm2310, %v2303, %v2307
        %v2312 = vand.u32 2147483647, %v2302
        %vm2313 = vcmp.eq.f32.partialorder %v2312, 8.507059e+37
        %v2314 = vand.u32 %v2302, 2147483648
        %v2315 = vor.u32 1.1754944e-38, %v2314
        %v2316 = vsel %vm2313, %v2315, %v2311
        %v2317 = vmul.f32 %v2299, %v2316
        %2319 = vrot.lane.b32.xlu0 %v2183, 120
        %v2320 = vpop.permute.xlu0 %2319
        %v2323 = vsel %vm1312, %v2317, 0
        %2325 = vmatpush.msra.mxu0 0.0
        %2326 = vmatpush.msra.mxu0 0.0
        %2327 = vmatpush.msra.mxu0 0.0
        %2328 = vmatpush.msra.mxu0 0.0
        %2329 = vmatpush.msra.mxu0 0.0
        %2330 = vmatpush.msra.mxu0 0.0
        %2331 = vmatpush.msra.mxu0 0.0
        %2332 = vmatpush.msra.mxu0 0.0
        %2333 = vmatpush.msra.mxu0 0.0
        %2334 = vmatpush.msra.mxu0 0.0
        %2335 = vmatpush.msra.mxu0 0.0
        %2336 = vmatpush.msra.mxu0 0.0
        %2337 = vmatpush.msra.mxu0 0.0
        %2338 = vmatpush.msra.mxu0 0.0
        %2339 = vmatpush.msra.mxu0 0.0
        %2340 = vmatpush.msra.mxu0 %v2320
        %2341 = vmatmul.f32.gmra.mxu0 %v2323
        %v2342 = vpop.f32.mrf.mxu0
        %v2343 = vadd.f32 0.0, %v2342
        %2344 = vdwg.mxu0
        %v2345 = vld [vmem:[%s2261 + $0x4] sm:$0xf]
        %v2346 = vunpack.c.l.bf16 %v2345
        %v2348 = vsel %vm1312, %v2343, 0
        %2350 = vmatpush.msra.mxu0 0.0
        %2351 = vmatpush.msra.mxu0 0.0
        %2352 = vmatpush.msra.mxu0 0.0
        %2353 = vmatpush.msra.mxu0 0.0
        %2354 = vmatpush.msra.mxu0 0.0
        %2355 = vmatpush.msra.mxu0 0.0
        %2356 = vmatpush.msra.mxu0 0.0
        %2357 = vmatpush.msra.mxu0 0.0
        %2358 = vmatpush.msra.mxu0 0.0
        %2359 = vmatpush.msra.mxu0 0.0
        %2360 = vmatpush.msra.mxu0 0.0
        %2361 = vmatpush.msra.mxu0 0.0
        %2362 = vmatpush.msra.mxu0 0.0
        %2363 = vmatpush.msra.mxu0 0.0
        %2364 = vmatpush.msra.mxu0 0.0
        %2365 = vmatpush.msra.mxu0 %v2346
        %2366 = vmatmul.f32.gmra.mxu0 %v2348
        %v2367 = vpop.f32.mrf.mxu0
        %v2368 = vadd.f32 0.0, %v2367
        %2369 = vdwg.mxu0
        %v2371 = vsel %vm1312, %v2259, 0
        %2373 = vmatpush.msra.mxu0 0.0
        %2374 = vmatpush.msra.mxu0 0.0
        %2375 = vmatpush.msra.mxu0 0.0
        %2376 = vmatpush.msra.mxu0 0.0
        %2377 = vmatpush.msra.mxu0 0.0
        %2378 = vmatpush.msra.mxu0 0.0
        %2379 = vmatpush.msra.mxu0 0.0
        %2380 = vmatpush.msra.mxu0 0.0
        %2381 = vmatpush.msra.mxu0 0.0
        %2382 = vmatpush.msra.mxu0 0.0
        %2383 = vmatpush.msra.mxu0 0.0
        %2384 = vmatpush.msra.mxu0 0.0
        %2385 = vmatpush.msra.mxu0 0.0
        %2386 = vmatpush.msra.mxu0 0.0
        %2387 = vmatpush.msra.mxu0 0.0
        %2388 = vmatpush.msra.mxu0 %v2263
        %2389 = vmatmul.f32.gmra.mxu0 %v2371
        %v2390 = vpop.f32.mrf.mxu0
        %v2391 = vadd.f32 %v2368, %v2390
        %2392 = vdwg.mxu0
        %2393 = vrot.lane.b32.xlu0 %v2157, 112
        %v2394 = vpop.permute.xlu0 %2393
        %2395 = vrot.lane.b32.xlu0 %v2170, 112
        %v2396 = vpop.permute.xlu0 %2395
        %v2397 = vsel %vm1312, %v2394, 0
        %v2399 = vsel %vm1312, %v2396, 0
        %2401 = vmatpush.xpose.msra.mxu0 0.0
        %2402 = vmatpush.xpose.msra.mxu0 0.0
        %2403 = vmatpush.xpose.msra.mxu0 0.0
        %2404 = vmatpush.xpose.msra.mxu0 0.0
        %2405 = vmatpush.xpose.msra.mxu0 0.0
        %2406 = vmatpush.xpose.msra.mxu0 0.0
        %2407 = vmatpush.xpose.msra.mxu0 0.0
        %2408 = vmatpush.xpose.msra.mxu0 0.0
        %2409 = vmatpush.xpose.msra.mxu0 0.0
        %2410 = vmatpush.xpose.msra.mxu0 0.0
        %2411 = vmatpush.xpose.msra.mxu0 0.0
        %2412 = vmatpush.xpose.msra.mxu0 0.0
        %2413 = vmatpush.xpose.msra.mxu0 0.0
        %2414 = vmatpush.xpose.msra.mxu0 0.0
        %2415 = vmatpush.xpose.msra.mxu0 0.0
        %2416 = vmatpush.xpose.msra.mxu0 %v2399
        %2417 = vmatmul.f32.gmra.mxu0 %v2397
        %v2418 = vpop.f32.mrf.mxu0
        %v2419 = vadd.f32 0.0, %v2418
        %2420 = vdwg.mxu0
        %v2421 = vmul.f32 %v2419, 0.35355338
        %v2422 = vadd.f32 %v2421, %v1341
        %v2423 = vsel %vm1312, %v2422, -inf
        %2424 = vmax.xlane.f32.xlu0 %v2423
        %v2425 = vpop.xlane.xlu0 %2424
        %v2426 = vsub.f32 %v2422, %v2425
        %v2427 = vmul.f32 %v2426, 1.442695
        %v2428 = vpow.pop %v2427
        %v2429 = vsel %vm1312, %v2428, 0.0
        %2430 = vadd.xlane.f32.xlu0 %v2429
        %v2431 = vpop.xlane.xlu0 %2430
        %v2432 = vrcp.pop %v2431
        %v2433 = vmul.f32 %v2431, %v2432
        %v2434 = vsub.f32 1.0, %v2433
        %v2435 = vmul.f32 %v2432, %v2434
        %v2436 = vadd.f32 %v2432, %v2435
        %vm2437 = vweird.f32 %v2431
        %vm2438 = vweird.f32 %v2432
        %vm2439 = vmor %vm2437, %vm2438
        %v2440 = vsel %vm2439, %v2432, %v2436
        %v2441 = vand.u32 2147483647, %v2431
        %vm2442 = vcmp.eq.f32.partialorder %v2441, 8.507059e+37
        %v2443 = vand.u32 %v2431, 2147483648
        %v2444 = vor.u32 1.1754944e-38, %v2443
        %v2445 = vsel %vm2442, %v2444, %v2440
        %v2446 = vmul.f32 %v2428, %v2445
        %2447 = vrot.lane.b32.xlu0 %v2183, 112
        %v2448 = vpop.permute.xlu0 %2447
        %v2451 = vsel %vm1312, %v2446, 0
        %2453 = vmatpush.msra.mxu0 0.0
        %2454 = vmatpush.msra.mxu0 0.0
        %2455 = vmatpush.msra.mxu0 0.0
        %2456 = vmatpush.msra.mxu0 0.0
        %2457 = vmatpush.msra.mxu0 0.0
        %2458 = vmatpush.msra.mxu0 0.0
        %2459 = vmatpush.msra.mxu0 0.0
        %2460 = vmatpush.msra.mxu0 0.0
        %2461 = vmatpush.msra.mxu0 0.0
        %2462 = vmatpush.msra.mxu0 0.0
        %2463 = vmatpush.msra.mxu0 0.0
        %2464 = vmatpush.msra.mxu0 0.0
        %2465 = vmatpush.msra.mxu0 0.0
        %2466 = vmatpush.msra.mxu0 0.0
        %2467 = vmatpush.msra.mxu0 0.0
        %2468 = vmatpush.msra.mxu0 %v2448
        %2469 = vmatmul.f32.gmra.mxu0 %v2451
        %v2470 = vpop.f32.mrf.mxu0
        %v2471 = vadd.f32 0.0, %v2470
        %2472 = vdwg.mxu0
        %v2473 = vld [vmem:[%s2261 + $0x8] sm:$0xf]
        %v2474 = vunpack.c.l.bf16 %v2473
        %v2476 = vsel %vm1312, %v2471, 0
        %2478 = vmatpush.msra.mxu0 0.0
        %2479 = vmatpush.msra.mxu0 0.0
        %2480 = vmatpush.msra.mxu0 0.0
        %2481 = vmatpush.msra.mxu0 0.0
        %2482 = vmatpush.msra.mxu0 0.0
        %2483 = vmatpush.msra.mxu0 0.0
        %2484 = vmatpush.msra.mxu0 0.0
        %2485 = vmatpush.msra.mxu0 0.0
        %2486 = vmatpush.msra.mxu0 0.0
        %2487 = vmatpush.msra.mxu0 0.0
        %2488 = vmatpush.msra.mxu0 0.0
        %2489 = vmatpush.msra.mxu0 0.0
        %2490 = vmatpush.msra.mxu0 0.0
        %2491 = vmatpush.msra.mxu0 0.0
        %2492 = vmatpush.msra.mxu0 0.0
        %2493 = vmatpush.msra.mxu0 %v2474
        %2494 = vmatmul.f32.gmra.mxu0 %v2476
        %v2495 = vpop.f32.mrf.mxu0
        %v2496 = vadd.f32 0.0, %v2495
        %2497 = vdwg.mxu0
        %v2498 = vadd.f32 %v2391, %v2496
        %2499 = vrot.lane.b32.xlu0 %v2157, 104
        %v2500 = vpop.permute.xlu0 %2499
        %2501 = vrot.lane.b32.xlu0 %v2170, 104
        %v2502 = vpop.permute.xlu0 %2501
        %v2503 = vsel %vm1312, %v2500, 0
        %v2505 = vsel %vm1312, %v2502, 0
        %2507 = vmatpush.xpose.msra.mxu0 0.0
        %2508 = vmatpush.xpose.msra.mxu0 0.0
        %2509 = vmatpush.xpose.msra.mxu0 0.0
        %2510 = vmatpush.xpose.msra.mxu0 0.0
        %2511 = vmatpush.xpose.msra.mxu0 0.0
        %2512 = vmatpush.xpose.msra.mxu0 0.0
        %2513 = vmatpush.xpose.msra.mxu0 0.0
        %2514 = vmatpush.xpose.msra.mxu0 0.0
        %2515 = vmatpush.xpose.msra.mxu0 0.0
        %2516 = vmatpush.xpose.msra.mxu0 0.0
        %2517 = vmatpush.xpose.msra.mxu0 0.0
        %2518 = vmatpush.xpose.msra.mxu0 0.0
        %2519 = vmatpush.xpose.msra.mxu0 0.0
        %2520 = vmatpush.xpose.msra.mxu0 0.0
        %2521 = vmatpush.xpose.msra.mxu0 0.0
        %2522 = vmatpush.xpose.msra.mxu0 %v2505
        %2523 = vmatmul.f32.gmra.mxu0 %v2503
        %v2524 = vpop.f32.mrf.mxu0
        %v2525 = vadd.f32 0.0, %v2524
        %2526 = vdwg.mxu0
        %v2527 = vmul.f32 %v2525, 0.35355338
        %v2528 = vadd.f32 %v2527, %v1341
        %v2529 = vsel %vm1312, %v2528, -inf
        %2530 = vmax.xlane.f32.xlu0 %v2529
        %v2531 = vpop.xlane.xlu0 %2530
        %v2532 = vsub.f32 %v2528, %v2531
        %v2533 = vmul.f32 %v2532, 1.442695
        %v2534 = vpow.pop %v2533
        %v2535 = vsel %vm1312, %v2534, 0.0
        %2536 = vadd.xlane.f32.xlu0 %v2535
        %v2537 = vpop.xlane.xlu0 %2536
        %v2538 = vrcp.pop %v2537
        %v2539 = vmul.f32 %v2537, %v2538
        %v2540 = vsub.f32 1.0, %v2539
        %v2541 = vmul.f32 %v2538, %v2540
        %v2542 = vadd.f32 %v2538, %v2541
        %vm2543 = vweird.f32 %v2537
        %vm2544 = vweird.f32 %v2538
        %vm2545 = vmor %vm2543, %vm2544
        %v2546 = vsel %vm2545, %v2538, %v2542
        %v2547 = vand.u32 2147483647, %v2537
        %vm2548 = vcmp.eq.f32.partialorder %v2547, 8.507059e+37
        %v2549 = vand.u32 %v2537, 2147483648
        %v2550 = vor.u32 1.1754944e-38, %v2549
        %v2551 = vsel %vm2548, %v2550, %v2546
        %v2552 = vmul.f32 %v2534, %v2551
        %2553 = vrot.lane.b32.xlu0 %v2183, 104
        %v2554 = vpop.permute.xlu0 %2553
        %v2557 = vsel %vm1312, %v2552, 0
        %2559 = vmatpush.msra.mxu0 0.0
        %2560 = vmatpush.msra.mxu0 0.0
        %2561 = vmatpush.msra.mxu0 0.0
        %2562 = vmatpush.msra.mxu0 0.0
        %2563 = vmatpush.msra.mxu0 0.0
        %2564 = vmatpush.msra.mxu0 0.0
        %2565 = vmatpush.msra.mxu0 0.0
        %2566 = vmatpush.msra.mxu0 0.0
        %2567 = vmatpush.msra.mxu0 0.0
        %2568 = vmatpush.msra.mxu0 0.0
        %2569 = vmatpush.msra.mxu0 0.0
        %2570 = vmatpush.msra.mxu0 0.0
        %2571 = vmatpush.msra.mxu0 0.0
        %2572 = vmatpush.msra.mxu0 0.0
        %2573 = vmatpush.msra.mxu0 0.0
        %2574 = vmatpush.msra.mxu0 %v2554
        %2575 = vmatmul.f32.gmra.mxu0 %v2557
        %v2576 = vpop.f32.mrf.mxu0
        %v2577 = vadd.f32 0.0, %v2576
        %2578 = vdwg.mxu0
        %v2579 = vld [vmem:[%s2261 + $0xc] sm:$0xf]
        %v2580 = vunpack.c.l.bf16 %v2579
        %v2582 = vsel %vm1312, %v2577, 0
        %2584 = vmatpush.msra.mxu0 0.0
        %2585 = vmatpush.msra.mxu0 0.0
        %2586 = vmatpush.msra.mxu0 0.0
        %2587 = vmatpush.msra.mxu0 0.0
        %2588 = vmatpush.msra.mxu0 0.0
        %2589 = vmatpush.msra.mxu0 0.0
        %2590 = vmatpush.msra.mxu0 0.0
        %2591 = vmatpush.msra.mxu0 0.0
        %2592 = vmatpush.msra.mxu0 0.0
        %2593 = vmatpush.msra.mxu0 0.0
        %2594 = vmatpush.msra.mxu0 0.0
        %2595 = vmatpush.msra.mxu0 0.0
        %2596 = vmatpush.msra.mxu0 0.0
        %2597 = vmatpush.msra.mxu0 0.0
        %2598 = vmatpush.msra.mxu0 0.0
        %2599 = vmatpush.msra.mxu0 %v2580
        %2600 = vmatmul.f32.gmra.mxu0 %v2582
        %v2601 = vpop.f32.mrf.mxu0
        %v2602 = vadd.f32 0.0, %v2601
        %2603 = vdwg.mxu0
        %v2604 = vadd.f32 %v2498, %v2602
        %s2605 = scalar_lea.vmem %s17, 1
        %v2606 = vld [vmem:[%s2605] sm:$0x1]
        %v2608 = vperm.slane %v2606, 0
        %v2610 = vadd.f32 %v2604, %v2608
        %v2611 = vadd.f32 %v2610, %v1975
        %s2612 = scalar_lea.vmem %s19, 1
        %v2613 = vld [vmem:[%s2612] sm:$0x1]
        %s2614 = scalar_lea.vmem %s21, 1
        %v2615 = vld [vmem:[%s2614] sm:$0x1]
        %2616 = vadd.xlane.f32.xlu0 %v2611
        %v2617 = vpop.xlane.xlu0 %2616
        %v2618 = vmul.f32 %v2617, 0.03125
        %v2619 = vsub.f32 %v2611, %v2618
        %v2620 = vmul.f32 %v2619, %v1070
        %v2621 = vmul.f32 %v2620, %v2620
        %2622 = vadd.xlane.f32.xlu0 %v2621
        %v2623 = vpop.xlane.xlu0 %2622
        %v2624 = vmul.f32 %v2623, 0.03125
        %v2625 = vadd.f32 %v2624, 1e-12
        %v2626 = vrsqrt.pop %v2625
        %v2627 = vmul.f32 %v2626, %v2625
        %v2628 = vmul.f32 %v2627, %v2626
        %v2629 = vmul.f32 0.5, %v2628
        %v2630 = vsub.f32 1.5, %v2629
        %v2631 = vmul.f32 %v2626, %v2630
        %vm2632 = vweird.f32 %v2625
        %vm2633 = vweird.f32 %v2626
        %vm2634 = vmor %vm2632, %vm2633
        %v2635 = vsel %vm2634, %v2626, %v2631
        %v2636 = vmul.f32 %v2620, %v2635
        %v2638 = vperm.slane %v2613, 0
        %v2640 = vmul.f32 %v2636, %v2638
        %v2642 = vperm.slane %v2615, 0
        %v2644 = vadd.f32 %v2640, %v2642
        %v2645 = vpack.c.bf16 %v2644, %v2644
        %s2646 = scalar_lea.vmem %s23, 64
        %v2647 = vld [vmem:[%s2646] sm:$0xf]
        %v2648 = vld [vmem:[%s2646 + $0x4] sm:$0xf]
        %v2649 = vld [vmem:[%s2646 + $0x8] sm:$0xf]
        %v2650 = vld [vmem:[%s2646 + $0xc] sm:$0xf]
        %v2651 = vld [vmem:[%s2646 + $0x10] sm:$0xf]
        %v2652 = vld [vmem:[%s2646 + $0x14] sm:$0xf]
        %v2653 = vld [vmem:[%s2646 + $0x18] sm:$0xf]
        %v2654 = vld [vmem:[%s2646 + $0x1c] sm:$0xf]
        %v2655 = vld [vmem:[%s2646 + $0x20] sm:$0xf]
        %v2656 = vld [vmem:[%s2646 + $0x24] sm:$0xf]
        %v2657 = vld [vmem:[%s2646 + $0x28] sm:$0xf]
        %v2658 = vld [vmem:[%s2646 + $0x2c] sm:$0xf]
        %v2659 = vld [vmem:[%s2646 + $0x30] sm:$0xf]
        %v2660 = vld [vmem:[%s2646 + $0x34] sm:$0xf]
        %v2661 = vld [vmem:[%s2646 + $0x38] sm:$0xf]
        %v2662 = vld [vmem:[%s2646 + $0x3c] sm:$0xf]
        %s2663 = scalar_lea.vmem %s25, 1
        %v2664 = vld [vmem:[%s2663] sm:$0x1]
        %v2666 = vperm.slane %v2664, 0
        %v2684 = vunpack.c.l.b16 %v2647
        %v2685 = vunpack.c.l.b16 %v2648
        %v2686 = vunpack.c.l.b16 %v2649
        %v2687 = vunpack.c.l.b16 %v2650
        %v2688 = vunpack.c.l.b16 %v2651
        %v2689 = vunpack.c.l.b16 %v2652
        %v2690 = vunpack.c.l.b16 %v2653
        %v2691 = vunpack.c.l.b16 %v2654
        %v2692 = vunpack.c.l.b16 %v2655
        %v2693 = vunpack.c.l.b16 %v2656
        %v2694 = vunpack.c.l.b16 %v2657
        %v2695 = vunpack.c.l.b16 %v2658
        %v2696 = vunpack.c.l.b16 %v2659
        %v2697 = vunpack.c.l.b16 %v2660
        %v2698 = vunpack.c.l.b16 %v2661
        %v2699 = vunpack.c.l.b16 %v2662
        %v2700 = vpack.c.b16 %v2685, %v2684
        %v2701 = vpack.c.b16 %v2687, %v2686
        %v2702 = vpack.c.b16 %v2689, %v2688
        %v2703 = vpack.c.b16 %v2691, %v2690
        %v2704 = vpack.c.b16 %v2693, %v2692
        %v2705 = vpack.c.b16 %v2695, %v2694
        %v2706 = vpack.c.b16 %v2697, %v2696
        %v2707 = vpack.c.b16 %v2699, %v2698
        %2716 = vmatpush.bf16.msra.mxu0 %v2707
        %2717 = vmatpush.bf16.msra.mxu0 %v2706
        %2718 = vmatpush.bf16.msra.mxu0 %v2705
        %2719 = vmatpush.bf16.msra.mxu0 %v2704
        %2720 = vmatpush.bf16.msra.mxu0 %v2703
        %2721 = vmatpush.bf16.msra.mxu0 %v2702
        %2722 = vmatpush.bf16.msra.mxu0 %v2701
        %2723 = vmatpush.bf16.msra.mxu0 %v2700
        %2724 = vmatmul.bf16.gmra.mxu0 %v2645
        %v2725 = vpop.f32.mrf.mxu0
        %v2726 = vadd.f32 %v2666, %v2725
        %v2727 = vpop.f32.mrf.mxu0
        %2728 = vdwg.mxu0
        %v2729 = vmul.f32 %v2726, 0.5
        %v2730 = vmul.f32 %v2726, 0.044715
        %v2731 = vmul.f32 %v2730, %v2726
        %v2732 = vmul.f32 %v2731, %v2726
        %v2733 = vadd.f32 %v2726, %v2732
        %v2734 = vmul.f32 %v2733, 0.7978846
        %v2735 = vtanh.pop %v2734
        %v2736 = vadd.f32 %v2735, 1.0
        %v2737 = vmul.f32 %v2729, %v2736
        %v2738 = vpack.c.bf16 %v2737, %v2737
        %s2739 = scalar_lea.vmem [#allocation5], 64
        %v2740 = vld [vmem:[%s2739] sm:$0xf]
        %v2741 = vld [vmem:[%s2739 + $0x4] sm:$0xf]
        %v2742 = vld [vmem:[%s2739 + $0x8] sm:$0xf]
        %v2743 = vld [vmem:[%s2739 + $0xc] sm:$0xf]
        %v2744 = vld [vmem:[%s2739 + $0x10] sm:$0xf]
        %v2745 = vld [vmem:[%s2739 + $0x14] sm:$0xf]
        %v2746 = vld [vmem:[%s2739 + $0x18] sm:$0xf]
        %v2747 = vld [vmem:[%s2739 + $0x1c] sm:$0xf]
        %v2748 = vld [vmem:[%s2739 + $0x20] sm:$0xf]
        %v2749 = vld [vmem:[%s2739 + $0x24] sm:$0xf]
        %v2750 = vld [vmem:[%s2739 + $0x28] sm:$0xf]
        %v2751 = vld [vmem:[%s2739 + $0x2c] sm:$0xf]
        %v2752 = vld [vmem:[%s2739 + $0x30] sm:$0xf]
        %v2753 = vld [vmem:[%s2739 + $0x34] sm:$0xf]
        %v2754 = vld [vmem:[%s2739 + $0x38] sm:$0xf]
        %v2755 = vld [vmem:[%s2739 + $0x3c] sm:$0xf]
        %s2756 = scalar_lea.vmem %s29, 1
        %v2757 = vld [vmem:[%s2756] sm:$0x1]
        %v2759 = vperm.slane %v2757, 0
        %v2777 = vunpack.c.l.b16 %v2740
        %v2778 = vunpack.c.l.b16 %v2741
        %v2779 = vunpack.c.l.b16 %v2742
        %v2780 = vunpack.c.l.b16 %v2743
        %v2781 = vunpack.c.l.b16 %v2744
        %v2782 = vunpack.c.l.b16 %v2745
        %v2783 = vunpack.c.l.b16 %v2746
        %v2784 = vunpack.c.l.b16 %v2747
        %v2785 = vunpack.c.l.b16 %v2748
        %v2786 = vunpack.c.l.b16 %v2749
        %v2787 = vunpack.c.l.b16 %v2750
        %v2788 = vunpack.c.l.b16 %v2751
        %v2789 = vunpack.c.l.b16 %v2752
        %v2790 = vunpack.c.l.b16 %v2753
        %v2791 = vunpack.c.l.b16 %v2754
        %v2792 = vunpack.c.l.b16 %v2755
        %v2793 = vpack.c.b16 %v2778, %v2777
        %v2794 = vpack.c.b16 %v2780, %v2779
        %v2795 = vpack.c.b16 %v2782, %v2781
        %v2796 = vpack.c.b16 %v2784, %v2783
        %v2797 = vpack.c.b16 %v2786, %v2785
        %v2798 = vpack.c.b16 %v2788, %v2787
        %v2799 = vpack.c.b16 %v2790, %v2789
        %v2800 = vpack.c.b16 %v2792, %v2791
        %2809 = vmatpush.bf16.msra.mxu0 %v2800
        %2810 = vmatpush.bf16.msra.mxu0 %v2799
        %2811 = vmatpush.bf16.msra.mxu0 %v2798
        %2812 = vmatpush.bf16.msra.mxu0 %v2797
        %2813 = vmatpush.bf16.msra.mxu0 %v2796
        %2814 = vmatpush.bf16.msra.mxu0 %v2795
        %2815 = vmatpush.bf16.msra.mxu0 %v2794
        %2816 = vmatpush.bf16.msra.mxu0 %v2793
        %2817 = vmatmul.bf16.gmra.mxu0 %v2738
        %v2818 = vpop.f32.mrf.mxu0
        %v2819 = vadd.f32 %v2759, %v2818
        %v2820 = vpop.f32.mrf.mxu0
        %2821 = vdwg.mxu0
        %v2822 = vadd.f32 %v2819, %v2644
        %s2823 = scalar_lea.vmem %s31, 1
        %v2824 = vld [vmem:[%s2823] sm:$0x1]
        %s2825 = scalar_lea.vmem %s33, 1
        %v2826 = vld [vmem:[%s2825] sm:$0x1]
        %2827 = vadd.xlane.f32.xlu0 %v2822
        %v2828 = vpop.xlane.xlu0 %2827
        %v2829 = vmul.f32 %v2828, 0.03125
        %v2830 = vsub.f32 %v2822, %v2829
        %v2831 = vmul.f32 %v2830, %v1070
        %v2832 = vmul.f32 %v2831, %v2831
        %2833 = vadd.xlane.f32.xlu0 %v2832
        %v2834 = vpop.xlane.xlu0 %2833
        %v2835 = vmul.f32 %v2834, 0.03125
        %v2836 = vadd.f32 %v2835, 1e-12
        %v2837 = vrsqrt.pop %v2836
        %v2838 = vmul.f32 %v2837, %v2836
        %v2839 = vmul.f32 %v2838, %v2837
        %v2840 = vmul.f32 0.5, %v2839
        %v2841 = vsub.f32 1.5, %v2840
        %v2842 = vmul.f32 %v2837, %v2841
        %vm2843 = vweird.f32 %v2836
        %vm2844 = vweird.f32 %v2837
        %vm2845 = vmor %vm2843, %vm2844
        %v2846 = vsel %vm2845, %v2837, %v2842
        %v2847 = vmul.f32 %v2831, %v2846
        %v2849 = vperm.slane %v2824, 0
        %v2851 = vmul.f32 %v2847, %v2849
        %v2853 = vperm.slane %v2826, 0
        %v2855 = vadd.f32 %v2851, %v2853
        %2856 = vst [vmem:[%s1032] sm:$0xff] %v2855
        %v2857 = vpack.c.bf16 %v2855, %v2855
        %v2858 = vld [vmem:[%s35] sm:$0xf]
        %v2859 = vld [vmem:[%s35 + $0x4] sm:$0xf]
        %v2860 = vld [vmem:[%s35 + $0x8] sm:$0xf]
        %v2861 = vld [vmem:[%s35 + $0xc] sm:$0xf]
        %v2862 = vld [vmem:[%s35 + $0x10] sm:$0xf]
        %v2863 = vld [vmem:[%s35 + $0x14] sm:$0xf]
        %v2864 = vld [vmem:[%s35 + $0x18] sm:$0xf]
        %v2865 = vld [vmem:[%s35 + $0x1c] sm:$0xf]
        %v2866 = vld [vmem:[%s35 + $0x20] sm:$0xf]
        %v2867 = vld [vmem:[%s35 + $0x24] sm:$0xf]
        %v2868 = vld [vmem:[%s35 + $0x28] sm:$0xf]
        %v2869 = vld [vmem:[%s35 + $0x2c] sm:$0xf]
        %v2870 = vld [vmem:[%s35 + $0x30] sm:$0xf]
        %v2871 = vld [vmem:[%s35 + $0x34] sm:$0xf]
        %v2872 = vld [vmem:[%s35 + $0x38] sm:$0xf]
        %v2873 = vld [vmem:[%s35 + $0x3c] sm:$0xf]
        %v2874 = vld [vmem:[%s37] sm:$0x1]
        %v2891 = vunpack.c.l.b16 %v2858
        %v2892 = vunpack.c.l.b16 %v2859
        %v2893 = vunpack.c.l.b16 %v2860
        %v2894 = vunpack.c.l.b16 %v2861
        %v2895 = vunpack.c.l.b16 %v2862
        %v2896 = vunpack.c.l.b16 %v2863
        %v2897 = vunpack.c.l.b16 %v2864
        %v2898 = vunpack.c.l.b16 %v2865
        %v2899 = vunpack.c.l.b16 %v2866
        %v2900 = vunpack.c.l.b16 %v2867
        %v2901 = vunpack.c.l.b16 %v2868
        %v2902 = vunpack.c.l.b16 %v2869
        %v2903 = vunpack.c.l.b16 %v2870
        %v2904 = vunpack.c.l.b16 %v2871
        %v2905 = vunpack.c.l.b16 %v2872
        %v2906 = vunpack.c.l.b16 %v2873
        %v2907 = vpack.c.b16 %v2892, %v2891
        %v2908 = vpack.c.b16 %v2894, %v2893
        %v2909 = vpack.c.b16 %v2896, %v2895
        %v2910 = vpack.c.b16 %v2898, %v2897
        %v2911 = vpack.c.b16 %v2900, %v2899
        %v2912 = vpack.c.b16 %v2902, %v2901
        %v2913 = vpack.c.b16 %v2904, %v2903
        %v2914 = vpack.c.b16 %v2906, %v2905
        %2923 = vmatpush.bf16.msra.mxu0 %v2914
        %2924 = vmatpush.bf16.msra.mxu0 %v2913
        %2925 = vmatpush.bf16.msra.mxu0 %v2912
        %2926 = vmatpush.bf16.msra.mxu0 %v2911
        %2927 = vmatpush.bf16.msra.mxu0 %v2910
        %2928 = vmatpush.bf16.msra.mxu0 %v2909
        %2929 = vmatpush.bf16.msra.mxu0 %v2908
        %2930 = vmatpush.bf16.msra.mxu0 %v2907
        %2931 = vmatmul.bf16.gmra.mxu0 %v2857
        %v2932 = vpop.f32.mrf.mxu0
        %v2933 = vadd.f32 %v2874, %v2932
        %v2934 = vpop.f32.mrf.mxu0
        %2935 = vdwg.mxu0
        %v2936 = vtanh.pop %v2933
        %2937 = vst [vmem:[%s1038] sm:$0x1] %v2936
        %v2938 = vpack.c.bf16 %v2936, %v2936
        %v2939 = vld [vmem:[#allocation10] sm:$0xf]
        %v2940 = vld [vmem:[#allocation10 + $0x4] sm:$0xf]
        %v2941 = vld [vmem:[#allocation10 + $0x8] sm:$0xf]
        %v2942 = vld [vmem:[#allocation10 + $0xc] sm:$0xf]
        %v2943 = vld [vmem:[#allocation10 + $0x10] sm:$0xf]
        %v2944 = vld [vmem:[#allocation10 + $0x14] sm:$0xf]
        %v2945 = vld [vmem:[#allocation10 + $0x18] sm:$0xf]
        %v2946 = vld [vmem:[#allocation10 + $0x1c] sm:$0xf]
        %v2947 = vld [vmem:[#allocation10 + $0x20] sm:$0xf]
        %v2948 = vld [vmem:[#allocation10 + $0x24] sm:$0xf]
        %v2949 = vld [vmem:[#allocation10 + $0x28] sm:$0xf]
        %v2950 = vld [vmem:[#allocation10 + $0x2c] sm:$0xf]
        %v2951 = vld [vmem:[#allocation10 + $0x30] sm:$0xf]
        %v2952 = vld [vmem:[#allocation10 + $0x34] sm:$0xf]
        %v2953 = vld [vmem:[#allocation10 + $0x38] sm:$0xf]
        %v2954 = vld [vmem:[#allocation10 + $0x3c] sm:$0xf]
        %v2955 = vld [vmem:[%s53] sm:$0x1]
        %v2972 = vunpack.c.l.b16 %v2939
        %v2973 = vunpack.c.l.b16 %v2940
        %v2974 = vunpack.c.l.b16 %v2941
        %v2975 = vunpack.c.l.b16 %v2942
        %v2976 = vunpack.c.l.b16 %v2943
        %v2977 = vunpack.c.l.b16 %v2944
        %v2978 = vunpack.c.l.b16 %v2945
        %v2979 = vunpack.c.l.b16 %v2946
        %v2980 = vunpack.c.l.b16 %v2947
        %v2981 = vunpack.c.l.b16 %v2948
        %v2982 = vunpack.c.l.b16 %v2949
        %v2983 = vunpack.c.l.b16 %v2950
        %v2984 = vunpack.c.l.b16 %v2951
        %v2985 = vunpack.c.l.b16 %v2952
        %v2986 = vunpack.c.l.b16 %v2953
        %v2987 = vunpack.c.l.b16 %v2954
        %v2988 = vpack.c.b16 %v2973, %v2972
        %v2989 = vpack.c.b16 %v2975, %v2974
        %v2990 = vpack.c.b16 %v2977, %v2976
        %v2991 = vpack.c.b16 %v2979, %v2978
        %v2992 = vpack.c.b16 %v2981, %v2980
        %v2993 = vpack.c.b16 %v2983, %v2982
        %v2994 = vpack.c.b16 %v2985, %v2984
        %v2995 = vpack.c.b16 %v2987, %v2986
        %3004 = vmatpush.bf16.msra.mxu0 %v2995
        %3005 = vmatpush.bf16.msra.mxu0 %v2994
        %3006 = vmatpush.bf16.msra.mxu0 %v2993
        %3007 = vmatpush.bf16.msra.mxu0 %v2992
        %3008 = vmatpush.bf16.msra.mxu0 %v2991
        %3009 = vmatpush.bf16.msra.mxu0 %v2990
        %3010 = vmatpush.bf16.msra.mxu0 %v2989
        %3011 = vmatpush.bf16.msra.mxu0 %v2988
        %3012 = vmatmul.bf16.gmra.mxu0 %v2938
        %v3013 = vpop.f32.mrf.mxu0
        %v3014 = vadd.f32 %v2955, %v3013
        %v3015 = vpop.f32.mrf.mxu0
        %3016 = vdwg.mxu0
        %3017 = vst [vmem:[%s1062] sm:$0x1] %v3014
        %v3018 = vld [vmem:[#allocation7] sm:$0xf]
        %v3019 = vld [vmem:[#allocation7 + $0x4] sm:$0xf]
        %v3020 = vld [vmem:[#allocation7 + $0x8] sm:$0xf]
        %v3021 = vld [vmem:[#allocation7 + $0xc] sm:$0xf]
        %v3022 = vld [vmem:[#allocation7 + $0x10] sm:$0xf]
        %v3023 = vld [vmem:[#allocation7 + $0x14] sm:$0xf]
        %v3024 = vld [vmem:[#allocation7 + $0x18] sm:$0xf]
        %v3025 = vld [vmem:[#allocation7 + $0x1c] sm:$0xf]
        %v3026 = vld [vmem:[#allocation7 + $0x20] sm:$0xf]
        %v3027 = vld [vmem:[#allocation7 + $0x24] sm:$0xf]
        %v3028 = vld [vmem:[#allocation7 + $0x28] sm:$0xf]
        %v3029 = vld [vmem:[#allocation7 + $0x2c] sm:$0xf]
        %v3030 = vld [vmem:[#allocation7 + $0x30] sm:$0xf]
        %v3031 = vld [vmem:[#allocation7 + $0x34] sm:$0xf]
        %v3032 = vld [vmem:[#allocation7 + $0x38] sm:$0xf]
        %v3033 = vld [vmem:[#allocation7 + $0x3c] sm:$0xf]
        %v3034 = vld [vmem:[%s41] sm:$0x1]
        %v3036 = vperm.slane %v3034, 0
        %v3054 = vunpack.c.l.b16 %v3018
        %v3055 = vunpack.c.l.b16 %v3019
        %v3056 = vunpack.c.l.b16 %v3020
        %v3057 = vunpack.c.l.b16 %v3021
        %v3058 = vunpack.c.l.b16 %v3022
        %v3059 = vunpack.c.l.b16 %v3023
        %v3060 = vunpack.c.l.b16 %v3024
        %v3061 = vunpack.c.l.b16 %v3025
        %v3062 = vunpack.c.l.b16 %v3026
        %v3063 = vunpack.c.l.b16 %v3027
        %v3064 = vunpack.c.l.b16 %v3028
        %v3065 = vunpack.c.l.b16 %v3029
        %v3066 = vunpack.c.l.b16 %v3030
        %v3067 = vunpack.c.l.b16 %v3031
        %v3068 = vunpack.c.l.b16 %v3032
        %v3069 = vunpack.c.l.b16 %v3033
        %v3070 = vpack.c.b16 %v3055, %v3054
        %v3071 = vpack.c.b16 %v3057, %v3056
        %v3072 = vpack.c.b16 %v3059, %v3058
        %v3073 = vpack.c.b16 %v3061, %v3060
        %v3074 = vpack.c.b16 %v3063, %v3062
        %v3075 = vpack.c.b16 %v3065, %v3064
        %v3076 = vpack.c.b16 %v3067, %v3066
        %v3077 = vpack.c.b16 %v3069, %v3068
        %3086 = vmatpush.bf16.msra.mxu0 %v3077
        %3087 = vmatpush.bf16.msra.mxu0 %v3076
        %3088 = vmatpush.bf16.msra.mxu0 %v3075
        %3089 = vmatpush.bf16.msra.mxu0 %v3074
        %3090 = vmatpush.bf16.msra.mxu0 %v3073
        %3091 = vmatpush.bf16.msra.mxu0 %v3072
        %3092 = vmatpush.bf16.msra.mxu0 %v3071
        %3093 = vmatpush.bf16.msra.mxu0 %v3070
        %3094 = vmatmul.bf16.gmra.mxu0 %v2857
        %v3095 = vpop.f32.mrf.mxu0
        %v3096 = vadd.f32 %v3036, %v3095
        %v3097 = vpop.f32.mrf.mxu0
        %3098 = vdwg.mxu0
        %v3099 = vmul.f32 %v3096, 0.5
        %v3100 = vmul.f32 %v3096, 0.044715
        %v3101 = vmul.f32 %v3100, %v3096
        %v3102 = vmul.f32 %v3101, %v3096
        %v3103 = vadd.f32 %v3096, %v3102
        %v3104 = vmul.f32 %v3103, 0.7978846
        %v3105 = vtanh.pop %v3104
        %v3106 = vadd.f32 %v3105, 1.0
        %v3107 = vmul.f32 %v3099, %v3106
        %v3108 = vld [vmem:[%s43] sm:$0x1]
        %v3109 = vld [vmem:[%s45] sm:$0x1]
        %3110 = vadd.xlane.f32.xlu0 %v3107
        %v3111 = vpop.xlane.xlu0 %3110
        %v3112 = vmul.f32 %v3111, 0.03125
        %v3113 = vsub.f32 %v3107, %v3112
        %v3114 = vmul.f32 %v3113, %v1070
        %v3115 = vmul.f32 %v3114, %v3114
        %3116 = vadd.xlane.f32.xlu0 %v3115
        %v3117 = vpop.xlane.xlu0 %3116
        %v3118 = vmul.f32 %v3117, 0.03125
        %v3119 = vadd.f32 %v3118, 1e-12
        %v3120 = vrsqrt.pop %v3119
        %v3121 = vmul.f32 %v3120, %v3119
        %v3122 = vmul.f32 %v3121, %v3120
        %v3123 = vmul.f32 0.5, %v3122
        %v3124 = vsub.f32 1.5, %v3123
        %v3125 = vmul.f32 %v3120, %v3124
        %vm3126 = vweird.f32 %v3119
        %vm3127 = vweird.f32 %v3120
        %vm3128 = vmor %vm3126, %vm3127
        %v3129 = vsel %vm3128, %v3120, %v3125
        %v3130 = vmul.f32 %v3114, %v3129
        %v3132 = vperm.slane %v3108, 0
        %v3134 = vmul.f32 %v3130, %v3132
        %v3136 = vperm.slane %v3109, 0
        %v3138 = vadd.f32 %v3134, %v3136
        %v3139 = vpack.c.bf16 %v3138, %v3138
        %v3140 = vld [vmem:[#allocation8] sm:$0xf]
        %v3141 = vld [vmem:[#allocation8 + $0x4] sm:$0xf]
        %v3142 = vld [vmem:[#allocation8 + $0x8] sm:$0xf]
        %v3143 = vld [vmem:[#allocation8 + $0xc] sm:$0xf]
        %v3144 = vld [vmem:[#allocation8 + $0x10] sm:$0xf]
        %v3145 = vld [vmem:[#allocation8 + $0x14] sm:$0xf]
        %v3146 = vld [vmem:[#allocation8 + $0x18] sm:$0xf]
        %v3147 = vld [vmem:[#allocation8 + $0x1c] sm:$0xf]
        %v3148 = vld [vmem:[#allocation8 + $0x20] sm:$0xf]
        %v3149 = vld [vmem:[#allocation8 + $0x24] sm:$0xf]
        %v3150 = vld [vmem:[#allocation8 + $0x28] sm:$0xf]
        %v3151 = vld [vmem:[#allocation8 + $0x2c] sm:$0xf]
        %v3152 = vld [vmem:[#allocation8 + $0x30] sm:$0xf]
        %v3153 = vld [vmem:[#allocation8 + $0x34] sm:$0xf]
        %v3154 = vld [vmem:[#allocation8 + $0x38] sm:$0xf]
        %v3155 = vld [vmem:[#allocation8 + $0x3c] sm:$0xf]
        %v3156 = vld [vmem:[%s49] sm:$0x1]
        %v3158 = vperm.slane %v3156, 0
        %v3176 = vunpack.c.l.b16 %v3140
        %v3177 = vunpack.c.l.b16 %v3141
        %v3178 = vunpack.c.l.b16 %v3142
        %v3179 = vunpack.c.l.b16 %v3143
        %v3180 = vunpack.c.l.b16 %v3144
        %v3181 = vunpack.c.l.b16 %v3145
        %v3182 = vunpack.c.l.b16 %v3146
        %v3183 = vunpack.c.l.b16 %v3147
        %v3184 = vunpack.c.l.b16 %v3148
        %v3185 = vunpack.c.l.b16 %v3149
        %v3186 = vunpack.c.l.b16 %v3150
        %v3187 = vunpack.c.l.b16 %v3151
        %v3188 = vunpack.c.l.b16 %v3152
        %v3189 = vunpack.c.l.b16 %v3153
        %v3190 = vunpack.c.l.b16 %v3154
        %v3191 = vunpack.c.l.b16 %v3155
        %v3192 = vpack.c.b16 %v3177, %v3176
        %v3193 = vpack.c.b16 %v3179, %v3178
        %v3194 = vpack.c.b16 %v3181, %v3180
        %v3195 = vpack.c.b16 %v3183, %v3182
        %v3196 = vpack.c.b16 %v3185, %v3184
        %v3197 = vpack.c.b16 %v3187, %v3186
        %v3198 = vpack.c.b16 %v3189, %v3188
        %v3199 = vpack.c.b16 %v3191, %v3190
        %3208 = vmatpush.bf16.msra.mxu0 %v3199
        %3209 = vmatpush.bf16.msra.mxu0 %v3198
        %3210 = vmatpush.bf16.msra.mxu0 %v3197
        %3211 = vmatpush.bf16.msra.mxu0 %v3196
        %3212 = vmatpush.bf16.msra.mxu0 %v3195
        %3213 = vmatpush.bf16.msra.mxu0 %v3194
        %3214 = vmatpush.bf16.msra.mxu0 %v3193
        %3215 = vmatpush.bf16.msra.mxu0 %v3192
        %3216 = vmatmul.bf16.gmra.mxu0 %v3139
        %v3217 = vpop.f32.mrf.mxu0
        %v3218 = vadd.f32 %v3158, %v3217
        %v3219 = vpop.f32.mrf.mxu0
        %3220 = vdwg.mxu0
        %v3221 = vld [vmem:[%s1059] sm:$0xff]
        %vm3222 = vcmp.lt.s32.totalorder %v1067, 100
        %v3223 = vsel %vm3222, %v3218, -1e+30
        %3224 = vmax.xlane.f32.xlu0 %v3223
        %v3225 = vpop.xlane.xlu0 %3224
        %v3226 = vsub.f32 %v3223, %v3225
        %v3227 = vmul.f32 %v3226, 1.442695
        %v3228 = vpow.pop %v3227
        %3229 = vadd.xlane.f32.xlu0 %v3228
        %v3230 = vpop.xlane.xlu0 %3229
        %v3231 = vlog2.pop %v3230
        %v3232 = vmul.f32 %v3231, 0.6931472
        %v3233 = vadd.f32 %v3225, %v3232
        %3234 = vset.pattern.permute.xlu0 0
        %3235 = vperm.xlu0 %3234, %v3221
        %v3236 = vpop.permute.xlu0 %3235
        %vm3237 = vcmp.eq.s32.totalorder %v1067, %v3236
        %v3238 = vsel %vm3237, %v3223, 0.0
        %3239 = vadd.xlane.f32.xlu0 %v3238
        %v3240 = vpop.xlane.xlu0 %3239
        %vm3241 = vcmp.ne.s32.totalorder %v3221, 0
        %v3242 = vsel %vm3241, 1, 0
        %v3243 = vcvt.s32.f32 %v3242
        %v3244 = vsub.f32 %v3233, %v3240
        %v3245 = vmul.f32 %v3244, %v3243
        %vm3246 = vcmask 7168
        %v3247 = vsel %vm3246, %v3245, 0.0
        %v3248 = vrot.slane %v3247, 4
        %v3249 = vadd.f32 %v3247, %v3248
        %v3250 = vrot.slane %v3249, 2
        %v3251 = vadd.f32 %v3249, %v3250
        %v3252 = vrot.slane %v3251, 1
        %v3253 = vadd.f32 %v3251, %v3252
        %v3254 = vsel %vm3246, %v3243, 0.0
        %v3255 = vrot.slane %v3254, 4
        %v3256 = vadd.f32 %v3254, %v3255
        %v3257 = vrot.slane %v3256, 2
        %v3258 = vadd.f32 %v3256, %v3257
        %v3259 = vrot.slane %v3258, 1
        %v3260 = vadd.f32 %v3258, %v3259
        %vm3261 = vcmp.eq.s32.totalorder %v1067, 0
        %3263 = vset.pattern.permute.xlu0 0
        %3264 = vperm.xlu0 %3263, %v3253
        %v3265 = vpop.permute.xlu0 %3264
        %v3267 = vsel %vm3261, %v3265, 0.0
        %vm3268 = vcmp.eq.s32.totalorder %v1067, 1
        %3270 = vset.pattern.permute.xlu0 0
        %3271 = vperm.xlu0 %3270, %v3260
        %v3272 = vpop.permute.xlu0 %3271
        %v3274 = vsel %vm3268, %v3272, 0.0
        %v3275 = vadd.f32 %v3267, %v3274
        %3276 = vst [vmem:[%s1065] sm:$0x1] %v3275
        %s3277 = sand.u32 %s672, 1
        %s3278 = scalar_lea.sflag [#allocation4], %s3277
        %s3279 = sand.u32 %s672, 1
        %s3280 = smul.addr %s3279, 8
        %s3281 = scalar_lea.vmem [#allocation11], %s3280
        %s3282 = sand.u32 %s698, 1
        %s3283 = scalar_lea.sflag [#allocation13], %s3282
        %s3284 = sand.u32 %s698, 1
        %s3285 = scalar_lea.vmem [#allocation12], %s3284
        %p3286 = scmp.lt.s32.totalorder %s82, 1
        %s3287 = scalar_select %p3286, %s82, 1
        %s3288 = scalar_lea.vmem %s59, %s3287
        %p3289 = scmp.lt.s32.totalorder %s82, 1
        %s3290 = scalar_select %p3289, %s82, 1
        %s3291 = scalar_lea.vmem %s61, %s3290
        // Predicated region
        $region149: #{forward.1} parent=127 // pred_check
          %p3292 = pneg %p682
        $region150: #{forward.1} parent=127 // pred_check_branch
          %3294 = sbr.rel (%p3292) target = $region152
        $region151: #{forward.1} parent=127 // pred_region
          %3296 = vsyncadd %s3278, 0
          %s3297 = smul.addr %s82, 8
          %s3298 = scalar_lea.hbm %s55, %s3297
          %s3300 = sshll.u32 %s3281, 4
          %s3301 = int_to_ptr.vmem [resolvable:$true] %s3300
          %s3302 = sshll.u32 %s3298, 4
          %s3303 = int_to_ptr.hbm [resolvable:$true] %s3302
          %3305 = dma.vmem_to_hbm [thread:$0]  %s3301, 128, %s3303, %s3278
        $region152: #{forward.1} parent=127 // pred_fallthru
          _
        // Predicated region
        $region153: #{forward.1} parent=127 // pred_check
          %p3306 = pneg %p708
        $region154: #{forward.1} parent=127 // pred_check_branch
          %3308 = sbr.rel (%p3306) target = $region156
        $region155: #{forward.1} parent=127 // pred_region
          %3310 = vsyncadd %s3283, 0
          %s3311 = scalar_lea.hbm %s57, %s82
          %s3313 = sshll.u32 %s3285, 4
          %s3314 = int_to_ptr.vmem [resolvable:$true] %s3313
          %s3315 = sshll.u32 %s3311, 4
          %s3316 = int_to_ptr.hbm [resolvable:$true] %s3315
          %3318 = dma.vmem_to_hbm [thread:$0]  %s3314, 16, %s3316, %s3283
        $region156: #{forward.1} parent=127 // pred_fallthru
          _
        // Predicated region
        $region157: #{forward.1} parent=127 // pred_check
          %p3319 = pneg %p734
        $region158: #{forward.1} parent=127 // pred_check_branch
          %3321 = sbr.rel (%p3319) target = $region160
        $region159: #{forward.1} parent=127 // pred_region
          _
        $region160: #{forward.1} parent=127 // pred_fallthru
          _
        // Predicated region
        $region161: #{forward.1} parent=127 // pred_check
          %p3322 = pneg %p760
        $region162: #{forward.1} parent=127 // pred_check_branch
          %3324 = sbr.rel (%p3322) target = $region164
        $region163: #{forward.1} parent=127 // pred_region
          _
        $region164: #{forward.1} parent=127 // pred_fallthru
          _
      $region128: #{forward.1} parent=5 // pred_fallthru
        _
      %p3325 = scmp.le.s32.totalorder 2, %s77
      // Predicated region
      $region165: #{forward.1} parent=5 // pred_check
        %p3326 = pneg %p3325
      $region166: #{forward.1} parent=5 // pred_check_branch
        %3328 = sbr.rel (%p3326) target = $region168
      $region167: #{forward.1} parent=5 // pred_region
        %s3329 = ssub.s32 %s77, 2
        // Predicated region
        $region169: #{forward.1} parent=167 // pred_check
          %p3330 = pneg %p688
        $region170: #{forward.1} parent=167 // pred_check_branch
          %3332 = sbr.rel (%p3330) target = $region172
        $region171: #{forward.1} parent=167 // pred_region
          %s3333 = sand.u32 %s673, 1
          %s3334 = scalar_lea.sflag [#allocation4], %s3333
          %s3335 = sand.u32 %s673, 1
          %s3336 = smul.addr %s3335, 8
          %s3337 = scalar_lea.vmem [#allocation11], %s3336
          %3339 = dma.done %s3334, 128
        $region172: #{forward.1} parent=167 // pred_fallthru
          _
        // Predicated region
        $region173: #{forward.1} parent=167 // pred_check
          %p3340 = pneg %p714
        $region174: #{forward.1} parent=167 // pred_check_branch
          %3342 = sbr.rel (%p3340) target = $region176
        $region175: #{forward.1} parent=167 // pred_region
          %s3343 = sand.u32 %s699, 1
          %s3344 = scalar_lea.sflag [#allocation13], %s3343
          %s3345 = sand.u32 %s699, 1
          %s3346 = scalar_lea.vmem [#allocation12], %s3345
          %3348 = dma.done %s3344, 16
        $region176: #{forward.1} parent=167 // pred_fallthru
          _
        // Predicated region
        $region177: #{forward.1} parent=167 // pred_check
          %p3349 = pneg %p740
        $region178: #{forward.1} parent=167 // pred_check_branch
          %3351 = sbr.rel (%p3349) target = $region180
        $region179: #{forward.1} parent=167 // pred_region
          %p3352 = scmp.lt.s32.totalorder %s83, 1
          %s3353 = scalar_select %p3352, %s83, 1
          %s3354 = scalar_lea.vmem %s59, %s3353
        $region180: #{forward.1} parent=167 // pred_fallthru
          _
        // Predicated region
        $region181: #{forward.1} parent=167 // pred_check
          %p3355 = pneg %p766
        $region182: #{forward.1} parent=167 // pred_check_branch
          %3357 = sbr.rel (%p3355) target = $region184
        $region183: #{forward.1} parent=167 // pred_region
          %p3358 = scmp.lt.s32.totalorder %s83, 1
          %s3359 = scalar_select %p3358, %s83, 1
          %s3360 = scalar_lea.vmem %s61, %s3359
        $region184: #{forward.1} parent=167 // pred_fallthru
          _
      $region168: #{forward.1} parent=5 // pred_fallthru
        _
    $region6: #{forward.1} parent=1 // loop_footer
      %s81 = sadd.s32 1, %s77
    $region7: #{forward.1} parent=1 // loop_footer_branch
      %76 = sbr.rel target = $region3
    $region8: #{forward.1} parent=1 // loop_exit
      _
    %3361 = vsyncpa [#allocation3], 1
    %s3362 = scalar_lea.sflag [#allocation3], 1
    %3363 = vsyncpa %s3362, 1
    %3364 = vsyncpa [#allocation6], 1
    %3365 = vsyncpa [#allocation9], 1
    %3366 = vsyncpa [#allocation4], 1
    %s3367 = scalar_lea.sflag [#allocation4], 1
    %3368 = vsyncpa %s3367, 1
    %3369 = vsyncpa [#allocation13], 1
    %s3370 = scalar_lea.sflag [#allocation13], 1
    %3371 = vsyncpa %s3370, 1

</llo_original>
